<compile_context>
chip_gen: v5e
topology: v5e:2x2
jax: 0.10.0
libtpu: 0.0.40
codegen_flags: <defaults>
</compile_context>

<pallas_src>
import functools

import numpy as np
import jax
import jax.numpy as jnp
from jax import lax
from jax.experimental import pallas as pl
from jax.experimental.pallas import tpu as pltpu

# MXU operand dtype (accumulation is always f32 via preferred_element_type).
COMPUTE_DTYPE = jnp.bfloat16

# Branch widths fixed by the module spec.
_C_B1, _C_B2, _C_B3_1, _C_B3_2 = 24, 16, 16, 24
_C_B4_1, _C_B4_2, _C_B4_3 = 16, 24, 24
_C_HEAD = _C_B1 + _C_B2 + _C_B3_1 + _C_B4_1            # 72
_C_OUT = _C_B1 + _C_B2 + _C_B3_2 + _C_B4_3             # 88


# ------------------------------ fused kernel -------------------------------

def _inception_a_kernel(x_ref, m_ref, wh_ref, w3_ref, w4a_ref, w4b_ref, b_ref,
                        o_ref,
                        sh_ref, s3_ref, s4a_ref, s4b_ref,
                        *, W, cdt):
    f32 = jnp.float32
    lw = x_ref.shape[-1]                                    # lanes in this block

    def fill_im2col(src_f32, scratch, K, mask_row0):
        """Stage K*K shifted+masked copies of src (C, lw) into scratch (K*K*C, lw)."""
        c = src_f32.shape[0]
        p = (K - 1) // 2
        for kh in range(K):
            for kw in range(K):
                dh, dw = kh - p, kw - p
                t = kh * K + kw
                d = dh * W + dw
                # y[:, q] = src[:, (q + d) mod lw]; out-of-image sources are masked.
                piece = src_f32 if d == 0 else pltpu.roll(src_f32, (-d) % lw, axis=1)
                if dh != 0 or dw != 0:                      # center-tap mask is all ones
                    piece = piece * m_ref[mask_row0 + t:mask_row0 + t + 1, :]
                scratch[t * c:(t + 1) * c, :] = piece.astype(cdt)

    def mm(w_ref, s_ref, b_lo, b_hi):                       # (Cout,K)@(K,lw) + bias
        out = jnp.dot(w_ref[...], s_ref[...], preferred_element_type=f32)
        return out + b_ref[b_lo:b_hi, :]

    x = x_ref[...].astype(f32)                              # (Cin, lw)

    # fused head: branch1 (avg_pool3 + 1x1), branch2, branch3_1, branch4_1 in one dot.
    fill_im2col(x, sh_ref, 3, 0)
    head = mm(wh_ref, sh_ref, 0, _C_HEAD)                   # (72, lw) f32
    o_ref[0:24, :] = head[0:24, :].astype(o_ref.dtype)      # branch1 -> out[0:24]
    o_ref[24:40, :] = head[24:40, :].astype(o_ref.dtype)    # branch2 -> out[24:40]
    h3 = head[40:56, :]                                     # branch3_1 output
    h4 = head[56:72, :]                                     # branch4_1 output

    # branch3: 5x5 'same' conv -> one contraction-400 dot.
    fill_im2col(h3, s3_ref, 5, 9)
    b3 = mm(w3_ref, s3_ref, 72, 96)
    o_ref[40:64, :] = b3.astype(o_ref.dtype)

    # branch4: two 3x3 'same' convs -> contractions 144 and 216.
    fill_im2col(h4, s4a_ref, 3, 0)
    mid = mm(w4a_ref, s4a_ref, 96, 120)
    fill_im2col(mid, s4b_ref, 3, 0)
    b4 = mm(w4b_ref, s4b_ref, 120, 144)
    o_ref[64:88, :] = b4.astype(o_ref.dtype)


# ------------------------------- wrapper ------------------------------------

def _tap_masks(H, W, K):
    """(K*K, H*W) f32 masks: 1 where the (kh, kw) tap's source pixel is inside."""
    p = (K - 1) // 2
    i = np.arange(H)[:, None]
    j = np.arange(W)[None, :]
    rows = []
    for kh in range(K):
        for kw in range(K):
            dh, dw = kh - p, kw - p
            m = (i + dh >= 0) & (i + dh < H) & (j + dw >= 0) & (j + dw < W)
            rows.append(m.reshape(-1))
    return np.stack(rows).astype(np.float32)


def _mat_kxk(w):                       # (Cout, Cin, K, K) -> (Cout, K*K*Cin) tap-major
    cout, cin, K, _ = w.shape
    return jnp.transpose(w, (0, 2, 3, 1)).reshape(cout, K * K * cin)


def inception_a_forward(x_nchw, params):
    """Forward of InceptionA; input/output NCHW exactly like the PyTorch module."""
    N, Cin, H, W = x_nchw.shape
    HW = H * W

    # Fold batch into the lane dimension; split into image-aligned lane blocks
    # (2 blocks whenever N is even so v7x's two TensorCores both get work).
    num_blocks = 2 if (N >= 2 and N % 2 == 0) else 1
    ipb = N // num_blocks                  # images per lane block
    LW = ipb * HW                          # lane width per grid step

    x2 = jnp.transpose(x_nchw, (1, 0, 2, 3)).reshape(Cin, N * HW)

    w1, bb1 = params["branch1_2"]
    w2, bb2 = params["branch2"]
    w31, bb31 = params["branch3_1"]
    w32, bb32 = params["branch3_2"]
    w41, bb41 = params["branch4_1"]
    w42, bb42 = params["branch4_2"]
    w43, bb43 = params["branch4_3"]

    # Fused head weight (72, 9*Cin): branch1's 1x1/9 tiled over all 9 taps of a
    # 3x3 im2col of x (== avg_pool3 with count_include_pad=True, fused with its
    # 1x1), and the three 1x1 heads only in the center-tap (t=4) columns.
    w1m = w1.reshape(_C_B1, Cin)
    w_b1_rows = jnp.tile(w1m / 9.0, (1, 9))                          # (24, 9*Cin)
    w_1x1 = jnp.concatenate([w2.reshape(_C_B2, Cin),
                             w31.reshape(_C_B3_1, Cin),
                             w41.reshape(_C_B4_1, Cin)], axis=0)     # (48, Cin)
    w_1x1_rows = jnp.zeros((_C_B2 + _C_B3_1 + _C_B4_1, 9 * Cin),
                           jnp.float32).at[:, 4 * Cin:5 * Cin].set(w_1x1)
    w_head = jnp.concatenate([w_b1_rows, w_1x1_rows],
                             axis=0).astype(COMPUTE_DTYPE)           # (72, 9*Cin)

    w_b3 = _mat_kxk(w32).astype(COMPUTE_DTYPE)                       # (24, 400)
    w_b4a = _mat_kxk(w42).astype(COMPUTE_DTYPE)                      # (24, 144)
    w_b4b = _mat_kxk(w43).astype(COMPUTE_DTYPE)                      # (24, 216)

    # One merged bias vector (144, 1): [head(72) | b3(24) | b4a(24) | b4b(24)].
    biases = jnp.concatenate([bb1, bb2, bb31, bb41, bb32, bb42, bb43]
                             ).astype(jnp.float32).reshape(-1, 1)

    # One merged mask array (34, LW): rows 0..8 -> 3x3 taps, 9..33 -> 5x5 taps,
    # tiled per image within a lane block (zeroes cross-image roll leakage too).
    masks = np.concatenate([_tap_masks(H, W, 3), _tap_masks(H, W, 5)], axis=0)
    masks = jnp.asarray(np.tile(masks, (1, ipb)))                    # (34, LW)

    kern = functools.partial(_inception_a_kernel, W=W, cdt=COMPUTE_DTYPE)

    def _fixed(a):                                                   # whole 2-D array
        return pl.BlockSpec(a.shape, lambda n: (0, 0))

    out2 = pl.pallas_call(
        kern,
        out_shape=jax.ShapeDtypeStruct((_C_OUT, N * HW), x_nchw.dtype),
        grid=(num_blocks,),
        in_specs=[
            pl.BlockSpec((Cin, LW), lambda n: (0, n)),
            _fixed(masks),
            _fixed(w_head), _fixed(w_b3), _fixed(w_b4a), _fixed(w_b4b),
            _fixed(biases),
        ],
        out_specs=pl.BlockSpec((_C_OUT, LW), lambda n: (0, n)),
        scratch_shapes=[
            pltpu.VMEM((9 * Cin, LW), COMPUTE_DTYPE),        # 3x3 im2col of x
            pltpu.VMEM((25 * _C_B3_1, LW), COMPUTE_DTYPE),   # 5x5 im2col (400 rows)
            pltpu.VMEM((9 * _C_B4_1, LW), COMPUTE_DTYPE),    # 3x3 im2col (144 rows)
            pltpu.VMEM((9 * _C_B4_2, LW), COMPUTE_DTYPE),    # 3x3 im2col (216 rows)
        ],
        compiler_params=pltpu.CompilerParams(
            dimension_semantics=("parallel",),
            vmem_limit_bytes=32 * 1024 * 1024),
        # TODO(synk): at larger H*W, add a row-tile (+halo) grid axis and size the
        # lane block so the 25x im2col staging stays within v7x's 64 MiB VMEM.
    )(x2, masks, w_head, w_b3, w_b4a, w_b4b, biases)

    return jnp.transpose(out2.reshape(_C_OUT, N, H, W), (1, 0, 2, 3))  # NCHW


# --------------------------- parameter init ---------------------------------

def _init_conv(key, cout, cin, K):
    kw_, kb_ = jax.random.split(key)
    bound = 1.0 / float(cin * K * K) ** 0.5
    w = jax.random.uniform(kw_, (cout, cin, K, K), jnp.float32, -bound, bound)
    b = jax.random.uniform(kb_, (cout,), jnp.float32, -bound, bound)
    return w, b


def make_params(key, in_channel):
    ks = jax.random.split(key, 7)
    return {
        "branch1_2": _init_conv(ks[0], 24, in_channel, 1),
        "branch2":   _init_conv(ks[1], 16, in_channel, 1),
        "branch3_1": _init_conv(ks[2], 16, in_channel, 1),
        "branch3_2": _init_conv(ks[3], 24, 16, 5),
        "branch4_1": _init_conv(ks[4], 16, in_channel, 1),
        "branch4_2": _init_conv(ks[5], 24, 16, 3),
        "branch4_3": _init_conv(ks[6], 24, 24, 3),
    }


# --------------------- pure-JAX reference (sanity check) --------------------

def _ref_forward(x, params):
    def conv(h, w, b, pad):
        out = lax.conv_general_dilated(
            h, w, window_strides=(1, 1), padding=((pad, pad), (pad, pad)),
            dimension_numbers=("NCHW", "OIHW", "NCHW"),
            precision=lax.Precision.HIGHEST)
        return out + b.reshape(1, -1, 1, 1)

    pooled = lax.reduce_window(
        x, jnp.array(0.0, x.dtype), lax.add,
        window_dimensions=(1, 1, 3, 3), window_strides=(1, 1, 1, 1),
        padding=((0, 0), (0, 0), (1, 1), (1, 1))) / 9.0
    b1 = conv(pooled, *params["branch1_2"], 0)
    b2 = conv(x, *params["branch2"], 0)
    b3 = conv(conv(x, *params["branch3_1"], 0), *params["branch3_2"], 2)
    b4 = conv(conv(conv(x, *params["branch4_1"], 0),
                   *params["branch4_2"], 1), *params["branch4_3"], 1)
    return jnp.concatenate([b1, b2, b3, b4], axis=1)


# --------------------------------- main --------------------------------------

if __name__ == "__main__":
    key = jax.random.PRNGKey(0)
    k_params, k_x = jax.random.split(key)

    N, Cin, H, W = 2, 4, 16, 16
    params = make_params(k_params, Cin)
    x = jax.random.normal(k_x, (N, Cin, H, W), jnp.float32)   # NCHW like PyTorch

    fwd = jax.jit(inception_a_forward)
    out = jax.block_until_ready(fwd(x, params))

    assert out.shape == (N, _C_OUT, H, W), out.shape
    assert out.dtype == jnp.float32

    ref = jax.block_until_ready(jax.jit(_ref_forward)(x, params))
    max_err = float(jnp.max(jnp.abs(out - ref)))
    tol = 5e-2 if COMPUTE_DTYPE == jnp.bfloat16 else 2e-4
    assert bool(jnp.allclose(out, ref, atol=tol, rtol=tol)), \
        f"max abs error vs reference: {max_err}"
    print("KERNEL_OK")
</pallas_src>

<mosaic_0001>
module attributes {stable_mosaic.version = 11 : i64} {
  func.func @_inception_a_kernel(%arg0: i32, %arg1: memref<4x256xf32, #tpu.memory_space<vmem>>, %arg2: memref<34x256xf32, #tpu.memory_space<vmem>>, %arg3: memref<72x36xbf16, #tpu.memory_space<vmem>>, %arg4: memref<24x400xbf16, #tpu.memory_space<vmem>>, %arg5: memref<24x144xbf16, #tpu.memory_space<vmem>>, %arg6: memref<24x216xbf16, #tpu.memory_space<vmem>>, %arg7: memref<144x1xf32, #tpu.memory_space<vmem>>, %arg8: memref<88x256xf32, #tpu.memory_space<vmem>>, %arg9: memref<36x256xbf16, #tpu.memory_space<vmem>>, %arg10: memref<400x256xbf16, #tpu.memory_space<vmem>>, %arg11: memref<144x256xbf16, #tpu.memory_space<vmem>>, %arg12: memref<216x256xbf16, #tpu.memory_space<vmem>>) attributes {dimension_semantics = [#tpu.dimension_semantics<parallel>], iteration_bounds = array<i64: 2>, scalar_prefetch = 0 : i64, scratch_operands = 4 : i64, tpu.core_type = #tpu.core_type<tc>, window_params = [{transform_indices = @transform_0, window_bounds = array<i64: 4, 256>}, {pipeline_mode = #tpu.pipeline_mode<synchronous>, transform_indices = @transform_1, window_bounds = array<i64: 34, 256>}, {pipeline_mode = #tpu.pipeline_mode<synchronous>, transform_indices = @transform_2, window_bounds = array<i64: 72, 36>}, {pipeline_mode = #tpu.pipeline_mode<synchronous>, transform_indices = @transform_3, window_bounds = array<i64: 24, 400>}, {pipeline_mode = #tpu.pipeline_mode<synchronous>, transform_indices = @transform_4, window_bounds = array<i64: 24, 144>}, {pipeline_mode = #tpu.pipeline_mode<synchronous>, transform_indices = @transform_5, window_bounds = array<i64: 24, 216>}, {pipeline_mode = #tpu.pipeline_mode<synchronous>, transform_indices = @transform_6, window_bounds = array<i64: 144, 1>}, {transform_indices = @transform_7, window_bounds = array<i64: 88, 256>}]} {
    %c0 = arith.constant 0 : index
    %c0_0 = arith.constant 0 : index
    %0 = vector.load %arg1[%c0, %c0_0] : memref<4x256xf32, #tpu.memory_space<vmem>>, vector<4x256xf32>
    %c17_i32 = arith.constant 17 : i32
    %1 = tpu.dynamic_rotate %0 by %c17_i32 dim 1 : vector<4x256xf32>, i32 -> vector<4x256xf32>
    %c0_1 = arith.constant 0 : index
    %c0_2 = arith.constant 0 : index
    %2 = vector.load %arg2[%c0_1, %c0_2] : memref<34x256xf32, #tpu.memory_space<vmem>>, vector<1x256xf32>
    %3 = vector.broadcast %2 : vector<1x256xf32> to vector<4x256xf32>
    %4 = arith.mulf %1, %3 : vector<4x256xf32>
    %5 = arith.truncf %4 : vector<4x256xf32> to vector<4x256xbf16>
    %c0_3 = arith.constant 0 : index
    %c0_4 = arith.constant 0 : index
    %6 = vector.load %arg9[%c0_3, %c0_4] : memref<36x256xbf16, #tpu.memory_space<vmem>>, vector<4x256xbf16>
    tpu.vector_store %arg9[%c0_3, %c0_4], %5 {strides = array<i32>} : memref<36x256xbf16, #tpu.memory_space<vmem>>, vector<4x256xbf16>,
    %c16_i32 = arith.constant 16 : i32
    %7 = tpu.dynamic_rotate %0 by %c16_i32 dim 1 : vector<4x256xf32>, i32 -> vector<4x256xf32>
    %c1 = arith.constant 1 : index
    %c0_5 = arith.constant 0 : index
    %8 = vector.load %arg2[%c1, %c0_5] : memref<34x256xf32, #tpu.memory_space<vmem>>, vector<1x256xf32>
    %9 = vector.broadcast %8 : vector<1x256xf32> to vector<4x256xf32>
    %10 = arith.mulf %7, %9 : vector<4x256xf32>
    %11 = arith.truncf %10 : vector<4x256xf32> to vector<4x256xbf16>
    %c4 = arith.constant 4 : index
    %c0_6 = arith.constant 0 : index
    %12 = vector.load %arg9[%c4, %c0_6] : memref<36x256xbf16, #tpu.memory_space<vmem>>, vector<4x256xbf16>
    tpu.vector_store %arg9[%c4, %c0_6], %11 {strides = array<i32>} : memref<36x256xbf16, #tpu.memory_space<vmem>>, vector<4x256xbf16>,
    %c15_i32 = arith.constant 15 : i32
    %13 = tpu.dynamic_rotate %0 by %c15_i32 dim 1 : vector<4x256xf32>, i32 -> vector<4x256xf32>
    %c2 = arith.constant 2 : index
    %c0_7 = arith.constant 0 : index
    %14 = vector.load %arg2[%c2, %c0_7] : memref<34x256xf32, #tpu.memory_space<vmem>>, vector<1x256xf32>
    %15 = vector.broadcast %14 : vector<1x256xf32> to vector<4x256xf32>
    %16 = arith.mulf %13, %15 : vector<4x256xf32>
    %17 = arith.truncf %16 : vector<4x256xf32> to vector<4x256xbf16>
    %c8 = arith.constant 8 : index
    %c0_8 = arith.constant 0 : index
    %18 = vector.load %arg9[%c8, %c0_8] : memref<36x256xbf16, #tpu.memory_space<vmem>>, vector<4x256xbf16>
    tpu.vector_store %arg9[%c8, %c0_8], %17 {strides = array<i32>} : memref<36x256xbf16, #tpu.memory_space<vmem>>, vector<4x256xbf16>,
    %c1_i32 = arith.constant 1 : i32
    %19 = tpu.dynamic_rotate %0 by %c1_i32 dim 1 : vector<4x256xf32>, i32 -> vector<4x256xf32>
    %c3 = arith.constant 3 : index
    %c0_9 = arith.constant 0 : index
    %20 = vector.load %arg2[%c3, %c0_9] : memref<34x256xf32, #tpu.memory_space<vmem>>, vector<1x256xf32>
    %21 = vector.broadcast %20 : vector<1x256xf32> to vector<4x256xf32>
    %22 = arith.mulf %19, %21 : vector<4x256xf32>
    %23 = arith.truncf %22 : vector<4x256xf32> to vector<4x256xbf16>
    %c12 = arith.constant 12 : index
    %c0_10 = arith.constant 0 : index
    %24 = vector.load %arg9[%c12, %c0_10] : memref<36x256xbf16, #tpu.memory_space<vmem>>, vector<4x256xbf16>
    tpu.vector_store %arg9[%c12, %c0_10], %23 {strides = array<i32>} : memref<36x256xbf16, #tpu.memory_space<vmem>>, vector<4x256xbf16>,
    %25 = arith.truncf %0 : vector<4x256xf32> to vector<4x256xbf16>
    %c16 = arith.constant 16 : index
    %c0_11 = arith.constant 0 : index
    %26 = vector.load %arg9[%c16, %c0_11] : memref<36x256xbf16, #tpu.memory_space<vmem>>, vector<4x256xbf16>
    tpu.vector_store %arg9[%c16, %c0_11], %25 {strides = array<i32>} : memref<36x256xbf16, #tpu.memory_space<vmem>>, vector<4x256xbf16>,
    %c255_i32 = arith.constant 255 : i32
    %27 = tpu.dynamic_rotate %0 by %c255_i32 dim 1 : vector<4x256xf32>, i32 -> vector<4x256xf32>
    %c5 = arith.constant 5 : index
    %c0_12 = arith.constant 0 : index
    %28 = vector.load %arg2[%c5, %c0_12] : memref<34x256xf32, #tpu.memory_space<vmem>>, vector<1x256xf32>
    %29 = vector.broadcast %28 : vector<1x256xf32> to vector<4x256xf32>
    %30 = arith.mulf %27, %29 : vector<4x256xf32>
    %31 = arith.truncf %30 : vector<4x256xf32> to vector<4x256xbf16>
    %c20 = arith.constant 20 : index
    %c0_13 = arith.constant 0 : index
    %32 = vector.load %arg9[%c20, %c0_13] : memref<36x256xbf16, #tpu.memory_space<vmem>>, vector<4x256xbf16>
    tpu.vector_store %arg9[%c20, %c0_13], %31 {strides = array<i32>} : memref<36x256xbf16, #tpu.memory_space<vmem>>, vector<4x256xbf16>,
    %c241_i32 = arith.constant 241 : i32
    %33 = tpu.dynamic_rotate %0 by %c241_i32 dim 1 : vector<4x256xf32>, i32 -> vector<4x256xf32>
    %c6 = arith.constant 6 : index
    %c0_14 = arith.constant 0 : index
    %34 = vector.load %arg2[%c6, %c0_14] : memref<34x256xf32, #tpu.memory_space<vmem>>, vector<1x256xf32>
    %35 = vector.broadcast %34 : vector<1x256xf32> to vector<4x256xf32>
    %36 = arith.mulf %33, %35 : vector<4x256xf32>
    %37 = arith.truncf %36 : vector<4x256xf32> to vector<4x256xbf16>
    %c24 = arith.constant 24 : index
    %c0_15 = arith.constant 0 : index
    %38 = vector.load %arg9[%c24, %c0_15] : memref<36x256xbf16, #tpu.memory_space<vmem>>, vector<4x256xbf16>
    tpu.vector_store %arg9[%c24, %c0_15], %37 {strides = array<i32>} : memref<36x256xbf16, #tpu.memory_space<vmem>>, vector<4x256xbf16>,
    %c240_i32 = arith.constant 240 : i32
    %39 = tpu.dynamic_rotate %0 by %c240_i32 dim 1 : vector<4x256xf32>, i32 -> vector<4x256xf32>
    %c7 = arith.constant 7 : index
    %c0_16 = arith.constant 0 : index
    %40 = vector.load %arg2[%c7, %c0_16] : memref<34x256xf32, #tpu.memory_space<vmem>>, vector<1x256xf32>
    %41 = vector.broadcast %40 : vector<1x256xf32> to vector<4x256xf32>
    %42 = arith.mulf %39, %41 : vector<4x256xf32>
    %43 = arith.truncf %42 : vector<4x256xf32> to vector<4x256xbf16>
    %c28 = arith.constant 28 : index
    %c0_17 = arith.constant 0 : index
    %44 = vector.load %arg9[%c28, %c0_17] : memref<36x256xbf16, #tpu.memory_space<vmem>>, vector<4x256xbf16>
    tpu.vector_store %arg9[%c28, %c0_17], %43 {strides = array<i32>} : memref<36x256xbf16, #tpu.memory_space<vmem>>, vector<4x256xbf16>,
    %c239_i32 = arith.constant 239 : i32
    %45 = tpu.dynamic_rotate %0 by %c239_i32 dim 1 : vector<4x256xf32>, i32 -> vector<4x256xf32>
    %c8_18 = arith.constant 8 : index
    %c0_19 = arith.constant 0 : index
    %46 = vector.load %arg2[%c8_18, %c0_19] : memref<34x256xf32, #tpu.memory_space<vmem>>, vector<1x256xf32>
    %47 = vector.broadcast %46 : vector<1x256xf32> to vector<4x256xf32>
    %48 = arith.mulf %45, %47 : vector<4x256xf32>
    %49 = arith.truncf %48 : vector<4x256xf32> to vector<4x256xbf16>
    %c32 = arith.constant 32 : index
    %c0_20 = arith.constant 0 : index
    %50 = vector.load %arg9[%c32, %c0_20] : memref<36x256xbf16, #tpu.memory_space<vmem>>, vector<4x256xbf16>
    tpu.vector_store %arg9[%c32, %c0_20], %49 {strides = array<i32>} : memref<36x256xbf16, #tpu.memory_space<vmem>>, vector<4x256xbf16>,
    %c0_21 = arith.constant 0 : index
    %c0_22 = arith.constant 0 : index
    %51 = vector.load %arg3[%c0_21, %c0_22] : memref<72x36xbf16, #tpu.memory_space<vmem>>, vector<72x36xbf16>
    %c0_23 = arith.constant 0 : index
    %c0_24 = arith.constant 0 : index
    %52 = vector.load %arg9[%c0_23, %c0_24] : memref<36x256xbf16, #tpu.memory_space<vmem>>, vector<36x256xbf16>
    %cst = arith.constant dense<0.000000e+00> : vector<72x256xf32>
    %53 = tpu.matmul %51, %52, %cst {dimension_numbers = #tpu.dot_dimension_numbers<[1], [0], [0], [1], [0, 0, 1, 1], [], []>} : vector<72x36xbf16>, vector<36x256xbf16>, vector<72x256xf32> -> vector<72x256xf32>
    %c0_25 = arith.constant 0 : index
    %c0_26 = arith.constant 0 : index
    %54 = vector.load %arg7[%c0_25, %c0_26] : memref<144x1xf32, #tpu.memory_space<vmem>>, vector<72x1xf32>
    %55 = vector.broadcast %54 : vector<72x1xf32> to vector<72x256xf32>
    %56 = arith.addf %53, %55 : vector<72x256xf32>
    %57 = vector.extract_strided_slice %56 {offsets = [0, 0], sizes = [24, 256], strides = [1, 1]} : vector<72x256xf32> to vector<24x256xf32>
    %c0_27 = arith.constant 0 : index
    %c0_28 = arith.constant 0 : index
    %58 = vector.load %arg8[%c0_27, %c0_28] : memref<88x256xf32, #tpu.memory_space<vmem>>, vector<24x256xf32>
    tpu.vector_store %arg8[%c0_27, %c0_28], %57 {strides = array<i32>} : memref<88x256xf32, #tpu.memory_space<vmem>>, vector<24x256xf32>,
    %59 = vector.extract_strided_slice %56 {offsets = [24, 0], sizes = [16, 256], strides = [1, 1]} : vector<72x256xf32> to vector<16x256xf32>
    %c24_29 = arith.constant 24 : index
    %c0_30 = arith.constant 0 : index
    %60 = vector.load %arg8[%c24_29, %c0_30] : memref<88x256xf32, #tpu.memory_space<vmem>>, vector<16x256xf32>
    tpu.vector_store %arg8[%c24_29, %c0_30], %59 {strides = array<i32>} : memref<88x256xf32, #tpu.memory_space<vmem>>, vector<16x256xf32>,
    %61 = vector.extract_strided_slice %56 {offsets = [40, 0], sizes = [16, 256], strides = [1, 1]} : vector<72x256xf32> to vector<16x256xf32>
    %62 = vector.extract_strided_slice %56 {offsets = [56, 0], sizes = [16, 256], strides = [1, 1]} : vector<72x256xf32> to vector<16x256xf32>
    %c34_i32 = arith.constant 34 : i32
    %63 = tpu.dynamic_rotate %61 by %c34_i32 dim 1 : vector<16x256xf32>, i32 -> vector<16x256xf32>
    %c9 = arith.constant 9 : index
    %c0_31 = arith.constant 0 : index
    %64 = vector.load %arg2[%c9, %c0_31] : memref<34x256xf32, #tpu.memory_space<vmem>>, vector<1x256xf32>
    %65 = vector.broadcast %64 : vector<1x256xf32> to vector<16x256xf32>
    %66 = arith.mulf %63, %65 : vector<16x256xf32>
    %67 = arith.truncf %66 : vector<16x256xf32> to vector<16x256xbf16>
    %c0_32 = arith.constant 0 : index
    %c0_33 = arith.constant 0 : index
    %68 = vector.load %arg10[%c0_32, %c0_33] : memref<400x256xbf16, #tpu.memory_space<vmem>>, vector<16x256xbf16>
    tpu.vector_store %arg10[%c0_32, %c0_33], %67 {strides = array<i32>} : memref<400x256xbf16, #tpu.memory_space<vmem>>, vector<16x256xbf16>,
    %c33_i32 = arith.constant 33 : i32
    %69 = tpu.dynamic_rotate %61 by %c33_i32 dim 1 : vector<16x256xf32>, i32 -> vector<16x256xf32>
    %c10 = arith.constant 10 : index
    %c0_34 = arith.constant 0 : index
    %70 = vector.load %arg2[%c10, %c0_34] : memref<34x256xf32, #tpu.memory_space<vmem>>, vector<1x256xf32>
    %71 = vector.broadcast %70 : vector<1x256xf32> to vector<16x256xf32>
    %72 = arith.mulf %69, %71 : vector<16x256xf32>
    %73 = arith.truncf %72 : vector<16x256xf32> to vector<16x256xbf16>
    %c16_35 = arith.constant 16 : index
    %c0_36 = arith.constant 0 : index
    %74 = vector.load %arg10[%c16_35, %c0_36] : memref<400x256xbf16, #tpu.memory_space<vmem>>, vector<16x256xbf16>
    tpu.vector_store %arg10[%c16_35, %c0_36], %73 {strides = array<i32>} : memref<400x256xbf16, #tpu.memory_space<vmem>>, vector<16x256xbf16>,
    %c32_i32 = arith.constant 32 : i32
    %75 = tpu.dynamic_rotate %61 by %c32_i32 dim 1 : vector<16x256xf32>, i32 -> vector<16x256xf32>
    %c11 = arith.constant 11 : index
    %c0_37 = arith.constant 0 : index
    %76 = vector.load %arg2[%c11, %c0_37] : memref<34x256xf32, #tpu.memory_space<vmem>>, vector<1x256xf32>
    %77 = vector.broadcast %76 : vector<1x256xf32> to vector<16x256xf32>
    %78 = arith.mulf %75, %77 : vector<16x256xf32>
    %79 = arith.truncf %78 : vector<16x256xf32> to vector<16x256xbf16>
    %c32_38 = arith.constant 32 : index
    %c0_39 = arith.constant 0 : index
    %80 = vector.load %arg10[%c32_38, %c0_39] : memref<400x256xbf16, #tpu.memory_space<vmem>>, vector<16x256xbf16>
    tpu.vector_store %arg10[%c32_38, %c0_39], %79 {strides = array<i32>} : memref<400x256xbf16, #tpu.memory_space<vmem>>, vector<16x256xbf16>,
    %c31_i32 = arith.constant 31 : i32
    %81 = tpu.dynamic_rotate %61 by %c31_i32 dim 1 : vector<16x256xf32>, i32 -> vector<16x256xf32>
    %c12_40 = arith.constant 12 : index
    %c0_41 = arith.constant 0 : index
    %82 = vector.load %arg2[%c12_40, %c0_41] : memref<34x256xf32, #tpu.memory_space<vmem>>, vector<1x256xf32>
    %83 = vector.broadcast %82 : vector<1x256xf32> to vector<16x256xf32>
    %84 = arith.mulf %81, %83 : vector<16x256xf32>
    %85 = arith.truncf %84 : vector<16x256xf32> to vector<16x256xbf16>
    %c48 = arith.constant 48 : index
    %c0_42 = arith.constant 0 : index
    %86 = vector.load %arg10[%c48, %c0_42] : memref<400x256xbf16, #tpu.memory_space<vmem>>, vector<16x256xbf16>
    tpu.vector_store %arg10[%c48, %c0_42], %85 {strides = array<i32>} : memref<400x256xbf16, #tpu.memory_space<vmem>>, vector<16x256xbf16>,
    %c30_i32 = arith.constant 30 : i32
    %87 = tpu.dynamic_rotate %61 by %c30_i32 dim 1 : vector<16x256xf32>, i32 -> vector<16x256xf32>
    %c13 = arith.constant 13 : index
    %c0_43 = arith.constant 0 : index
    %88 = vector.load %arg2[%c13, %c0_43] : memref<34x256xf32, #tpu.memory_space<vmem>>, vector<1x256xf32>
    %89 = vector.broadcast %88 : vector<1x256xf32> to vector<16x256xf32>
    %90 = arith.mulf %87, %89 : vector<16x256xf32>
    %91 = arith.truncf %90 : vector<16x256xf32> to vector<16x256xbf16>
    %c64 = arith.constant 64 : index
    %c0_44 = arith.constant 0 : index
    %92 = vector.load %arg10[%c64, %c0_44] : memref<400x256xbf16, #tpu.memory_space<vmem>>, vector<16x256xbf16>
    tpu.vector_store %arg10[%c64, %c0_44], %91 {strides = array<i32>} : memref<400x256xbf16, #tpu.memory_space<vmem>>, vector<16x256xbf16>,
    %c18_i32 = arith.constant 18 : i32
    %93 = tpu.dynamic_rotate %61 by %c18_i32 dim 1 : vector<16x256xf32>, i32 -> vector<16x256xf32>
    %c14 = arith.constant 14 : index
    %c0_45 = arith.constant 0 : index
    %94 = vector.load %arg2[%c14, %c0_45] : memref<34x256xf32, #tpu.memory_space<vmem>>, vector<1x256xf32>
    %95 = vector.broadcast %94 : vector<1x256xf32> to vector<16x256xf32>
    %96 = arith.mulf %93, %95 : vector<16x256xf32>
    %97 = arith.truncf %96 : vector<16x256xf32> to vector<16x256xbf16>
    %c80 = arith.constant 80 : index
    %c0_46 = arith.constant 0 : index
    %98 = vector.load %arg10[%c80, %c0_46] : memref<400x256xbf16, #tpu.memory_space<vmem>>, vector<16x256xbf16>
    tpu.vector_store %arg10[%c80, %c0_46], %97 {strides = array<i32>} : memref<400x256xbf16, #tpu.memory_space<vmem>>, vector<16x256xbf16>,
    %c17_i32_47 = arith.constant 17 : i32
    %99 = tpu.dynamic_rotate %61 by %c17_i32_47 dim 1 : vector<16x256xf32>, i32 -> vector<16x256xf32>
    %c15 = arith.constant 15 : index
    %c0_48 = arith.constant 0 : index
    %100 = vector.load %arg2[%c15, %c0_48] : memref<34x256xf32, #tpu.memory_space<vmem>>, vector<1x256xf32>
    %101 = vector.broadcast %100 : vector<1x256xf32> to vector<16x256xf32>
    %102 = arith.mulf %99, %101 : vector<16x256xf32>
    %103 = arith.truncf %102 : vector<16x256xf32> to vector<16x256xbf16>
    %c96 = arith.constant 96 : index
    %c0_49 = arith.constant 0 : index
    %104 = vector.load %arg10[%c96, %c0_49] : memref<400x256xbf16, #tpu.memory_space<vmem>>, vector<16x256xbf16>
    tpu.vector_store %arg10[%c96, %c0_49], %103 {strides = array<i32>} : memref<400x256xbf16, #tpu.memory_space<vmem>>, vector<16x256xbf16>,
    %c16_i32_50 = arith.constant 16 : i32
    %105 = tpu.dynamic_rotate %61 by %c16_i32_50 dim 1 : vector<16x256xf32>, i32 -> vector<16x256xf32>
    %c16_51 = arith.constant 16 : index
    %c0_52 = arith.constant 0 : index
    %106 = vector.load %arg2[%c16_51, %c0_52] : memref<34x256xf32, #tpu.memory_space<vmem>>, vector<1x256xf32>
    %107 = vector.broadcast %106 : vector<1x256xf32> to vector<16x256xf32>
    %108 = arith.mulf %105, %107 : vector<16x256xf32>
    %109 = arith.truncf %108 : vector<16x256xf32> to vector<16x256xbf16>
    %c112 = arith.constant 112 : index
    %c0_53 = arith.constant 0 : index
    %110 = vector.load %arg10[%c112, %c0_53] : memref<400x256xbf16, #tpu.memory_space<vmem>>, vector<16x256xbf16>
    tpu.vector_store %arg10[%c112, %c0_53], %109 {strides = array<i32>} : memref<400x256xbf16, #tpu.memory_space<vmem>>, vector<16x256xbf16>,
    %c15_i32_54 = arith.constant 15 : i32
    %111 = tpu.dynamic_rotate %61 by %c15_i32_54 dim 1 : vector<16x256xf32>, i32 -> vector<16x256xf32>
    %c17 = arith.constant 17 : index
    %c0_55 = arith.constant 0 : index
    %112 = vector.load %arg2[%c17, %c0_55] : memref<34x256xf32, #tpu.memory_space<vmem>>, vector<1x256xf32>
    %113 = vector.broadcast %112 : vector<1x256xf32> to vector<16x256xf32>
    %114 = arith.mulf %111, %113 : vector<16x256xf32>
    %115 = arith.truncf %114 : vector<16x256xf32> to vector<16x256xbf16>
    %c128 = arith.constant 128 : index
    %c0_56 = arith.constant 0 : index
    %116 = vector.load %arg10[%c128, %c0_56] : memref<400x256xbf16, #tpu.memory_space<vmem>>, vector<16x256xbf16>
    tpu.vector_store %arg10[%c128, %c0_56], %115 {strides = array<i32>} : memref<400x256xbf16, #tpu.memory_space<vmem>>, vector<16x256xbf16>,
    %c14_i32 = arith.constant 14 : i32
    %117 = tpu.dynamic_rotate %61 by %c14_i32 dim 1 : vector<16x256xf32>, i32 -> vector<16x256xf32>
    %c18 = arith.constant 18 : index
    %c0_57 = arith.constant 0 : index
    %118 = vector.load %arg2[%c18, %c0_57] : memref<34x256xf32, #tpu.memory_space<vmem>>, vector<1x256xf32>
    %119 = vector.broadcast %118 : vector<1x256xf32> to vector<16x256xf32>
    %120 = arith.mulf %117, %119 : vector<16x256xf32>
    %121 = arith.truncf %120 : vector<16x256xf32> to vector<16x256xbf16>
    %c144 = arith.constant 144 : index
    %c0_58 = arith.constant 0 : index
    %122 = vector.load %arg10[%c144, %c0_58] : memref<400x256xbf16, #tpu.memory_space<vmem>>, vector<16x256xbf16>
    tpu.vector_store %arg10[%c144, %c0_58], %121 {strides = array<i32>} : memref<400x256xbf16, #tpu.memory_space<vmem>>, vector<16x256xbf16>,
    %c2_i32 = arith.constant 2 : i32
    %123 = tpu.dynamic_rotate %61 by %c2_i32 dim 1 : vector<16x256xf32>, i32 -> vector<16x256xf32>
    %c19 = arith.constant 19 : index
    %c0_59 = arith.constant 0 : index
    %124 = vector.load %arg2[%c19, %c0_59] : memref<34x256xf32, #tpu.memory_space<vmem>>, vector<1x256xf32>
    %125 = vector.broadcast %124 : vector<1x256xf32> to vector<16x256xf32>
    %126 = arith.mulf %123, %125 : vector<16x256xf32>
    %127 = arith.truncf %126 : vector<16x256xf32> to vector<16x256xbf16>
    %c160 = arith.constant 160 : index
    %c0_60 = arith.constant 0 : index
    %128 = vector.load %arg10[%c160, %c0_60] : memref<400x256xbf16, #tpu.memory_space<vmem>>, vector<16x256xbf16>
    tpu.vector_store %arg10[%c160, %c0_60], %127 {strides = array<i32>} : memref<400x256xbf16, #tpu.memory_space<vmem>>, vector<16x256xbf16>,
    %c1_i32_61 = arith.constant 1 : i32
    %129 = tpu.dynamic_rotate %61 by %c1_i32_61 dim 1 : vector<16x256xf32>, i32 -> vector<16x256xf32>
    %c20_62 = arith.constant 20 : index
    %c0_63 = arith.constant 0 : index
    %130 = vector.load %arg2[%c20_62, %c0_63] : memref<34x256xf32, #tpu.memory_space<vmem>>, vector<1x256xf32>
    %131 = vector.broadcast %130 : vector<1x256xf32> to vector<16x256xf32>
    %132 = arith.mulf %129, %131 : vector<16x256xf32>
    %133 = arith.truncf %132 : vector<16x256xf32> to vector<16x256xbf16>
    %c176 = arith.constant 176 : index
    %c0_64 = arith.constant 0 : index
    %134 = vector.load %arg10[%c176, %c0_64] : memref<400x256xbf16, #tpu.memory_space<vmem>>, vector<16x256xbf16>
    tpu.vector_store %arg10[%c176, %c0_64], %133 {strides = array<i32>} : memref<400x256xbf16, #tpu.memory_space<vmem>>, vector<16x256xbf16>,
    %135 = arith.truncf %61 : vector<16x256xf32> to vector<16x256xbf16>
    %c192 = arith.constant 192 : index
    %c0_65 = arith.constant 0 : index
    %136 = vector.load %arg10[%c192, %c0_65] : memref<400x256xbf16, #tpu.memory_space<vmem>>, vector<16x256xbf16>
    tpu.vector_store %arg10[%c192, %c0_65], %135 {strides = array<i32>} : memref<400x256xbf16, #tpu.memory_space<vmem>>, vector<16x256xbf16>,
    %c255_i32_66 = arith.constant 255 : i32
    %137 = tpu.dynamic_rotate %61 by %c255_i32_66 dim 1 : vector<16x256xf32>, i32 -> vector<16x256xf32>
    %c22 = arith.constant 22 : index
    %c0_67 = arith.constant 0 : index
    %138 = vector.load %arg2[%c22, %c0_67] : memref<34x256xf32, #tpu.memory_space<vmem>>, vector<1x256xf32>
    %139 = vector.broadcast %138 : vector<1x256xf32> to vector<16x256xf32>
    %140 = arith.mulf %137, %139 : vector<16x256xf32>
    %141 = arith.truncf %140 : vector<16x256xf32> to vector<16x256xbf16>
    %c208 = arith.constant 208 : index
    %c0_68 = arith.constant 0 : index
    %142 = vector.load %arg10[%c208, %c0_68] : memref<400x256xbf16, #tpu.memory_space<vmem>>, vector<16x256xbf16>
    tpu.vector_store %arg10[%c208, %c0_68], %141 {strides = array<i32>} : memref<400x256xbf16, #tpu.memory_space<vmem>>, vector<16x256xbf16>,
    %c254_i32 = arith.constant 254 : i32
    %143 = tpu.dynamic_rotate %61 by %c254_i32 dim 1 : vector<16x256xf32>, i32 -> vector<16x256xf32>
    %c23 = arith.constant 23 : index
    %c0_69 = arith.constant 0 : index
    %144 = vector.load %arg2[%c23, %c0_69] : memref<34x256xf32, #tpu.memory_space<vmem>>, vector<1x256xf32>
    %145 = vector.broadcast %144 : vector<1x256xf32> to vector<16x256xf32>
    %146 = arith.mulf %143, %145 : vector<16x256xf32>
    %147 = arith.truncf %146 : vector<16x256xf32> to vector<16x256xbf16>
    %c224 = arith.constant 224 : index
    %c0_70 = arith.constant 0 : index
    %148 = vector.load %arg10[%c224, %c0_70] : memref<400x256xbf16, #tpu.memory_space<vmem>>, vector<16x256xbf16>
    tpu.vector_store %arg10[%c224, %c0_70], %147 {strides = array<i32>} : memref<400x256xbf16, #tpu.memory_space<vmem>>, vector<16x256xbf16>,
    %c242_i32 = arith.constant 242 : i32
    %149 = tpu.dynamic_rotate %61 by %c242_i32 dim 1 : vector<16x256xf32>, i32 -> vector<16x256xf32>
    %c24_71 = arith.constant 24 : index
    %c0_72 = arith.constant 0 : index
    %150 = vector.load %arg2[%c24_71, %c0_72] : memref<34x256xf32, #tpu.memory_space<vmem>>, vector<1x256xf32>
    %151 = vector.broadcast %150 : vector<1x256xf32> to vector<16x256xf32>
    %152 = arith.mulf %149, %151 : vector<16x256xf32>
    %153 = arith.truncf %152 : vector<16x256xf32> to vector<16x256xbf16>
    %c240 = arith.constant 240 : index
    %c0_73 = arith.constant 0 : index
    %154 = vector.load %arg10[%c240, %c0_73] : memref<400x256xbf16, #tpu.memory_space<vmem>>, vector<16x256xbf16>
    tpu.vector_store %arg10[%c240, %c0_73], %153 {strides = array<i32>} : memref<400x256xbf16, #tpu.memory_space<vmem>>, vector<16x256xbf16>,
    %c241_i32_74 = arith.constant 241 : i32
    %155 = tpu.dynamic_rotate %61 by %c241_i32_74 dim 1 : vector<16x256xf32>, i32 -> vector<16x256xf32>
    %c25 = arith.constant 25 : index
    %c0_75 = arith.constant 0 : index
    %156 = vector.load %arg2[%c25, %c0_75] : memref<34x256xf32, #tpu.memory_space<vmem>>, vector<1x256xf32>
    %157 = vector.broadcast %156 : vector<1x256xf32> to vector<16x256xf32>
    %158 = arith.mulf %155, %157 : vector<16x256xf32>
    %159 = arith.truncf %158 : vector<16x256xf32> to vector<16x256xbf16>
    %c256 = arith.constant 256 : index
    %c0_76 = arith.constant 0 : index
    %160 = vector.load %arg10[%c256, %c0_76] : memref<400x256xbf16, #tpu.memory_space<vmem>>, vector<16x256xbf16>
    tpu.vector_store %arg10[%c256, %c0_76], %159 {strides = array<i32>} : memref<400x256xbf16, #tpu.memory_space<vmem>>, vector<16x256xbf16>,
    %c240_i32_77 = arith.constant 240 : i32
    %161 = tpu.dynamic_rotate %61 by %c240_i32_77 dim 1 : vector<16x256xf32>, i32 -> vector<16x256xf32>
    %c26 = arith.constant 26 : index
    %c0_78 = arith.constant 0 : index
    %162 = vector.load %arg2[%c26, %c0_78] : memref<34x256xf32, #tpu.memory_space<vmem>>, vector<1x256xf32>
    %163 = vector.broadcast %162 : vector<1x256xf32> to vector<16x256xf32>
    %164 = arith.mulf %161, %163 : vector<16x256xf32>
    %165 = arith.truncf %164 : vector<16x256xf32> to vector<16x256xbf16>
    %c272 = arith.constant 272 : index
    %c0_79 = arith.constant 0 : index
    %166 = vector.load %arg10[%c272, %c0_79] : memref<400x256xbf16, #tpu.memory_space<vmem>>, vector<16x256xbf16>
    tpu.vector_store %arg10[%c272, %c0_79], %165 {strides = array<i32>} : memref<400x256xbf16, #tpu.memory_space<vmem>>, vector<16x256xbf16>,
    %c239_i32_80 = arith.constant 239 : i32
    %167 = tpu.dynamic_rotate %61 by %c239_i32_80 dim 1 : vector<16x256xf32>, i32 -> vector<16x256xf32>
    %c27 = arith.constant 27 : index
    %c0_81 = arith.constant 0 : index
    %168 = vector.load %arg2[%c27, %c0_81] : memref<34x256xf32, #tpu.memory_space<vmem>>, vector<1x256xf32>
    %169 = vector.broadcast %168 : vector<1x256xf32> to vector<16x256xf32>
    %170 = arith.mulf %167, %169 : vector<16x256xf32>
    %171 = arith.truncf %170 : vector<16x256xf32> to vector<16x256xbf16>
    %c288 = arith.constant 288 : index
    %c0_82 = arith.constant 0 : index
    %172 = vector.load %arg10[%c288, %c0_82] : memref<400x256xbf16, #tpu.memory_space<vmem>>, vector<16x256xbf16>
    tpu.vector_store %arg10[%c288, %c0_82], %171 {strides = array<i32>} : memref<400x256xbf16, #tpu.memory_space<vmem>>, vector<16x256xbf16>,
    %c238_i32 = arith.constant 238 : i32
    %173 = tpu.dynamic_rotate %61 by %c238_i32 dim 1 : vector<16x256xf32>, i32 -> vector<16x256xf32>
    %c28_83 = arith.constant 28 : index
    %c0_84 = arith.constant 0 : index
    %174 = vector.load %arg2[%c28_83, %c0_84] : memref<34x256xf32, #tpu.memory_space<vmem>>, vector<1x256xf32>
    %175 = vector.broadcast %174 : vector<1x256xf32> to vector<16x256xf32>
    %176 = arith.mulf %173, %175 : vector<16x256xf32>
    %177 = arith.truncf %176 : vector<16x256xf32> to vector<16x256xbf16>
    %c304 = arith.constant 304 : index
    %c0_85 = arith.constant 0 : index
    %178 = vector.load %arg10[%c304, %c0_85] : memref<400x256xbf16, #tpu.memory_space<vmem>>, vector<16x256xbf16>
    tpu.vector_store %arg10[%c304, %c0_85], %177 {strides = array<i32>} : memref<400x256xbf16, #tpu.memory_space<vmem>>, vector<16x256xbf16>,
    %c226_i32 = arith.constant 226 : i32
    %179 = tpu.dynamic_rotate %61 by %c226_i32 dim 1 : vector<16x256xf32>, i32 -> vector<16x256xf32>
    %c29 = arith.constant 29 : index
    %c0_86 = arith.constant 0 : index
    %180 = vector.load %arg2[%c29, %c0_86] : memref<34x256xf32, #tpu.memory_space<vmem>>, vector<1x256xf32>
    %181 = vector.broadcast %180 : vector<1x256xf32> to vector<16x256xf32>
    %182 = arith.mulf %179, %181 : vector<16x256xf32>
    %183 = arith.truncf %182 : vector<16x256xf32> to vector<16x256xbf16>
    %c320 = arith.constant 320 : index
    %c0_87 = arith.constant 0 : index
    %184 = vector.load %arg10[%c320, %c0_87] : memref<400x256xbf16, #tpu.memory_space<vmem>>, vector<16x256xbf16>
    tpu.vector_store %arg10[%c320, %c0_87], %183 {strides = array<i32>} : memref<400x256xbf16, #tpu.memory_space<vmem>>, vector<16x256xbf16>,
    %c225_i32 = arith.constant 225 : i32
    %185 = tpu.dynamic_rotate %61 by %c225_i32 dim 1 : vector<16x256xf32>, i32 -> vector<16x256xf32>
    %c30 = arith.constant 30 : index
    %c0_88 = arith.constant 0 : index
    %186 = vector.load %arg2[%c30, %c0_88] : memref<34x256xf32, #tpu.memory_space<vmem>>, vector<1x256xf32>
    %187 = vector.broadcast %186 : vector<1x256xf32> to vector<16x256xf32>
    %188 = arith.mulf %185, %187 : vector<16x256xf32>
    %189 = arith.truncf %188 : vector<16x256xf32> to vector<16x256xbf16>
    %c336 = arith.constant 336 : index
    %c0_89 = arith.constant 0 : index
    %190 = vector.load %arg10[%c336, %c0_89] : memref<400x256xbf16, #tpu.memory_space<vmem>>, vector<16x256xbf16>
    tpu.vector_store %arg10[%c336, %c0_89], %189 {strides = array<i32>} : memref<400x256xbf16, #tpu.memory_space<vmem>>, vector<16x256xbf16>,
    %c224_i32 = arith.constant 224 : i32
    %191 = tpu.dynamic_rotate %61 by %c224_i32 dim 1 : vector<16x256xf32>, i32 -> vector<16x256xf32>
    %c31 = arith.constant 31 : index
    %c0_90 = arith.constant 0 : index
    %192 = vector.load %arg2[%c31, %c0_90] : memref<34x256xf32, #tpu.memory_space<vmem>>, vector<1x256xf32>
    %193 = vector.broadcast %192 : vector<1x256xf32> to vector<16x256xf32>
    %194 = arith.mulf %191, %193 : vector<16x256xf32>
    %195 = arith.truncf %194 : vector<16x256xf32> to vector<16x256xbf16>
    %c352 = arith.constant 352 : index
    %c0_91 = arith.constant 0 : index
    %196 = vector.load %arg10[%c352, %c0_91] : memref<400x256xbf16, #tpu.memory_space<vmem>>, vector<16x256xbf16>
    tpu.vector_store %arg10[%c352, %c0_91], %195 {strides = array<i32>} : memref<400x256xbf16, #tpu.memory_space<vmem>>, vector<16x256xbf16>,
    %c223_i32 = arith.constant 223 : i32
    %197 = tpu.dynamic_rotate %61 by %c223_i32 dim 1 : vector<16x256xf32>, i32 -> vector<16x256xf32>
    %c32_92 = arith.constant 32 : index
    %c0_93 = arith.constant 0 : index
    %198 = vector.load %arg2[%c32_92, %c0_93] : memref<34x256xf32, #tpu.memory_space<vmem>>, vector<1x256xf32>
    %199 = vector.broadcast %198 : vector<1x256xf32> to vector<16x256xf32>
    %200 = arith.mulf %197, %199 : vector<16x256xf32>
    %201 = arith.truncf %200 : vector<16x256xf32> to vector<16x256xbf16>
    %c368 = arith.constant 368 : index
    %c0_94 = arith.constant 0 : index
    %202 = vector.load %arg10[%c368, %c0_94] : memref<400x256xbf16, #tpu.memory_space<vmem>>, vector<16x256xbf16>
    tpu.vector_store %arg10[%c368, %c0_94], %201 {strides = array<i32>} : memref<400x256xbf16, #tpu.memory_space<vmem>>, vector<16x256xbf16>,
    %c222_i32 = arith.constant 222 : i32
    %203 = tpu.dynamic_rotate %61 by %c222_i32 dim 1 : vector<16x256xf32>, i32 -> vector<16x256xf32>
    %c33 = arith.constant 33 : index
    %c0_95 = arith.constant 0 : index
    %204 = vector.load %arg2[%c33, %c0_95] : memref<34x256xf32, #tpu.memory_space<vmem>>, vector<1x256xf32>
    %205 = vector.broadcast %204 : vector<1x256xf32> to vector<16x256xf32>
    %206 = arith.mulf %203, %205 : vector<16x256xf32>
    %207 = arith.truncf %206 : vector<16x256xf32> to vector<16x256xbf16>
    %c384 = arith.constant 384 : index
    %c0_96 = arith.constant 0 : index
    %208 = vector.load %arg10[%c384, %c0_96] : memref<400x256xbf16, #tpu.memory_space<vmem>>, vector<16x256xbf16>
    tpu.vector_store %arg10[%c384, %c0_96], %207 {strides = array<i32>} : memref<400x256xbf16, #tpu.memory_space<vmem>>, vector<16x256xbf16>,
    %c0_97 = arith.constant 0 : index
    %c0_98 = arith.constant 0 : index
    %209 = vector.load %arg4[%c0_97, %c0_98] : memref<24x400xbf16, #tpu.memory_space<vmem>>, vector<24x400xbf16>
    %c0_99 = arith.constant 0 : index
    %c0_100 = arith.constant 0 : index
    %210 = vector.load %arg10[%c0_99, %c0_100] : memref<400x256xbf16, #tpu.memory_space<vmem>>, vector<400x256xbf16>
    %cst_101 = arith.constant dense<0.000000e+00> : vector<24x256xf32>
    %211 = tpu.matmul %209, %210, %cst_101 {dimension_numbers = #tpu.dot_dimension_numbers<[1], [0], [0], [1], [0, 0, 1, 1], [], []>} : vector<24x400xbf16>, vector<400x256xbf16>, vector<24x256xf32> -> vector<24x256xf32>
    %c72 = arith.constant 72 : index
    %c0_102 = arith.constant 0 : index
    %212 = vector.load %arg7[%c72, %c0_102] : memref<144x1xf32, #tpu.memory_space<vmem>>, vector<24x1xf32>
    %213 = vector.broadcast %212 : vector<24x1xf32> to vector<24x256xf32>
    %214 = arith.addf %211, %213 : vector<24x256xf32>
    %c40 = arith.constant 40 : index
    %c0_103 = arith.constant 0 : index
    %215 = vector.load %arg8[%c40, %c0_103] : memref<88x256xf32, #tpu.memory_space<vmem>>, vector<24x256xf32>
    tpu.vector_store %arg8[%c40, %c0_103], %214 {strides = array<i32>} : memref<88x256xf32, #tpu.memory_space<vmem>>, vector<24x256xf32>,
    %c17_i32_104 = arith.constant 17 : i32
    %216 = tpu.dynamic_rotate %62 by %c17_i32_104 dim 1 : vector<16x256xf32>, i32 -> vector<16x256xf32>
    %c0_105 = arith.constant 0 : index
    %c0_106 = arith.constant 0 : index
    %217 = vector.load %arg2[%c0_105, %c0_106] : memref<34x256xf32, #tpu.memory_space<vmem>>, vector<1x256xf32>
    %218 = vector.broadcast %217 : vector<1x256xf32> to vector<16x256xf32>
    %219 = arith.mulf %216, %218 : vector<16x256xf32>
    %220 = arith.truncf %219 : vector<16x256xf32> to vector<16x256xbf16>
    %c0_107 = arith.constant 0 : index
    %c0_108 = arith.constant 0 : index
    %221 = vector.load %arg11[%c0_107, %c0_108] : memref<144x256xbf16, #tpu.memory_space<vmem>>, vector<16x256xbf16>
    tpu.vector_store %arg11[%c0_107, %c0_108], %220 {strides = array<i32>} : memref<144x256xbf16, #tpu.memory_space<vmem>>, vector<16x256xbf16>,
    %c16_i32_109 = arith.constant 16 : i32
    %222 = tpu.dynamic_rotate %62 by %c16_i32_109 dim 1 : vector<16x256xf32>, i32 -> vector<16x256xf32>
    %c1_110 = arith.constant 1 : index
    %c0_111 = arith.constant 0 : index
    %223 = vector.load %arg2[%c1_110, %c0_111] : memref<34x256xf32, #tpu.memory_space<vmem>>, vector<1x256xf32>
    %224 = vector.broadcast %223 : vector<1x256xf32> to vector<16x256xf32>
    %225 = arith.mulf %222, %224 : vector<16x256xf32>
    %226 = arith.truncf %225 : vector<16x256xf32> to vector<16x256xbf16>
    %c16_112 = arith.constant 16 : index
    %c0_113 = arith.constant 0 : index
    %227 = vector.load %arg11[%c16_112, %c0_113] : memref<144x256xbf16, #tpu.memory_space<vmem>>, vector<16x256xbf16>
    tpu.vector_store %arg11[%c16_112, %c0_113], %226 {strides = array<i32>} : memref<144x256xbf16, #tpu.memory_space<vmem>>, vector<16x256xbf16>,
    %c15_i32_114 = arith.constant 15 : i32
    %228 = tpu.dynamic_rotate %62 by %c15_i32_114 dim 1 : vector<16x256xf32>, i32 -> vector<16x256xf32>
    %c2_115 = arith.constant 2 : index
    %c0_116 = arith.constant 0 : index
    %229 = vector.load %arg2[%c2_115, %c0_116] : memref<34x256xf32, #tpu.memory_space<vmem>>, vector<1x256xf32>
    %230 = vector.broadcast %229 : vector<1x256xf32> to vector<16x256xf32>
    %231 = arith.mulf %228, %230 : vector<16x256xf32>
    %232 = arith.truncf %231 : vector<16x256xf32> to vector<16x256xbf16>
    %c32_117 = arith.constant 32 : index
    %c0_118 = arith.constant 0 : index
    %233 = vector.load %arg11[%c32_117, %c0_118] : memref<144x256xbf16, #tpu.memory_space<vmem>>, vector<16x256xbf16>
    tpu.vector_store %arg11[%c32_117, %c0_118], %232 {strides = array<i32>} : memref<144x256xbf16, #tpu.memory_space<vmem>>, vector<16x256xbf16>,
    %c1_i32_119 = arith.constant 1 : i32
    %234 = tpu.dynamic_rotate %62 by %c1_i32_119 dim 1 : vector<16x256xf32>, i32 -> vector<16x256xf32>
    %c3_120 = arith.constant 3 : index
    %c0_121 = arith.constant 0 : index
    %235 = vector.load %arg2[%c3_120, %c0_121] : memref<34x256xf32, #tpu.memory_space<vmem>>, vector<1x256xf32>
    %236 = vector.broadcast %235 : vector<1x256xf32> to vector<16x256xf32>
    %237 = arith.mulf %234, %236 : vector<16x256xf32>
    %238 = arith.truncf %237 : vector<16x256xf32> to vector<16x256xbf16>
    %c48_122 = arith.constant 48 : index
    %c0_123 = arith.constant 0 : index
    %239 = vector.load %arg11[%c48_122, %c0_123] : memref<144x256xbf16, #tpu.memory_space<vmem>>, vector<16x256xbf16>
    tpu.vector_store %arg11[%c48_122, %c0_123], %238 {strides = array<i32>} : memref<144x256xbf16, #tpu.memory_space<vmem>>, vector<16x256xbf16>,
    %240 = arith.truncf %62 : vector<16x256xf32> to vector<16x256xbf16>
    %c64_124 = arith.constant 64 : index
    %c0_125 = arith.constant 0 : index
    %241 = vector.load %arg11[%c64_124, %c0_125] : memref<144x256xbf16, #tpu.memory_space<vmem>>, vector<16x256xbf16>
    tpu.vector_store %arg11[%c64_124, %c0_125], %240 {strides = array<i32>} : memref<144x256xbf16, #tpu.memory_space<vmem>>, vector<16x256xbf16>,
    %c255_i32_126 = arith.constant 255 : i32
    %242 = tpu.dynamic_rotate %62 by %c255_i32_126 dim 1 : vector<16x256xf32>, i32 -> vector<16x256xf32>
    %c5_127 = arith.constant 5 : index
    %c0_128 = arith.constant 0 : index
    %243 = vector.load %arg2[%c5_127, %c0_128] : memref<34x256xf32, #tpu.memory_space<vmem>>, vector<1x256xf32>
    %244 = vector.broadcast %243 : vector<1x256xf32> to vector<16x256xf32>
    %245 = arith.mulf %242, %244 : vector<16x256xf32>
    %246 = arith.truncf %245 : vector<16x256xf32> to vector<16x256xbf16>
    %c80_129 = arith.constant 80 : index
    %c0_130 = arith.constant 0 : index
    %247 = vector.load %arg11[%c80_129, %c0_130] : memref<144x256xbf16, #tpu.memory_space<vmem>>, vector<16x256xbf16>
    tpu.vector_store %arg11[%c80_129, %c0_130], %246 {strides = array<i32>} : memref<144x256xbf16, #tpu.memory_space<vmem>>, vector<16x256xbf16>,
    %c241_i32_131 = arith.constant 241 : i32
    %248 = tpu.dynamic_rotate %62 by %c241_i32_131 dim 1 : vector<16x256xf32>, i32 -> vector<16x256xf32>
    %c6_132 = arith.constant 6 : index
    %c0_133 = arith.constant 0 : index
    %249 = vector.load %arg2[%c6_132, %c0_133] : memref<34x256xf32, #tpu.memory_space<vmem>>, vector<1x256xf32>
    %250 = vector.broadcast %249 : vector<1x256xf32> to vector<16x256xf32>
    %251 = arith.mulf %248, %250 : vector<16x256xf32>
    %252 = arith.truncf %251 : vector<16x256xf32> to vector<16x256xbf16>
    %c96_134 = arith.constant 96 : index
    %c0_135 = arith.constant 0 : index
    %253 = vector.load %arg11[%c96_134, %c0_135] : memref<144x256xbf16, #tpu.memory_space<vmem>>, vector<16x256xbf16>
    tpu.vector_store %arg11[%c96_134, %c0_135], %252 {strides = array<i32>} : memref<144x256xbf16, #tpu.memory_space<vmem>>, vector<16x256xbf16>,
    %c240_i32_136 = arith.constant 240 : i32
    %254 = tpu.dynamic_rotate %62 by %c240_i32_136 dim 1 : vector<16x256xf32>, i32 -> vector<16x256xf32>
    %c7_137 = arith.constant 7 : index
    %c0_138 = arith.constant 0 : index
    %255 = vector.load %arg2[%c7_137, %c0_138] : memref<34x256xf32, #tpu.memory_space<vmem>>, vector<1x256xf32>
    %256 = vector.broadcast %255 : vector<1x256xf32> to vector<16x256xf32>
    %257 = arith.mulf %254, %256 : vector<16x256xf32>
    %258 = arith.truncf %257 : vector<16x256xf32> to vector<16x256xbf16>
    %c112_139 = arith.constant 112 : index
    %c0_140 = arith.constant 0 : index
    %259 = vector.load %arg11[%c112_139, %c0_140] : memref<144x256xbf16, #tpu.memory_space<vmem>>, vector<16x256xbf16>
    tpu.vector_store %arg11[%c112_139, %c0_140], %258 {strides = array<i32>} : memref<144x256xbf16, #tpu.memory_space<vmem>>, vector<16x256xbf16>,
    %c239_i32_141 = arith.constant 239 : i32
    %260 = tpu.dynamic_rotate %62 by %c239_i32_141 dim 1 : vector<16x256xf32>, i32 -> vector<16x256xf32>
    %c8_142 = arith.constant 8 : index
    %c0_143 = arith.constant 0 : index
    %261 = vector.load %arg2[%c8_142, %c0_143] : memref<34x256xf32, #tpu.memory_space<vmem>>, vector<1x256xf32>
    %262 = vector.broadcast %261 : vector<1x256xf32> to vector<16x256xf32>
    %263 = arith.mulf %260, %262 : vector<16x256xf32>
    %264 = arith.truncf %263 : vector<16x256xf32> to vector<16x256xbf16>
    %c128_144 = arith.constant 128 : index
    %c0_145 = arith.constant 0 : index
    %265 = vector.load %arg11[%c128_144, %c0_145] : memref<144x256xbf16, #tpu.memory_space<vmem>>, vector<16x256xbf16>
    tpu.vector_store %arg11[%c128_144, %c0_145], %264 {strides = array<i32>} : memref<144x256xbf16, #tpu.memory_space<vmem>>, vector<16x256xbf16>,
    %c0_146 = arith.constant 0 : index
    %c0_147 = arith.constant 0 : index
    %266 = vector.load %arg5[%c0_146, %c0_147] : memref<24x144xbf16, #tpu.memory_space<vmem>>, vector<24x144xbf16>
    %c0_148 = arith.constant 0 : index
    %c0_149 = arith.constant 0 : index
    %267 = vector.load %arg11[%c0_148, %c0_149] : memref<144x256xbf16, #tpu.memory_space<vmem>>, vector<144x256xbf16>
    %cst_150 = arith.constant dense<0.000000e+00> : vector<24x256xf32>
    %268 = tpu.matmul %266, %267, %cst_150 {dimension_numbers = #tpu.dot_dimension_numbers<[1], [0], [0], [1], [0, 0, 1, 1], [], []>} : vector<24x144xbf16>, vector<144x256xbf16>, vector<24x256xf32> -> vector<24x256xf32>
    %c96_151 = arith.constant 96 : index
    %c0_152 = arith.constant 0 : index
    %269 = vector.load %arg7[%c96_151, %c0_152] : memref<144x1xf32, #tpu.memory_space<vmem>>, vector<24x1xf32>
    %270 = vector.broadcast %269 : vector<24x1xf32> to vector<24x256xf32>
    %271 = arith.addf %268, %270 : vector<24x256xf32>
    %c17_i32_153 = arith.constant 17 : i32
    %272 = tpu.dynamic_rotate %271 by %c17_i32_153 dim 1 : vector<24x256xf32>, i32 -> vector<24x256xf32>
    %c0_154 = arith.constant 0 : index
    %c0_155 = arith.constant 0 : index
    %273 = vector.load %arg2[%c0_154, %c0_155] : memref<34x256xf32, #tpu.memory_space<vmem>>, vector<1x256xf32>
    %274 = vector.broadcast %273 : vector<1x256xf32> to vector<24x256xf32>
    %275 = arith.mulf %272, %274 : vector<24x256xf32>
    %276 = arith.truncf %275 : vector<24x256xf32> to vector<24x256xbf16>
    %c0_156 = arith.constant 0 : index
    %c0_157 = arith.constant 0 : index
    %277 = vector.load %arg12[%c0_156, %c0_157] : memref<216x256xbf16, #tpu.memory_space<vmem>>, vector<24x256xbf16>
    tpu.vector_store %arg12[%c0_156, %c0_157], %276 {strides = array<i32>} : memref<216x256xbf16, #tpu.memory_space<vmem>>, vector<24x256xbf16>,
    %c16_i32_158 = arith.constant 16 : i32
    %278 = tpu.dynamic_rotate %271 by %c16_i32_158 dim 1 : vector<24x256xf32>, i32 -> vector<24x256xf32>
    %c1_159 = arith.constant 1 : index
    %c0_160 = arith.constant 0 : index
    %279 = vector.load %arg2[%c1_159, %c0_160] : memref<34x256xf32, #tpu.memory_space<vmem>>, vector<1x256xf32>
    %280 = vector.broadcast %279 : vector<1x256xf32> to vector<24x256xf32>
    %281 = arith.mulf %278, %280 : vector<24x256xf32>
    %282 = arith.truncf %281 : vector<24x256xf32> to vector<24x256xbf16>
    %c24_161 = arith.constant 24 : index
    %c0_162 = arith.constant 0 : index
    %283 = vector.load %arg12[%c24_161, %c0_162] : memref<216x256xbf16, #tpu.memory_space<vmem>>, vector<24x256xbf16>
    tpu.vector_store %arg12[%c24_161, %c0_162], %282 {strides = array<i32>} : memref<216x256xbf16, #tpu.memory_space<vmem>>, vector<24x256xbf16>,
    %c15_i32_163 = arith.constant 15 : i32
    %284 = tpu.dynamic_rotate %271 by %c15_i32_163 dim 1 : vector<24x256xf32>, i32 -> vector<24x256xf32>
    %c2_164 = arith.constant 2 : index
    %c0_165 = arith.constant 0 : index
    %285 = vector.load %arg2[%c2_164, %c0_165] : memref<34x256xf32, #tpu.memory_space<vmem>>, vector<1x256xf32>
    %286 = vector.broadcast %285 : vector<1x256xf32> to vector<24x256xf32>
    %287 = arith.mulf %284, %286 : vector<24x256xf32>
    %288 = arith.truncf %287 : vector<24x256xf32> to vector<24x256xbf16>
    %c48_166 = arith.constant 48 : index
    %c0_167 = arith.constant 0 : index
    %289 = vector.load %arg12[%c48_166, %c0_167] : memref<216x256xbf16, #tpu.memory_space<vmem>>, vector<24x256xbf16>
    tpu.vector_store %arg12[%c48_166, %c0_167], %288 {strides = array<i32>} : memref<216x256xbf16, #tpu.memory_space<vmem>>, vector<24x256xbf16>,
    %c1_i32_168 = arith.constant 1 : i32
    %290 = tpu.dynamic_rotate %271 by %c1_i32_168 dim 1 : vector<24x256xf32>, i32 -> vector<24x256xf32>
    %c3_169 = arith.constant 3 : index
    %c0_170 = arith.constant 0 : index
    %291 = vector.load %arg2[%c3_169, %c0_170] : memref<34x256xf32, #tpu.memory_space<vmem>>, vector<1x256xf32>
    %292 = vector.broadcast %291 : vector<1x256xf32> to vector<24x256xf32>
    %293 = arith.mulf %290, %292 : vector<24x256xf32>
    %294 = arith.truncf %293 : vector<24x256xf32> to vector<24x256xbf16>
    %c72_171 = arith.constant 72 : index
    %c0_172 = arith.constant 0 : index
    %295 = vector.load %arg12[%c72_171, %c0_172] : memref<216x256xbf16, #tpu.memory_space<vmem>>, vector<24x256xbf16>
    tpu.vector_store %arg12[%c72_171, %c0_172], %294 {strides = array<i32>} : memref<216x256xbf16, #tpu.memory_space<vmem>>, vector<24x256xbf16>,
    %296 = arith.truncf %271 : vector<24x256xf32> to vector<24x256xbf16>
    %c96_173 = arith.constant 96 : index
    %c0_174 = arith.constant 0 : index
    %297 = vector.load %arg12[%c96_173, %c0_174] : memref<216x256xbf16, #tpu.memory_space<vmem>>, vector<24x256xbf16>
    tpu.vector_store %arg12[%c96_173, %c0_174], %296 {strides = array<i32>} : memref<216x256xbf16, #tpu.memory_space<vmem>>, vector<24x256xbf16>,
    %c255_i32_175 = arith.constant 255 : i32
    %298 = tpu.dynamic_rotate %271 by %c255_i32_175 dim 1 : vector<24x256xf32>, i32 -> vector<24x256xf32>
    %c5_176 = arith.constant 5 : index
    %c0_177 = arith.constant 0 : index
    %299 = vector.load %arg2[%c5_176, %c0_177] : memref<34x256xf32, #tpu.memory_space<vmem>>, vector<1x256xf32>
    %300 = vector.broadcast %299 : vector<1x256xf32> to vector<24x256xf32>
    %301 = arith.mulf %298, %300 : vector<24x256xf32>
    %302 = arith.truncf %301 : vector<24x256xf32> to vector<24x256xbf16>
    %c120 = arith.constant 120 : index
    %c0_178 = arith.constant 0 : index
    %303 = vector.load %arg12[%c120, %c0_178] : memref<216x256xbf16, #tpu.memory_space<vmem>>, vector<24x256xbf16>
    tpu.vector_store %arg12[%c120, %c0_178], %302 {strides = array<i32>} : memref<216x256xbf16, #tpu.memory_space<vmem>>, vector<24x256xbf16>,
    %c241_i32_179 = arith.constant 241 : i32
    %304 = tpu.dynamic_rotate %271 by %c241_i32_179 dim 1 : vector<24x256xf32>, i32 -> vector<24x256xf32>
    %c6_180 = arith.constant 6 : index
    %c0_181 = arith.constant 0 : index
    %305 = vector.load %arg2[%c6_180, %c0_181] : memref<34x256xf32, #tpu.memory_space<vmem>>, vector<1x256xf32>
    %306 = vector.broadcast %305 : vector<1x256xf32> to vector<24x256xf32>
    %307 = arith.mulf %304, %306 : vector<24x256xf32>
    %308 = arith.truncf %307 : vector<24x256xf32> to vector<24x256xbf16>
    %c144_182 = arith.constant 144 : index
    %c0_183 = arith.constant 0 : index
    %309 = vector.load %arg12[%c144_182, %c0_183] : memref<216x256xbf16, #tpu.memory_space<vmem>>, vector<24x256xbf16>
    tpu.vector_store %arg12[%c144_182, %c0_183], %308 {strides = array<i32>} : memref<216x256xbf16, #tpu.memory_space<vmem>>, vector<24x256xbf16>,
    %c240_i32_184 = arith.constant 240 : i32
    %310 = tpu.dynamic_rotate %271 by %c240_i32_184 dim 1 : vector<24x256xf32>, i32 -> vector<24x256xf32>
    %c7_185 = arith.constant 7 : index
    %c0_186 = arith.constant 0 : index
    %311 = vector.load %arg2[%c7_185, %c0_186] : memref<34x256xf32, #tpu.memory_space<vmem>>, vector<1x256xf32>
    %312 = vector.broadcast %311 : vector<1x256xf32> to vector<24x256xf32>
    %313 = arith.mulf %310, %312 : vector<24x256xf32>
    %314 = arith.truncf %313 : vector<24x256xf32> to vector<24x256xbf16>
    %c168 = arith.constant 168 : index
    %c0_187 = arith.constant 0 : index
    %315 = vector.load %arg12[%c168, %c0_187] : memref<216x256xbf16, #tpu.memory_space<vmem>>, vector<24x256xbf16>
    tpu.vector_store %arg12[%c168, %c0_187], %314 {strides = array<i32>} : memref<216x256xbf16, #tpu.memory_space<vmem>>, vector<24x256xbf16>,
    %c239_i32_188 = arith.constant 239 : i32
    %316 = tpu.dynamic_rotate %271 by %c239_i32_188 dim 1 : vector<24x256xf32>, i32 -> vector<24x256xf32>
    %c8_189 = arith.constant 8 : index
    %c0_190 = arith.constant 0 : index
    %317 = vector.load %arg2[%c8_189, %c0_190] : memref<34x256xf32, #tpu.memory_space<vmem>>, vector<1x256xf32>
    %318 = vector.broadcast %317 : vector<1x256xf32> to vector<24x256xf32>
    %319 = arith.mulf %316, %318 : vector<24x256xf32>
    %320 = arith.truncf %319 : vector<24x256xf32> to vector<24x256xbf16>
    %c192_191 = arith.constant 192 : index
    %c0_192 = arith.constant 0 : index
    %321 = vector.load %arg12[%c192_191, %c0_192] : memref<216x256xbf16, #tpu.memory_space<vmem>>, vector<24x256xbf16>
    tpu.vector_store %arg12[%c192_191, %c0_192], %320 {strides = array<i32>} : memref<216x256xbf16, #tpu.memory_space<vmem>>, vector<24x256xbf16>,
    %c0_193 = arith.constant 0 : index
    %c0_194 = arith.constant 0 : index
    %322 = vector.load %arg6[%c0_193, %c0_194] : memref<24x216xbf16, #tpu.memory_space<vmem>>, vector<24x216xbf16>
    %c0_195 = arith.constant 0 : index
    %c0_196 = arith.constant 0 : index
    %323 = vector.load %arg12[%c0_195, %c0_196] : memref<216x256xbf16, #tpu.memory_space<vmem>>, vector<216x256xbf16>
    %cst_197 = arith.constant dense<0.000000e+00> : vector<24x256xf32>
    %324 = tpu.matmul %322, %323, %cst_197 {dimension_numbers = #tpu.dot_dimension_numbers<[1], [0], [0], [1], [0, 0, 1, 1], [], []>} : vector<24x216xbf16>, vector<216x256xbf16>, vector<24x256xf32> -> vector<24x256xf32>
    %c120_198 = arith.constant 120 : index
    %c0_199 = arith.constant 0 : index
    %325 = vector.load %arg7[%c120_198, %c0_199] : memref<144x1xf32, #tpu.memory_space<vmem>>, vector<24x1xf32>
    %326 = vector.broadcast %325 : vector<24x1xf32> to vector<24x256xf32>
    %327 = arith.addf %324, %326 : vector<24x256xf32>
    %c64_200 = arith.constant 64 : index
    %c0_201 = arith.constant 0 : index
    %328 = vector.load %arg8[%c64_200, %c0_201] : memref<88x256xf32, #tpu.memory_space<vmem>>, vector<24x256xf32>
    tpu.vector_store %arg8[%c64_200, %c0_201], %327 {strides = array<i32>} : memref<88x256xf32, #tpu.memory_space<vmem>>, vector<24x256xf32>,
    return
  }
  func.func @transform_0(%arg0: i32) -> (i32, i32) {
    %c0_i32 = arith.constant 0 : i32
    %c0_i32_0 = arith.constant 0 : i32
    return %c0_i32, %arg0 : i32, i32
  }
  func.func @transform_1(%arg0: i32) -> (i32, i32) {
    %c0_i32 = arith.constant 0 : i32
    %c0_i32_0 = arith.constant 0 : i32
    %c0_i32_1 = arith.constant 0 : i32
    return %c0_i32, %c0_i32_0 : i32, i32
  }
  func.func @transform_2(%arg0: i32) -> (i32, i32) {
    %c0_i32 = arith.constant 0 : i32
    %c0_i32_0 = arith.constant 0 : i32
    %c0_i32_1 = arith.constant 0 : i32
    return %c0_i32, %c0_i32_0 : i32, i32
  }
  func.func @transform_3(%arg0: i32) -> (i32, i32) {
    %c0_i32 = arith.constant 0 : i32
    %c0_i32_0 = arith.constant 0 : i32
    %c0_i32_1 = arith.constant 0 : i32
    return %c0_i32, %c0_i32_0 : i32, i32
  }
  func.func @transform_4(%arg0: i32) -> (i32, i32) {
    %c0_i32 = arith.constant 0 : i32
    %c0_i32_0 = arith.constant 0 : i32
    %c0_i32_1 = arith.constant 0 : i32
    return %c0_i32, %c0_i32_0 : i32, i32
  }
  func.func @transform_5(%arg0: i32) -> (i32, i32) {
    %c0_i32 = arith.constant 0 : i32
    %c0_i32_0 = arith.constant 0 : i32
    %c0_i32_1 = arith.constant 0 : i32
    return %c0_i32, %c0_i32_0 : i32, i32
  }
  func.func @transform_6(%arg0: i32) -> (i32, i32) {
    %c0_i32 = arith.constant 0 : i32
    %c0_i32_0 = arith.constant 0 : i32
    %c0_i32_1 = arith.constant 0 : i32
    return %c0_i32, %c0_i32_0 : i32, i32
  }
  func.func @transform_7(%arg0: i32) -> (i32, i32) {
    %c0_i32 = arith.constant 0 : i32
    %c0_i32_0 = arith.constant 0 : i32
    return %c0_i32, %arg0 : i32, i32
  }
}

</mosaic_0001>

<llo_original>
// kernel: tile.0
$region0: #{tile.0}
  %s0 = inlined_call_operand.vmem [shape: bf16[24,9,4], index: 0, kind: input, shape index: {}]
  %s1 = inlined_call_operand.vmem [shape: bf16[24,36], index: 1, kind: output, shape index: {}]
  $region1: #{tile.0} parent=0
    #allocation0 [shape = 'u8[20480]{0}', space=vmem, size = 0x5000, scoped, tag = 'scoped mem for output reshape']
    #allocation1 [shape = 'u8[36864]{0}', space=vmem, size = 0x9000, scoped, tag = 'scoped mem for input reshape']
    %s3 = ssub.s32 16, 1
    %s4 = scalar_lea.vmem %s0, 16
    %s5 = sshrl.u32 %s3, 1
    %s6 = sor.u32 %s3, %s5
    %s7 = sand.u32 %s6, 85
    %s8 = sshrl.u32 %s7, 1
    %s9 = sor.u32 %s7, %s8
    %s10 = sand.u32 51, %s9
    %s11 = sshrl.u32 %s10, 2
    %s12 = sor.u32 %s10, %s11
    %s13 = sand.u32 15, %s12
    %v14 = vld [vmem:[%s4] sm:%s13]
    %v15 = vunpack.c.l.bf16 %v14
    %v16 = vunpack.c.h.bf16 %v14
    %s17 = scalar_lea.vmem [#allocation1], 64
    %18 = vst [vmem:[%s17] sm:%s3] %v15
    %s19 = scalar_lea.vmem %s0, 14
    %s20 = sshrl.u32 %s3, 1
    %s21 = sor.u32 %s3, %s20
    %s22 = sand.u32 %s21, 85
    %s23 = sshrl.u32 %s22, 1
    %s24 = sor.u32 %s22, %s23
    %s25 = sand.u32 51, %s24
    %s26 = sshrl.u32 %s25, 2
    %s27 = sor.u32 %s25, %s26
    %s28 = sand.u32 15, %s27
    %v29 = vld [vmem:[%s19] sm:%s28]
    %v30 = vunpack.c.l.bf16 %v29
    %v31 = vunpack.c.h.bf16 %v29
    %s32 = scalar_lea.vmem [#allocation1], 56
    %33 = vst [vmem:[%s32] sm:%s3] %v30
    %s34 = scalar_lea.vmem %s0, 12
    %s35 = sshrl.u32 %s3, 1
    %s36 = sor.u32 %s3, %s35
    %s37 = sand.u32 %s36, 85
    %s38 = sshrl.u32 %s37, 1
    %s39 = sor.u32 %s37, %s38
    %s40 = sand.u32 51, %s39
    %s41 = sshrl.u32 %s40, 2
    %s42 = sor.u32 %s40, %s41
    %s43 = sand.u32 15, %s42
    %v44 = vld [vmem:[%s34] sm:%s43]
    %v45 = vunpack.c.l.bf16 %v44
    %v46 = vunpack.c.h.bf16 %v44
    %s47 = scalar_lea.vmem [#allocation1], 48
    %48 = vst [vmem:[%s47] sm:%s3] %v45
    %s49 = scalar_lea.vmem %s0, 10
    %s50 = sshrl.u32 %s3, 1
    %s51 = sor.u32 %s3, %s50
    %s52 = sand.u32 %s51, 85
    %s53 = sshrl.u32 %s52, 1
    %s54 = sor.u32 %s52, %s53
    %s55 = sand.u32 51, %s54
    %s56 = sshrl.u32 %s55, 2
    %s57 = sor.u32 %s55, %s56
    %s58 = sand.u32 15, %s57
    %v59 = vld [vmem:[%s49] sm:%s58]
    %v60 = vunpack.c.l.bf16 %v59
    %v61 = vunpack.c.h.bf16 %v59
    %s62 = scalar_lea.vmem [#allocation1], 40
    %63 = vst [vmem:[%s62] sm:%s3] %v60
    %s64 = scalar_lea.vmem %s0, 8
    %s65 = sshrl.u32 %s3, 1
    %s66 = sor.u32 %s3, %s65
    %s67 = sand.u32 %s66, 85
    %s68 = sshrl.u32 %s67, 1
    %s69 = sor.u32 %s67, %s68
    %s70 = sand.u32 51, %s69
    %s71 = sshrl.u32 %s70, 2
    %s72 = sor.u32 %s70, %s71
    %s73 = sand.u32 15, %s72
    %v74 = vld [vmem:[%s64] sm:%s73]
    %v75 = vunpack.c.l.bf16 %v74
    %v76 = vunpack.c.h.bf16 %v74
    %s77 = scalar_lea.vmem [#allocation1], 32
    %78 = vst [vmem:[%s77] sm:%s3] %v75
    %s79 = scalar_lea.vmem %s0, 6
    %s80 = sshrl.u32 %s3, 1
    %s81 = sor.u32 %s3, %s80
    %s82 = sand.u32 %s81, 85
    %s83 = sshrl.u32 %s82, 1
    %s84 = sor.u32 %s82, %s83
    %s85 = sand.u32 51, %s84
    %s86 = sshrl.u32 %s85, 2
    %s87 = sor.u32 %s85, %s86
    %s88 = sand.u32 15, %s87
    %v89 = vld [vmem:[%s79] sm:%s88]
    %v90 = vunpack.c.l.bf16 %v89
    %v91 = vunpack.c.h.bf16 %v89
    %s92 = scalar_lea.vmem [#allocation1], 24
    %93 = vst [vmem:[%s92] sm:%s3] %v90
    %s94 = scalar_lea.vmem %s0, 4
    %s95 = sshrl.u32 %s3, 1
    %s96 = sor.u32 %s3, %s95
    %s97 = sand.u32 %s96, 85
    %s98 = sshrl.u32 %s97, 1
    %s99 = sor.u32 %s97, %s98
    %s100 = sand.u32 51, %s99
    %s101 = sshrl.u32 %s100, 2
    %s102 = sor.u32 %s100, %s101
    %s103 = sand.u32 15, %s102
    %v104 = vld [vmem:[%s94] sm:%s103]
    %v105 = vunpack.c.l.bf16 %v104
    %v106 = vunpack.c.h.bf16 %v104
    %s107 = scalar_lea.vmem [#allocation1], 16
    %108 = vst [vmem:[%s107] sm:%s3] %v105
    %s109 = scalar_lea.vmem %s0, 2
    %s110 = sshrl.u32 %s3, 1
    %s111 = sor.u32 %s3, %s110
    %s112 = sand.u32 %s111, 85
    %s113 = sshrl.u32 %s112, 1
    %s114 = sor.u32 %s112, %s113
    %s115 = sand.u32 51, %s114
    %s116 = sshrl.u32 %s115, 2
    %s117 = sor.u32 %s115, %s116
    %s118 = sand.u32 15, %s117
    %v119 = vld [vmem:[%s109] sm:%s118]
    %v120 = vunpack.c.l.bf16 %v119
    %v121 = vunpack.c.h.bf16 %v119
    %s122 = scalar_lea.vmem [#allocation1], 8
    %123 = vst [vmem:[%s122] sm:%s3] %v120
    %s124 = sshrl.u32 %s3, 1
    %s125 = sor.u32 %s3, %s124
    %s126 = sand.u32 %s125, 85
    %s127 = sshrl.u32 %s126, 1
    %s128 = sor.u32 %s126, %s127
    %s129 = sand.u32 51, %s128
    %s130 = sshrl.u32 %s129, 2
    %s131 = sor.u32 %s129, %s130
    %s132 = sand.u32 15, %s131
    %v133 = vld [vmem:[%s0] sm:%s132]
    %v134 = vunpack.c.l.bf16 %v133
    %v135 = vunpack.c.h.bf16 %v133
    %136 = vst [vmem:[#allocation1] sm:%s3] %v134
    %v137 = vld [vmem:[#allocation1] sm:$0xf]
    %vm138 = vcmask 195584
    %139 = vst.msk [vmem:[#allocation0] sm:$0xf] %vm138, %v137
    %s140 = scalar_lea.vmem [#allocation1], 8
    %v141 = vld [vmem:[%s140] sm:$0xf]
    %vm142 = vcmask 195584
    %s143 = scalar_lea.vmem [#allocation0], 4
    %144 = vst.msk [vmem:[%s143] sm:$0xf] %vm142, %v141
    %s145 = scalar_lea.vmem [#allocation1], 16
    %v146 = vld [vmem:[%s145] sm:$0xf]
    %vm147 = vcmask 195584
    %s148 = scalar_lea.vmem [#allocation0], 8
    %149 = vst.msk [vmem:[%s148] sm:$0xf] %vm147, %v146
    %s150 = scalar_lea.vmem [#allocation1], 24
    %v151 = vld [vmem:[%s150] sm:$0xf]
    %vm152 = vcmask 195584
    %s153 = scalar_lea.vmem [#allocation0], 12
    %154 = vst.msk [vmem:[%s153] sm:$0xf] %vm152, %v151
    %s155 = scalar_lea.vmem [#allocation1], 32
    %v156 = vld [vmem:[%s155] sm:$0xf]
    %vm157 = vcmask 195584
    %s158 = scalar_lea.vmem [#allocation0], 16
    %159 = vst.msk [vmem:[%s158] sm:$0xf] %vm157, %v156
    %s160 = scalar_lea.vmem [#allocation1], 40
    %v161 = vld [vmem:[%s160] sm:$0xf]
    %vm162 = vcmask 195584
    %s163 = scalar_lea.vmem [#allocation0], 20
    %164 = vst.msk [vmem:[%s163] sm:$0xf] %vm162, %v161
    %s165 = scalar_lea.vmem [#allocation1], 48
    %v166 = vld [vmem:[%s165] sm:$0xf]
    %vm167 = vcmask 195584
    %s168 = scalar_lea.vmem [#allocation0], 24
    %169 = vst.msk [vmem:[%s168] sm:$0xf] %vm167, %v166
    %s170 = scalar_lea.vmem [#allocation1], 56
    %v171 = vld [vmem:[%s170] sm:$0xf]
    %vm172 = vcmask 195584
    %s173 = scalar_lea.vmem [#allocation0], 28
    %174 = vst.msk [vmem:[%s173] sm:$0xf] %vm172, %v171
    %s175 = scalar_lea.vmem [#allocation1], 64
    %v176 = vld [vmem:[%s175] sm:$0xf]
    %vm177 = vcmask 195584
    %s178 = scalar_lea.vmem [#allocation0], 32
    %179 = vst.msk [vmem:[%s178] sm:$0xf] %vm177, %v176
    %s181 = ssub.s32 256, 1
    %v182 = vld [vmem:[#allocation0] sm:%s181]
    %v183 = vpack.c.bf16 0.0, %v182
    %s185 = ssub.s32 16, 1
    %186 = vst [vmem:[%s1] sm:%s185] %v183
    %s187 = scalar_lea.vmem [#allocation0], 8
    %v188 = vld [vmem:[%s187] sm:%s181]
    %v189 = vpack.c.bf16 0.0, %v188
    %s191 = ssub.s32 16, 1
    %s192 = scalar_lea.vmem %s1, 4
    %193 = vst [vmem:[%s192] sm:%s191] %v189
    %s194 = scalar_lea.vmem [#allocation0], 16
    %v195 = vld [vmem:[%s194] sm:%s181]
    %v196 = vpack.c.bf16 0.0, %v195
    %s198 = ssub.s32 16, 1
    %s199 = scalar_lea.vmem %s1, 8
    %200 = vst [vmem:[%s199] sm:%s198] %v196
    %s201 = scalar_lea.vmem [#allocation0], 24
    %v202 = vld [vmem:[%s201] sm:%s181]
    %v203 = vpack.c.bf16 0.0, %v202
    %s205 = ssub.s32 16, 1
    %s206 = scalar_lea.vmem %s1, 12
    %207 = vst [vmem:[%s206] sm:%s205] %v203
    %s208 = scalar_lea.vmem [#allocation0], 32
    %v209 = vld [vmem:[%s208] sm:%s181]
    %v210 = vpack.c.bf16 0.0, %v209
    %s212 = ssub.s32 16, 1
    %s213 = scalar_lea.vmem %s1, 16
    %214 = vst [vmem:[%s213] sm:%s212] %v210

// kernel: inception_a_forward.1
$region0: #{inception_a_forward.1}
  #allocation0 [shape = 'u32[]', space=smem, size = 0x4, offset = 0x4, fixed_abs, tag = 'smem constant byte address 0x4 - core index']
  #allocation1 [shape = 'u32[72,128]{1,0:T(1,128)}', space=vmem, size = 0x9000, scoped, tag = 'internal scratch']
  #allocation2 [shape = 'bf16[36,256]{1,0:T(8,128)(2,1)}', space=vmem, size = 0x5000, scoped, tag = 'scratch operand']
  #allocation3 [shape = 'bf16[400,256]{1,0:T(8,128)(2,1)}', space=vmem, size = 0x32000, scoped, tag = 'scratch operand']
  #allocation4 [shape = 'bf16[144,256]{1,0:T(8,128)(2,1)}', space=vmem, size = 0x12000, scoped, tag = 'scratch operand']
  #allocation5 [shape = 'bf16[216,256]{1,0:T(8,128)(2,1)}', space=vmem, size = 0x1b000, scoped, tag = 'scratch operand']
  %s0 = inlined_call_operand.vmem [shape: f32[4,512], index: 0, kind: input, shape index: {}]
  %s1 = inlined_call_operand.vmem [shape: f32[34,256], index: 1, kind: input, shape index: {}]
  %s2 = inlined_call_operand.vmem [shape: bf16[72,36], index: 2, kind: input, shape index: {}]
  %s3 = inlined_call_operand.vmem [shape: bf16[24,400], index: 3, kind: input, shape index: {}]
  %s4 = inlined_call_operand.vmem [shape: bf16[24,144], index: 4, kind: input, shape index: {}]
  %s5 = inlined_call_operand.vmem [shape: bf16[24,216], index: 5, kind: input, shape index: {}]
  %s6 = inlined_call_operand.vmem [shape: f32[144,1], index: 6, kind: input, shape index: {}]
  %s7 = inlined_call_operand.vmem [shape: f32[88,512], index: 7, kind: output, shape index: {}]
  %s8 = sld [smem:[#allocation0]]
  $region80: #{inception_a_forward.1} parent=0
    _
  %s10 = ssub.s32 1, %s8
  %s11 = scalar_select 0, %s10, %s8
  $region1: #{inception_a_forward.1} parent=0
    #allocation6 [shape = 'u8[180224]{0}', space=vmem, size = 0x2c000, scoped, tag = 'output window, operand 0']
    loop: start=0, step=1, limit=4
    $region2: #{inception_a_forward.1} parent=1 // loop_pre_header
      _
    $region3: #{inception_a_forward.1} parent=1 // loop_header
      %s13 = sphi 0, %s17
      %p14 = scmp.ge.s32.totalorder %s13, 4
      %s23 = sphi 0, %s25
      %s26 = sphi 0, %s23
      %s27 = sphi 0, %s26
      %s43 = sphi 0, %s27
      %s47 = sphi 0, %s47
      %s49 = sphi 0, %s47
      %s50 = sphi 0, %s49
      %s64 = sphi 0, %s50
      %s68 = sphi 0, %s68
      %s70 = sphi 0, %s68
      %s71 = sphi 0, %s70
      %s85 = sphi 0, %s71
      %s89 = sphi 0, %s89
      %s91 = sphi 0, %s89
      %s92 = sphi 0, %s91
      %s106 = sphi 0, %s92
      %s110 = sphi 0, %s110
      %s112 = sphi 0, %s110
      %s113 = sphi 0, %s112
      %s127 = sphi 0, %s113
      %s131 = sphi 0, %s131
      %s133 = sphi 0, %s131
      %s134 = sphi 0, %s133
      %s148 = sphi 0, %s134
      %s152 = sphi 0, %s152
      %s154 = sphi 0, %s152
      %s155 = sphi 0, %s154
      %s169 = sphi 0, %s155
      %s175 = sphi 0, %s177
      %s178 = sphi 0, %s175
      %s179 = sphi 0, %s178
      %s195 = sphi 0, %s179
    $region4: #{inception_a_forward.1} parent=1 // loop_header_branch
      %16 = sbr.rel (%p14) target = $region8
    $region5: #{inception_a_forward.1} parent=1 // loop_body
      %s18 = ssub.s32 %s13, 1
      %s19 = ssub.s32 %s13, 2
      %s20 = sadd.s32 %s13, 1
      %s21 = ssub.s32 %s13, %s20
      %p22 = scmp.eq.s32.totalorder %s21, 0
      %s24 = sadd.s32 %s23, 1
      %s25 = scalar_select %p22, %s23, %s24
      %p28 = pneg %p22
      %p29 = scmp.eq.s32.totalorder %s13, 1
      %p30 = por %p28, %p29
      %p31 = scmp.ne.s32.totalorder %s23, %s26
      %p32 = scmp.eq.s32.totalorder %s13, 0
      %p33 = por %p31, %p32
      %p34 = scmp.ne.s32.totalorder %s23, %s26
      %p35 = scmp.eq.s32.totalorder %s18, 1
      %p36 = por %p34, %p35
      %p37 = scmp.ne.s32.totalorder %s26, %s27
      %p38 = scmp.eq.s32.totalorder %s18, 0
      %p39 = por %p37, %p38
      %p40 = scmp.ne.s32.totalorder %s26, %s27
      %p41 = scmp.eq.s32.totalorder %s19, 1
      %p42 = por %p40, %p41
      %p44 = scmp.ne.s32.totalorder %s27, %s43
      %p45 = scmp.eq.s32.totalorder %s19, 0
      %p46 = por %p44, %p45
      %s48 = sadd.s32 %s47, 1
      %p51 = scmp.eq.s32.totalorder %s13, 1
      %p52 = scmp.ne.s32.totalorder %s47, %s49
      %p53 = scmp.eq.s32.totalorder %s13, 0
      %p54 = por %p52, %p53
      %p55 = scmp.ne.s32.totalorder %s47, %s49
      %p56 = scmp.eq.s32.totalorder %s18, 1
      %p57 = por %p55, %p56
      %p58 = scmp.ne.s32.totalorder %s49, %s50
      %p59 = scmp.eq.s32.totalorder %s18, 0
      %p60 = por %p58, %p59
      %p61 = scmp.ne.s32.totalorder %s49, %s50
      %p62 = scmp.eq.s32.totalorder %s19, 1
      %p63 = por %p61, %p62
      %p65 = scmp.ne.s32.totalorder %s50, %s64
      %p66 = scmp.eq.s32.totalorder %s19, 0
      %p67 = por %p65, %p66
      %s69 = sadd.s32 %s68, 1
      %p72 = scmp.eq.s32.totalorder %s13, 1
      %p73 = scmp.ne.s32.totalorder %s68, %s70
      %p74 = scmp.eq.s32.totalorder %s13, 0
      %p75 = por %p73, %p74
      %p76 = scmp.ne.s32.totalorder %s68, %s70
      %p77 = scmp.eq.s32.totalorder %s18, 1
      %p78 = por %p76, %p77
      %p79 = scmp.ne.s32.totalorder %s70, %s71
      %p80 = scmp.eq.s32.totalorder %s18, 0
      %p81 = por %p79, %p80
      %p82 = scmp.ne.s32.totalorder %s70, %s71
      %p83 = scmp.eq.s32.totalorder %s19, 1
      %p84 = por %p82, %p83
      %p86 = scmp.ne.s32.totalorder %s71, %s85
      %p87 = scmp.eq.s32.totalorder %s19, 0
      %p88 = por %p86, %p87
      %s90 = sadd.s32 %s89, 1
      %p93 = scmp.eq.s32.totalorder %s13, 1
      %p94 = scmp.ne.s32.totalorder %s89, %s91
      %p95 = scmp.eq.s32.totalorder %s13, 0
      %p96 = por %p94, %p95
      %p97 = scmp.ne.s32.totalorder %s89, %s91
      %p98 = scmp.eq.s32.totalorder %s18, 1
      %p99 = por %p97, %p98
      %p100 = scmp.ne.s32.totalorder %s91, %s92
      %p101 = scmp.eq.s32.totalorder %s18, 0
      %p102 = por %p100, %p101
      %p103 = scmp.ne.s32.totalorder %s91, %s92
      %p104 = scmp.eq.s32.totalorder %s19, 1
      %p105 = por %p103, %p104
      %p107 = scmp.ne.s32.totalorder %s92, %s106
      %p108 = scmp.eq.s32.totalorder %s19, 0
      %p109 = por %p107, %p108
      %s111 = sadd.s32 %s110, 1
      %p114 = scmp.eq.s32.totalorder %s13, 1
      %p115 = scmp.ne.s32.totalorder %s110, %s112
      %p116 = scmp.eq.s32.totalorder %s13, 0
      %p117 = por %p115, %p116
      %p118 = scmp.ne.s32.totalorder %s110, %s112
      %p119 = scmp.eq.s32.totalorder %s18, 1
      %p120 = por %p118, %p119
      %p121 = scmp.ne.s32.totalorder %s112, %s113
      %p122 = scmp.eq.s32.totalorder %s18, 0
      %p123 = por %p121, %p122
      %p124 = scmp.ne.s32.totalorder %s112, %s113
      %p125 = scmp.eq.s32.totalorder %s19, 1
      %p126 = por %p124, %p125
      %p128 = scmp.ne.s32.totalorder %s113, %s127
      %p129 = scmp.eq.s32.totalorder %s19, 0
      %p130 = por %p128, %p129
      %s132 = sadd.s32 %s131, 1
      %p135 = scmp.eq.s32.totalorder %s13, 1
      %p136 = scmp.ne.s32.totalorder %s131, %s133
      %p137 = scmp.eq.s32.totalorder %s13, 0
      %p138 = por %p136, %p137
      %p139 = scmp.ne.s32.totalorder %s131, %s133
      %p140 = scmp.eq.s32.totalorder %s18, 1
      %p141 = por %p139, %p140
      %p142 = scmp.ne.s32.totalorder %s133, %s134
      %p143 = scmp.eq.s32.totalorder %s18, 0
      %p144 = por %p142, %p143
      %p145 = scmp.ne.s32.totalorder %s133, %s134
      %p146 = scmp.eq.s32.totalorder %s19, 1
      %p147 = por %p145, %p146
      %p149 = scmp.ne.s32.totalorder %s134, %s148
      %p150 = scmp.eq.s32.totalorder %s19, 0
      %p151 = por %p149, %p150
      %s153 = sadd.s32 %s152, 1
      %p156 = scmp.eq.s32.totalorder %s13, 1
      %p157 = scmp.ne.s32.totalorder %s152, %s154
      %p158 = scmp.eq.s32.totalorder %s13, 0
      %p159 = por %p157, %p158
      %p160 = scmp.ne.s32.totalorder %s152, %s154
      %p161 = scmp.eq.s32.totalorder %s18, 1
      %p162 = por %p160, %p161
      %p163 = scmp.ne.s32.totalorder %s154, %s155
      %p164 = scmp.eq.s32.totalorder %s18, 0
      %p165 = por %p163, %p164
      %p166 = scmp.ne.s32.totalorder %s154, %s155
      %p167 = scmp.eq.s32.totalorder %s19, 1
      %p168 = por %p166, %p167
      %p170 = scmp.ne.s32.totalorder %s155, %s169
      %p171 = scmp.eq.s32.totalorder %s19, 0
      %p172 = por %p170, %p171
      %s173 = ssub.s32 %s13, %s20
      %p174 = scmp.eq.s32.totalorder %s173, 0
      %s176 = sadd.s32 %s175, 1
      %s177 = scalar_select %p174, %s175, %s176
      %p180 = pneg %p174
      %p181 = scmp.eq.s32.totalorder %s13, 1
      %p182 = por %p180, %p181
      %p183 = scmp.ne.s32.totalorder %s175, %s178
      %p184 = scmp.eq.s32.totalorder %s13, 0
      %p185 = por %p183, %p184
      %p186 = scmp.ne.s32.totalorder %s175, %s178
      %p187 = scmp.eq.s32.totalorder %s18, 1
      %p188 = por %p186, %p187
      %p189 = scmp.ne.s32.totalorder %s178, %s179
      %p190 = scmp.eq.s32.totalorder %s18, 0
      %p191 = por %p189, %p190
      %p192 = scmp.ne.s32.totalorder %s178, %s179
      %p193 = scmp.eq.s32.totalorder %s19, 1
      %p194 = por %p192, %p193
      %p196 = scmp.ne.s32.totalorder %s179, %s195
      %p197 = scmp.eq.s32.totalorder %s19, 0
      %p198 = por %p196, %p197
      %p199 = scmp.le.s32.totalorder 1, %s13
      %p200 = scmp.lt.s32.totalorder %s13, 3
      %p201 = pnand %p199, %p200
      %p202 = pneg %p201
      // Predicated region
      $region9: #{inception_a_forward.1} parent=5 // pred_check
        _
      $region10: #{inception_a_forward.1} parent=5 // pred_check_branch
        %204 = sbr.rel (%p201) target = $region12
      $region11: #{inception_a_forward.1} parent=5 // pred_region
        %s205 = ssub.s32 %s13, 1
        // Predicated region
        $region13: #{inception_a_forward.1} parent=11 // pred_check
          %p206 = pneg %p60
        $region14: #{inception_a_forward.1} parent=11 // pred_check_branch
          %208 = sbr.rel (%p206) target = $region16
        $region15: #{inception_a_forward.1} parent=11 // pred_region
          _
        $region16: #{inception_a_forward.1} parent=11 // pred_fallthru
          _
        // Predicated region
        $region17: #{inception_a_forward.1} parent=11 // pred_check
          %p209 = pneg %p81
        $region18: #{inception_a_forward.1} parent=11 // pred_check_branch
          %211 = sbr.rel (%p209) target = $region20
        $region19: #{inception_a_forward.1} parent=11 // pred_region
          _
        $region20: #{inception_a_forward.1} parent=11 // pred_fallthru
          _
        // Predicated region
        $region21: #{inception_a_forward.1} parent=11 // pred_check
          %p212 = pneg %p102
        $region22: #{inception_a_forward.1} parent=11 // pred_check_branch
          %214 = sbr.rel (%p212) target = $region24
        $region23: #{inception_a_forward.1} parent=11 // pred_region
          _
        $region24: #{inception_a_forward.1} parent=11 // pred_fallthru
          _
        // Predicated region
        $region25: #{inception_a_forward.1} parent=11 // pred_check
          %p215 = pneg %p123
        $region26: #{inception_a_forward.1} parent=11 // pred_check_branch
          %217 = sbr.rel (%p215) target = $region28
        $region27: #{inception_a_forward.1} parent=11 // pred_region
          _
        $region28: #{inception_a_forward.1} parent=11 // pred_fallthru
          _
        // Predicated region
        $region29: #{inception_a_forward.1} parent=11 // pred_check
          %p218 = pneg %p144
        $region30: #{inception_a_forward.1} parent=11 // pred_check_branch
          %220 = sbr.rel (%p218) target = $region32
        $region31: #{inception_a_forward.1} parent=11 // pred_region
          _
        $region32: #{inception_a_forward.1} parent=11 // pred_fallthru
          _
        // Predicated region
        $region33: #{inception_a_forward.1} parent=11 // pred_check
          %p221 = pneg %p165
        $region34: #{inception_a_forward.1} parent=11 // pred_check_branch
          %223 = sbr.rel (%p221) target = $region36
        $region35: #{inception_a_forward.1} parent=11 // pred_region
          _
        $region36: #{inception_a_forward.1} parent=11 // pred_fallthru
          _
      $region12: #{inception_a_forward.1} parent=5 // pred_fallthru
        _
      %p224 = scmp.lt.s32.totalorder %s13, 2
      // Predicated region
      $region37: #{inception_a_forward.1} parent=5 // pred_check
        %p225 = pneg %p224
      $region38: #{inception_a_forward.1} parent=5 // pred_check_branch
        %227 = sbr.rel (%p225) target = $region40
      $region39: #{inception_a_forward.1} parent=5 // pred_region
        // Predicated region
        $region41: #{inception_a_forward.1} parent=39 // pred_check
          %p228 = pneg %p33
        $region42: #{inception_a_forward.1} parent=39 // pred_check_branch
          %230 = sbr.rel (%p228) target = $region44
        $region43: #{inception_a_forward.1} parent=39 // pred_region
          %s231 = smul.u32 2, %s13
          %p232 = scmp.lt.s32.totalorder %s231, 3
          %s233 = scalar_select %p232, %s231, 3
          %s234 = smul.addr %s233, 4
          %s235 = scalar_lea.vmem %s0, %s234
          %s236 = smul.u32 2, %s13
        $region44: #{inception_a_forward.1} parent=39 // pred_fallthru
          _
      $region40: #{inception_a_forward.1} parent=5 // pred_fallthru
        _
      %p237 = scmp.le.s32.totalorder 1, %s13
      %p238 = scmp.lt.s32.totalorder %s13, 3
      %p239 = pnand %p237, %p238
      %p240 = pneg %p239
      // Predicated region
      $region45: #{inception_a_forward.1} parent=5 // pred_check
        _
      $region46: #{inception_a_forward.1} parent=5 // pred_check_branch
        %242 = sbr.rel (%p239) target = $region48
      $region47: #{inception_a_forward.1} parent=5 // pred_region
        %s243 = ssub.s32 %s13, 1
        %s244 = smul.u32 2, %s18
        %p245 = scmp.lt.s32.totalorder %s244, 3
        %s246 = scalar_select %p245, %s244, 3
        %s247 = smul.addr %s246, 4
        %s248 = scalar_lea.vmem %s0, %s247
        %p249 = pneg %p39
        %p250 = pneg %p36
        %p251 = pneg %p60
        %p252 = pneg %p57
        %p253 = pneg %p81
        %p254 = pneg %p78
        %p255 = pneg %p102
        %p256 = pneg %p99
        %p257 = pneg %p123
        %p258 = pneg %p120
        %p259 = pneg %p144
        %p260 = pneg %p141
        %p261 = pneg %p165
        %p262 = pneg %p162
        %p263 = pneg %p191
        %p264 = pneg %p188
        %s265 = sand.u32 %s178, 1
        %s266 = sand.u32 %s178, 1
        %s267 = smul.addr %s266, 176
        %s268 = scalar_lea.vmem [#allocation6], %s267
        %s269 = smul.u32 2, %s18
        %p270 = scmp.lt.s32.totalorder %s269, 3
        %s271 = scalar_select %p270, %s269, 3
        %s272 = smul.addr %s271, 4
        %s273 = scalar_lea.vmem %s0, %s272
        %s274 = smul.u32 2, %s18
        %s275 = smul.u32 2, %s18
        %v277 = vld [vmem:[%s273] sm:$0xff]
        %279 = vst [vmem:[#allocation1] ss:$2 sm:$0xff] %v277
        %v280 = vld.sshfl [vmem:[#allocation1] sm:$0xff pattern:$0x75316420]
        %v281 = vld.sshfl [vmem:[#allocation1 + $0x8] sm:$0xff pattern:$0x75316420]
        %284 = vrot.lane.b32.xlu0 %v280, 17
        %v285 = vpop.permute.xlu0 %284
        %286 = vrot.lane.b32.xlu0 %v281, 17
        %v287 = vpop.permute.xlu0 %286
        %v288 = vlaneseq
        %v289 = vand.u32 %v288, 127
        %vm290 = vcmp.lt.s32.totalorder %v289, 17
        %v291 = vsel %vm290, %v285, %v287
        %v292 = vsel %vm290, %v287, %v285
        %v293 = vld [vmem:[%s1] ss:$8 sm:$0x3]
        %v295 = vperm.slane %v293, 0
        %v296 = vperm.slane %v293, 1
        %v299 = vmul.f32 %v292, %v295
        %v300 = vmul.f32 %v291, %v296
        %v301 = vpack.c.bf16 %v300, %v299
        %302 = vst [vmem:[#allocation2] sm:$0x33] %v301
        %303 = vst [vmem:[#allocation1] ss:$2 sm:$0xff] %v277
        %v304 = vld.sshfl [vmem:[#allocation1] sm:$0xff pattern:$0x75316420]
        %v305 = vld.sshfl [vmem:[#allocation1 + $0x8] sm:$0xff pattern:$0x75316420]
        %308 = vrot.lane.b32.xlu0 %v304, 16
        %v309 = vpop.permute.xlu0 %308
        %310 = vrot.lane.b32.xlu0 %v305, 16
        %v311 = vpop.permute.xlu0 %310
        %vm312 = vcmp.lt.s32.totalorder %v289, 16
        %v313 = vsel %vm312, %v309, %v311
        %v314 = vsel %vm312, %v311, %v309
        %s315 = scalar_lea.vmem %s1, 1
        %v316 = vld [vmem:[%s315] ss:$8 sm:$0x3]
        %v318 = vperm.slane %v316, 0
        %v319 = vperm.slane %v316, 1
        %v322 = vmul.f32 %v314, %v318
        %v323 = vmul.f32 %v313, %v319
        %v324 = vpack.c.bf16 %v323, %v322
        %v326 = vrot.slane %v324, 6
        %328 = vst [vmem:[#allocation2] sm:$0xcc] %v326
        %329 = vst [vmem:[#allocation1] ss:$2 sm:$0xff] %v277
        %v330 = vld.sshfl [vmem:[#allocation1] sm:$0xff pattern:$0x75316420]
        %v331 = vld.sshfl [vmem:[#allocation1 + $0x8] sm:$0xff pattern:$0x75316420]
        %334 = vrot.lane.b32.xlu0 %v330, 15
        %v335 = vpop.permute.xlu0 %334
        %336 = vrot.lane.b32.xlu0 %v331, 15
        %v337 = vpop.permute.xlu0 %336
        %vm338 = vcmp.lt.s32.totalorder %v289, 15
        %v339 = vsel %vm338, %v335, %v337
        %v340 = vsel %vm338, %v337, %v335
        %s341 = scalar_lea.vmem %s1, 2
        %v342 = vld [vmem:[%s341] ss:$8 sm:$0x3]
        %v344 = vperm.slane %v342, 0
        %v345 = vperm.slane %v342, 1
        %v348 = vmul.f32 %v340, %v344
        %v349 = vmul.f32 %v339, %v345
        %v350 = vpack.c.bf16 %v349, %v348
        %351 = vst [vmem:[#allocation2 + $0x8] sm:$0x33] %v350
        %352 = vst [vmem:[#allocation1] ss:$2 sm:$0xff] %v277
        %v353 = vld.sshfl [vmem:[#allocation1] sm:$0xff pattern:$0x75316420]
        %v354 = vld.sshfl [vmem:[#allocation1 + $0x8] sm:$0xff pattern:$0x75316420]
        %357 = vrot.lane.b32.xlu0 %v353, 1
        %v358 = vpop.permute.xlu0 %357
        %359 = vrot.lane.b32.xlu0 %v354, 1
        %v360 = vpop.permute.xlu0 %359
        %vm361 = vcmp.lt.s32.totalorder %v289, 1
        %v362 = vsel %vm361, %v358, %v360
        %v363 = vsel %vm361, %v360, %v358
        %s364 = scalar_lea.vmem %s1, 3
        %v365 = vld [vmem:[%s364] ss:$8 sm:$0x3]
        %v367 = vperm.slane %v365, 0
        %v368 = vperm.slane %v365, 1
        %v371 = vmul.f32 %v363, %v367
        %v372 = vmul.f32 %v362, %v368
        %v373 = vpack.c.bf16 %v372, %v371
        %v375 = vrot.slane %v373, 6
        %377 = vst [vmem:[#allocation2 + $0x8] sm:$0xcc] %v375
        %378 = vst [vmem:[#allocation1] ss:$2 sm:$0xff] %v277
        %v379 = vld.sshfl [vmem:[#allocation1] sm:$0xff pattern:$0x75316420]
        %v380 = vld.sshfl [vmem:[#allocation1 + $0x8] sm:$0xff pattern:$0x75316420]
        %v383 = vpack.c.bf16 %v380, %v379
        %384 = vst [vmem:[#allocation2 + $0x10] sm:$0x33] %v383
        %385 = vst [vmem:[#allocation1] ss:$2 sm:$0xff] %v277
        %v386 = vld.sshfl [vmem:[#allocation1] sm:$0xff pattern:$0x75316420]
        %v387 = vld.sshfl [vmem:[#allocation1 + $0x8] sm:$0xff pattern:$0x75316420]
        %390 = vrot.lane.b32.xlu0 %v386, 127
        %v391 = vpop.permute.xlu0 %390
        %392 = vrot.lane.b32.xlu0 %v387, 127
        %v393 = vpop.permute.xlu0 %392
        %vm394 = vcmp.lt.s32.totalorder %v289, 127
        %v395 = vsel %vm394, %v391, %v393
        %v396 = vsel %vm394, %v393, %v391
        %s397 = scalar_lea.vmem %s1, 5
        %v398 = vld [vmem:[%s397] ss:$8 sm:$0x3]
        %v400 = vperm.slane %v398, 0
        %v401 = vperm.slane %v398, 1
        %v404 = vmul.f32 %v395, %v400
        %v405 = vmul.f32 %v396, %v401
        %v406 = vpack.c.bf16 %v405, %v404
        %v408 = vrot.slane %v406, 6
        %410 = vst [vmem:[#allocation2 + $0x10] sm:$0xcc] %v408
        %411 = vst [vmem:[#allocation1] ss:$2 sm:$0xff] %v277
        %v412 = vld.sshfl [vmem:[#allocation1] sm:$0xff pattern:$0x75316420]
        %v413 = vld.sshfl [vmem:[#allocation1 + $0x8] sm:$0xff pattern:$0x75316420]
        %416 = vrot.lane.b32.xlu0 %v412, 113
        %v417 = vpop.permute.xlu0 %416
        %418 = vrot.lane.b32.xlu0 %v413, 113
        %v419 = vpop.permute.xlu0 %418
        %vm420 = vcmp.lt.s32.totalorder %v289, 113
        %v421 = vsel %vm420, %v417, %v419
        %v422 = vsel %vm420, %v419, %v417
        %s423 = scalar_lea.vmem %s1, 6
        %v424 = vld [vmem:[%s423] ss:$8 sm:$0x3]
        %v426 = vperm.slane %v424, 0
        %v427 = vperm.slane %v424, 1
        %v430 = vmul.f32 %v421, %v426
        %v431 = vmul.f32 %v422, %v427
        %v432 = vpack.c.bf16 %v431, %v430
        %433 = vst [vmem:[#allocation2 + $0x18] sm:$0x33] %v432
        %434 = vst [vmem:[#allocation1] ss:$2 sm:$0xff] %v277
        %v435 = vld.sshfl [vmem:[#allocation1] sm:$0xff pattern:$0x75316420]
        %v436 = vld.sshfl [vmem:[#allocation1 + $0x8] sm:$0xff pattern:$0x75316420]
        %439 = vrot.lane.b32.xlu0 %v435, 112
        %v440 = vpop.permute.xlu0 %439
        %441 = vrot.lane.b32.xlu0 %v436, 112
        %v442 = vpop.permute.xlu0 %441
        %vm443 = vcmp.lt.s32.totalorder %v289, 112
        %v444 = vsel %vm443, %v440, %v442
        %v445 = vsel %vm443, %v442, %v440
        %s446 = scalar_lea.vmem %s1, 7
        %v447 = vld [vmem:[%s446] ss:$8 sm:$0x3]
        %v449 = vperm.slane %v447, 0
        %v450 = vperm.slane %v447, 1
        %v453 = vmul.f32 %v444, %v449
        %v454 = vmul.f32 %v445, %v450
        %v455 = vpack.c.bf16 %v454, %v453
        %v457 = vrot.slane %v455, 6
        %459 = vst [vmem:[#allocation2 + $0x18] sm:$0xcc] %v457
        %460 = vst [vmem:[#allocation1] ss:$2 sm:$0xff] %v277
        %v461 = vld.sshfl [vmem:[#allocation1] sm:$0xff pattern:$0x75316420]
        %v462 = vld.sshfl [vmem:[#allocation1 + $0x8] sm:$0xff pattern:$0x75316420]
        %465 = vrot.lane.b32.xlu0 %v461, 111
        %v466 = vpop.permute.xlu0 %465
        %467 = vrot.lane.b32.xlu0 %v462, 111
        %v468 = vpop.permute.xlu0 %467
        %vm469 = vcmp.lt.s32.totalorder %v289, 111
        %v470 = vsel %vm469, %v466, %v468
        %v471 = vsel %vm469, %v468, %v466
        %s472 = scalar_lea.vmem %s1, 16
        %v473 = vld [vmem:[%s472] ss:$8 sm:$0x3]
        %v475 = vperm.slane %v473, 0
        %v476 = vperm.slane %v473, 1
        %v479 = vmul.f32 %v470, %v475
        %v480 = vmul.f32 %v471, %v476
        %v481 = vpack.c.bf16 %v480, %v479
        %482 = vst [vmem:[#allocation2 + $0x20] sm:$0x33] %v481
        %v483 = vld [vmem:[%s2] sm:$0xf]
        %v484 = vld [vmem:[%s2 + $0x4] sm:$0xf]
        %v485 = vld [vmem:[%s2 + $0x8] sm:$0xf]
        %v486 = vld [vmem:[%s2 + $0xc] sm:$0xf]
        %v487 = vld [vmem:[%s2 + $0x10] sm:$0xf]
        %v488 = vld [vmem:[%s2 + $0x14] sm:$0xf]
        %v489 = vld [vmem:[%s2 + $0x18] sm:$0xf]
        %v490 = vld [vmem:[%s2 + $0x1c] sm:$0xf]
        %v491 = vld [vmem:[%s2 + $0x20] sm:$0xf]
        %v492 = vld [vmem:[#allocation2] sm:$0xff]
        %v493 = vld [vmem:[#allocation2 + $0x8] sm:$0xff]
        %v494 = vld [vmem:[#allocation2 + $0x10] sm:$0xff]
        %v495 = vld [vmem:[#allocation2 + $0x18] sm:$0xff]
        %v496 = vld [vmem:[#allocation2 + $0x20] sm:$0x33]
        %v497 = vld [vmem:[%s6] sm:$0xff]
        %v498 = vld [vmem:[%s6 + $0x8] sm:$0xff]
        %v499 = vld [vmem:[%s6 + $0x10] sm:$0xff]
        %v500 = vld [vmem:[%s6 + $0x18] sm:$0xff]
        %v501 = vld [vmem:[%s6 + $0x20] sm:$0xff]
        %v502 = vld [vmem:[%s6 + $0x28] sm:$0xff]
        %v503 = vld [vmem:[%s6 + $0x30] sm:$0xff]
        %v504 = vld [vmem:[%s6 + $0x38] sm:$0xff]
        %v505 = vld [vmem:[%s6 + $0x40] sm:$0xff]
        %507 = vset.pattern.permute.xlu0 0
        %508 = vperm.xlu0 %507, %v497
        %v509 = vpop.permute.xlu0 %508
        %512 = vset.pattern.permute.xlu0 0
        %513 = vperm.xlu0 %512, %v498
        %v514 = vpop.permute.xlu0 %513
        %517 = vset.pattern.permute.xlu0 0
        %518 = vperm.xlu0 %517, %v499
        %v519 = vpop.permute.xlu0 %518
        %522 = vset.pattern.permute.xlu0 0
        %523 = vperm.xlu0 %522, %v500
        %v524 = vpop.permute.xlu0 %523
        %527 = vset.pattern.permute.xlu0 0
        %528 = vperm.xlu0 %527, %v501
        %v529 = vpop.permute.xlu0 %528
        %532 = vset.pattern.permute.xlu0 0
        %533 = vperm.xlu0 %532, %v502
        %v534 = vpop.permute.xlu0 %533
        %537 = vset.pattern.permute.xlu0 0
        %538 = vperm.xlu0 %537, %v503
        %v539 = vpop.permute.xlu0 %538
        %542 = vset.pattern.permute.xlu0 0
        %543 = vperm.xlu0 %542, %v504
        %v544 = vpop.permute.xlu0 %543
        %547 = vset.pattern.permute.xlu0 0
        %548 = vperm.xlu0 %547, %v505
        %v549 = vpop.permute.xlu0 %548
        %v560 = vunpack.c.l.b16 %v483
        %v561 = vunpack.c.l.b16 %v484
        %v562 = vunpack.c.l.b16 %v485
        %v563 = vunpack.c.l.b16 %v486
        %v564 = vunpack.c.l.b16 %v487
        %v565 = vunpack.c.l.b16 %v488
        %v566 = vunpack.c.l.b16 %v489
        %v567 = vunpack.c.l.b16 %v490
        %v568 = vunpack.c.l.b16 %v491
        %v569 = vpack.c.b16 %v561, %v560
        %v570 = vpack.c.b16 %v563, %v562
        %v571 = vpack.c.b16 %v565, %v564
        %v572 = vpack.c.b16 %v567, %v566
        %v573 = vpack.c.b16 %v568, %v568
        %v579 = vunpack.c.l.b16 %v492
        %v580 = vunpack.c.h.b16 %v492
        %v581 = vunpack.c.l.b16 %v493
        %v582 = vunpack.c.h.b16 %v493
        %v583 = vunpack.c.l.b16 %v494
        %v584 = vunpack.c.h.b16 %v494
        %v585 = vunpack.c.l.b16 %v495
        %v586 = vunpack.c.h.b16 %v495
        %v587 = vunpack.c.l.b16 %v496
        %v588 = vunpack.c.h.b16 %v496
        %v589 = vpack.c.b16 %v581, %v579
        %v590 = vpack.c.b16 %v582, %v580
        %v591 = vpack.c.b16 %v585, %v583
        %v592 = vpack.c.b16 %v586, %v584
        %v593 = vpack.c.b16 %v587, %v587
        %v594 = vpack.c.b16 %v588, %v588
        %vm599 = vcmask 293888
        %v601 = vsel %vm599, %v569, 0
        %v604 = vsel %vm599, %v570, 0
        %v607 = vsel %vm599, %v571, 0
        %v610 = vsel %vm599, %v572, 0
        %v613 = vsel %vm599, %v573, 0
        %vm615 = vcmask 1041408
        %v617 = vsel %vm615, %v593, 0
        %v620 = vsel %vm615, %v594, 0
        %622 = vmatpush.bf16.msra.mxu0 0
        %623 = vmatpush.bf16.msra.mxu0 0
        %624 = vmatpush.bf16.msra.mxu0 0
        %625 = vmatpush.bf16.msra.mxu0 0
        %626 = vmatpush.bf16.msra.mxu0 0
        %627 = vmatpush.bf16.msra.mxu0 %v617
        %628 = vmatpush.bf16.msra.mxu0 %v591
        %629 = vmatpush.bf16.msra.mxu0 %v589
        %630 = vmatmul.bf16.gmra.mxu0 %v601
        %v631 = vpop.f32.mrf.mxu0
        %v632 = vadd.f32 %v509, %v631
        %v633 = vpop.f32.mrf.mxu0
        %v634 = vadd.f32 %v514, %v633
        %635 = vmatmul.bf16.gmra.mxu0 %v604
        %v636 = vpop.f32.mrf.mxu0
        %v637 = vadd.f32 %v519, %v636
        %v638 = vpop.f32.mrf.mxu0
        %v639 = vadd.f32 %v524, %v638
        %640 = vmatmul.bf16.gmra.mxu0 %v607
        %v641 = vpop.f32.mrf.mxu0
        %v642 = vadd.f32 %v529, %v641
        %v643 = vpop.f32.mrf.mxu0
        %v644 = vadd.f32 %v534, %v643
        %645 = vmatmul.bf16.gmra.mxu0 %v610
        %v646 = vpop.f32.mrf.mxu0
        %v647 = vadd.f32 %v539, %v646
        %v648 = vpop.f32.mrf.mxu0
        %v649 = vadd.f32 %v544, %v648
        %650 = vmatmul.bf16.gmra.mxu0 %v613
        %v651 = vpop.f32.mrf.mxu0
        %v652 = vadd.f32 %v549, %v651
        %v653 = vpop.f32.mrf.mxu0
        %654 = vdwg.mxu0
        %655 = vmatpush.bf16.msra.mxu0 0
        %656 = vmatpush.bf16.msra.mxu0 0
        %657 = vmatpush.bf16.msra.mxu0 0
        %658 = vmatpush.bf16.msra.mxu0 0
        %659 = vmatpush.bf16.msra.mxu0 0
        %660 = vmatpush.bf16.msra.mxu0 %v620
        %661 = vmatpush.bf16.msra.mxu0 %v592
        %662 = vmatpush.bf16.msra.mxu0 %v590
        %663 = vmatmul.bf16.gmra.mxu0 %v601
        %v664 = vpop.f32.mrf.mxu0
        %v665 = vadd.f32 %v509, %v664
        %v666 = vpop.f32.mrf.mxu0
        %v667 = vadd.f32 %v514, %v666
        %668 = vmatmul.bf16.gmra.mxu0 %v604
        %v669 = vpop.f32.mrf.mxu0
        %v670 = vadd.f32 %v519, %v669
        %v671 = vpop.f32.mrf.mxu0
        %v672 = vadd.f32 %v524, %v671
        %673 = vmatmul.bf16.gmra.mxu0 %v607
        %v674 = vpop.f32.mrf.mxu0
        %v675 = vadd.f32 %v529, %v674
        %v676 = vpop.f32.mrf.mxu0
        %v677 = vadd.f32 %v534, %v676
        %678 = vmatmul.bf16.gmra.mxu0 %v610
        %v679 = vpop.f32.mrf.mxu0
        %v680 = vadd.f32 %v539, %v679
        %v681 = vpop.f32.mrf.mxu0
        %v682 = vadd.f32 %v544, %v681
        %683 = vmatmul.bf16.gmra.mxu0 %v613
        %v684 = vpop.f32.mrf.mxu0
        %v685 = vadd.f32 %v549, %v684
        %v686 = vpop.f32.mrf.mxu0
        %687 = vdwg.mxu0
        %688 = vst [vmem:[%s268] sm:$0xff] %v632
        %689 = vst [vmem:[%s268 + $0x8] sm:$0xff] %v665
        %690 = vst [vmem:[%s268 + $0x10] sm:$0xff] %v634
        %691 = vst [vmem:[%s268 + $0x18] sm:$0xff] %v667
        %692 = vst [vmem:[%s268 + $0x20] sm:$0xff] %v637
        %693 = vst [vmem:[%s268 + $0x28] sm:$0xff] %v670
        %694 = vst [vmem:[%s268 + $0x30] sm:$0xff] %v639
        %695 = vst [vmem:[%s268 + $0x38] sm:$0xff] %v672
        %696 = vst [vmem:[%s268 + $0x40] sm:$0xff] %v642
        %697 = vst [vmem:[%s268 + $0x48] sm:$0xff] %v675
        %698 = vrot.lane.b32.xlu0 %v644, 34
        %v699 = vpop.permute.xlu0 %698
        %700 = vrot.lane.b32.xlu0 %v647, 34
        %v701 = vpop.permute.xlu0 %700
        %702 = vrot.lane.b32.xlu0 %v677, 34
        %v703 = vpop.permute.xlu0 %702
        %704 = vrot.lane.b32.xlu0 %v680, 34
        %v705 = vpop.permute.xlu0 %704
        %vm706 = vcmp.lt.s32.totalorder %v289, 34
        %v707 = vsel %vm706, %v699, %v703
        %v708 = vsel %vm706, %v701, %v705
        %v709 = vsel %vm706, %v703, %v699
        %v710 = vsel %vm706, %v705, %v701
        %s711 = scalar_lea.vmem %s1, 17
        %v712 = vld [vmem:[%s711] ss:$8 sm:$0x3]
        %v714 = vperm.slane %v712, 0
        %v715 = vperm.slane %v712, 1
        %v718 = vmul.f32 %v709, %v714
        %v719 = vmul.f32 %v707, %v715
        %v720 = vmul.f32 %v710, %v714
        %v721 = vmul.f32 %v708, %v715
        %v722 = vpack.c.bf16 %v719, %v718
        %v723 = vpack.c.bf16 %v721, %v720
        %724 = vst [vmem:[#allocation3] sm:$0xff] %v722
        %725 = vst [vmem:[#allocation3 + $0x8] sm:$0xff] %v723
        %726 = vrot.lane.b32.xlu0 %v644, 33
        %v727 = vpop.permute.xlu0 %726
        %728 = vrot.lane.b32.xlu0 %v647, 33
        %v729 = vpop.permute.xlu0 %728
        %730 = vrot.lane.b32.xlu0 %v677, 33
        %v731 = vpop.permute.xlu0 %730
        %732 = vrot.lane.b32.xlu0 %v680, 33
        %v733 = vpop.permute.xlu0 %732
        %vm734 = vcmp.lt.s32.totalorder %v289, 33
        %v735 = vsel %vm734, %v727, %v731
        %v736 = vsel %vm734, %v729, %v733
        %v737 = vsel %vm734, %v731, %v727
        %v738 = vsel %vm734, %v733, %v729
        %s739 = scalar_lea.vmem %s1, 18
        %v740 = vld [vmem:[%s739] ss:$8 sm:$0x3]
        %v742 = vperm.slane %v740, 0
        %v743 = vperm.slane %v740, 1
        %v746 = vmul.f32 %v737, %v742
        %v747 = vmul.f32 %v735, %v743
        %v748 = vmul.f32 %v738, %v742
        %v749 = vmul.f32 %v736, %v743
        %v750 = vpack.c.bf16 %v747, %v746
        %v751 = vpack.c.bf16 %v749, %v748
        %752 = vst [vmem:[#allocation3 + $0x10] sm:$0xff] %v750
        %753 = vst [vmem:[#allocation3 + $0x18] sm:$0xff] %v751
        %754 = vrot.lane.b32.xlu0 %v644, 32
        %v755 = vpop.permute.xlu0 %754
        %756 = vrot.lane.b32.xlu0 %v647, 32
        %v757 = vpop.permute.xlu0 %756
        %758 = vrot.lane.b32.xlu0 %v677, 32
        %v759 = vpop.permute.xlu0 %758
        %760 = vrot.lane.b32.xlu0 %v680, 32
        %v761 = vpop.permute.xlu0 %760
        %vm762 = vcmp.lt.s32.totalorder %v289, 32
        %v763 = vsel %vm762, %v755, %v759
        %v764 = vsel %vm762, %v757, %v761
        %v765 = vsel %vm762, %v759, %v755
        %v766 = vsel %vm762, %v761, %v757
        %s767 = scalar_lea.vmem %s1, 19
        %v768 = vld [vmem:[%s767] ss:$8 sm:$0x3]
        %v770 = vperm.slane %v768, 0
        %v771 = vperm.slane %v768, 1
        %v774 = vmul.f32 %v765, %v770
        %v775 = vmul.f32 %v763, %v771
        %v776 = vmul.f32 %v766, %v770
        %v777 = vmul.f32 %v764, %v771
        %v778 = vpack.c.bf16 %v775, %v774
        %v779 = vpack.c.bf16 %v777, %v776
        %780 = vst [vmem:[#allocation3 + $0x20] sm:$0xff] %v778
        %781 = vst [vmem:[#allocation3 + $0x28] sm:$0xff] %v779
        %782 = vrot.lane.b32.xlu0 %v644, 31
        %v783 = vpop.permute.xlu0 %782
        %784 = vrot.lane.b32.xlu0 %v647, 31
        %v785 = vpop.permute.xlu0 %784
        %786 = vrot.lane.b32.xlu0 %v677, 31
        %v787 = vpop.permute.xlu0 %786
        %788 = vrot.lane.b32.xlu0 %v680, 31
        %v789 = vpop.permute.xlu0 %788
        %vm790 = vcmp.lt.s32.totalorder %v289, 31
        %v791 = vsel %vm790, %v783, %v787
        %v792 = vsel %vm790, %v785, %v789
        %v793 = vsel %vm790, %v787, %v783
        %v794 = vsel %vm790, %v789, %v785
        %s795 = scalar_lea.vmem %s1, 20
        %v796 = vld [vmem:[%s795] ss:$8 sm:$0x3]
        %v798 = vperm.slane %v796, 0
        %v799 = vperm.slane %v796, 1
        %v802 = vmul.f32 %v793, %v798
        %v803 = vmul.f32 %v791, %v799
        %v804 = vmul.f32 %v794, %v798
        %v805 = vmul.f32 %v792, %v799
        %v806 = vpack.c.bf16 %v803, %v802
        %v807 = vpack.c.bf16 %v805, %v804
        %808 = vst [vmem:[#allocation3 + $0x30] sm:$0xff] %v806
        %809 = vst [vmem:[#allocation3 + $0x38] sm:$0xff] %v807
        %810 = vrot.lane.b32.xlu0 %v644, 30
        %v811 = vpop.permute.xlu0 %810
        %812 = vrot.lane.b32.xlu0 %v647, 30
        %v813 = vpop.permute.xlu0 %812
        %814 = vrot.lane.b32.xlu0 %v677, 30
        %v815 = vpop.permute.xlu0 %814
        %816 = vrot.lane.b32.xlu0 %v680, 30
        %v817 = vpop.permute.xlu0 %816
        %vm818 = vcmp.lt.s32.totalorder %v289, 30
        %v819 = vsel %vm818, %v811, %v815
        %v820 = vsel %vm818, %v813, %v817
        %v821 = vsel %vm818, %v815, %v811
        %v822 = vsel %vm818, %v817, %v813
        %s823 = scalar_lea.vmem %s1, 21
        %v824 = vld [vmem:[%s823] ss:$8 sm:$0x3]
        %v826 = vperm.slane %v824, 0
        %v827 = vperm.slane %v824, 1
        %v830 = vmul.f32 %v821, %v826
        %v831 = vmul.f32 %v819, %v827
        %v832 = vmul.f32 %v822, %v826
        %v833 = vmul.f32 %v820, %v827
        %v834 = vpack.c.bf16 %v831, %v830
        %v835 = vpack.c.bf16 %v833, %v832
        %836 = vst [vmem:[#allocation3 + $0x40] sm:$0xff] %v834
        %837 = vst [vmem:[#allocation3 + $0x48] sm:$0xff] %v835
        %838 = vrot.lane.b32.xlu0 %v644, 18
        %v839 = vpop.permute.xlu0 %838
        %840 = vrot.lane.b32.xlu0 %v647, 18
        %v841 = vpop.permute.xlu0 %840
        %842 = vrot.lane.b32.xlu0 %v677, 18
        %v843 = vpop.permute.xlu0 %842
        %844 = vrot.lane.b32.xlu0 %v680, 18
        %v845 = vpop.permute.xlu0 %844
        %vm846 = vcmp.lt.s32.totalorder %v289, 18
        %v847 = vsel %vm846, %v839, %v843
        %v848 = vsel %vm846, %v841, %v845
        %v849 = vsel %vm846, %v843, %v839
        %v850 = vsel %vm846, %v845, %v841
        %s851 = scalar_lea.vmem %s1, 22
        %v852 = vld [vmem:[%s851] ss:$8 sm:$0x3]
        %v854 = vperm.slane %v852, 0
        %v855 = vperm.slane %v852, 1
        %v858 = vmul.f32 %v849, %v854
        %v859 = vmul.f32 %v847, %v855
        %v860 = vmul.f32 %v850, %v854
        %v861 = vmul.f32 %v848, %v855
        %v862 = vpack.c.bf16 %v859, %v858
        %v863 = vpack.c.bf16 %v861, %v860
        %864 = vst [vmem:[#allocation3 + $0x50] sm:$0xff] %v862
        %865 = vst [vmem:[#allocation3 + $0x58] sm:$0xff] %v863
        %866 = vrot.lane.b32.xlu0 %v644, 17
        %v867 = vpop.permute.xlu0 %866
        %868 = vrot.lane.b32.xlu0 %v647, 17
        %v869 = vpop.permute.xlu0 %868
        %870 = vrot.lane.b32.xlu0 %v677, 17
        %v871 = vpop.permute.xlu0 %870
        %872 = vrot.lane.b32.xlu0 %v680, 17
        %v873 = vpop.permute.xlu0 %872
        %v874 = vsel %vm290, %v867, %v871
        %v875 = vsel %vm290, %v869, %v873
        %v876 = vsel %vm290, %v871, %v867
        %v877 = vsel %vm290, %v873, %v869
        %s878 = scalar_lea.vmem %s1, 23
        %v879 = vld [vmem:[%s878] ss:$8 sm:$0x3]
        %v881 = vperm.slane %v879, 0
        %v882 = vperm.slane %v879, 1
        %v885 = vmul.f32 %v876, %v881
        %v886 = vmul.f32 %v874, %v882
        %v887 = vmul.f32 %v877, %v881
        %v888 = vmul.f32 %v875, %v882
        %v889 = vpack.c.bf16 %v886, %v885
        %v890 = vpack.c.bf16 %v888, %v887
        %891 = vst [vmem:[#allocation3 + $0x60] sm:$0xff] %v889
        %892 = vst [vmem:[#allocation3 + $0x68] sm:$0xff] %v890
        %893 = vrot.lane.b32.xlu0 %v644, 16
        %v894 = vpop.permute.xlu0 %893
        %895 = vrot.lane.b32.xlu0 %v647, 16
        %v896 = vpop.permute.xlu0 %895
        %897 = vrot.lane.b32.xlu0 %v677, 16
        %v898 = vpop.permute.xlu0 %897
        %899 = vrot.lane.b32.xlu0 %v680, 16
        %v900 = vpop.permute.xlu0 %899
        %v901 = vsel %vm312, %v894, %v898
        %v902 = vsel %vm312, %v896, %v900
        %v903 = vsel %vm312, %v898, %v894
        %v904 = vsel %vm312, %v900, %v896
        %s905 = scalar_lea.vmem %s1, 32
        %v906 = vld [vmem:[%s905] ss:$8 sm:$0x3]
        %v908 = vperm.slane %v906, 0
        %v909 = vperm.slane %v906, 1
        %v912 = vmul.f32 %v903, %v908
        %v913 = vmul.f32 %v901, %v909
        %v914 = vmul.f32 %v904, %v908
        %v915 = vmul.f32 %v902, %v909
        %v916 = vpack.c.bf16 %v913, %v912
        %v917 = vpack.c.bf16 %v915, %v914
        %918 = vst [vmem:[#allocation3 + $0x70] sm:$0xff] %v916
        %919 = vst [vmem:[#allocation3 + $0x78] sm:$0xff] %v917
        %920 = vrot.lane.b32.xlu0 %v644, 15
        %v921 = vpop.permute.xlu0 %920
        %922 = vrot.lane.b32.xlu0 %v647, 15
        %v923 = vpop.permute.xlu0 %922
        %924 = vrot.lane.b32.xlu0 %v677, 15
        %v925 = vpop.permute.xlu0 %924
        %926 = vrot.lane.b32.xlu0 %v680, 15
        %v927 = vpop.permute.xlu0 %926
        %v928 = vsel %vm338, %v921, %v925
        %v929 = vsel %vm338, %v923, %v927
        %v930 = vsel %vm338, %v925, %v921
        %v931 = vsel %vm338, %v927, %v923
        %s932 = scalar_lea.vmem %s1, 33
        %v933 = vld [vmem:[%s932] ss:$8 sm:$0x3]
        %v935 = vperm.slane %v933, 0
        %v936 = vperm.slane %v933, 1
        %v939 = vmul.f32 %v930, %v935
        %v940 = vmul.f32 %v928, %v936
        %v941 = vmul.f32 %v931, %v935
        %v942 = vmul.f32 %v929, %v936
        %v943 = vpack.c.bf16 %v940, %v939
        %v944 = vpack.c.bf16 %v942, %v941
        %945 = vst [vmem:[#allocation3 + $0x80] sm:$0xff] %v943
        %946 = vst [vmem:[#allocation3 + $0x88] sm:$0xff] %v944
        %947 = vrot.lane.b32.xlu0 %v644, 14
        %v948 = vpop.permute.xlu0 %947
        %949 = vrot.lane.b32.xlu0 %v647, 14
        %v950 = vpop.permute.xlu0 %949
        %951 = vrot.lane.b32.xlu0 %v677, 14
        %v952 = vpop.permute.xlu0 %951
        %953 = vrot.lane.b32.xlu0 %v680, 14
        %v954 = vpop.permute.xlu0 %953
        %vm955 = vcmp.lt.s32.totalorder %v289, 14
        %v956 = vsel %vm955, %v948, %v952
        %v957 = vsel %vm955, %v950, %v954
        %v958 = vsel %vm955, %v952, %v948
        %v959 = vsel %vm955, %v954, %v950
        %s960 = scalar_lea.vmem %s1, 34
        %v961 = vld [vmem:[%s960] ss:$8 sm:$0x3]
        %v963 = vperm.slane %v961, 0
        %v964 = vperm.slane %v961, 1
        %v967 = vmul.f32 %v958, %v963
        %v968 = vmul.f32 %v956, %v964
        %v969 = vmul.f32 %v959, %v963
        %v970 = vmul.f32 %v957, %v964
        %v971 = vpack.c.bf16 %v968, %v967
        %v972 = vpack.c.bf16 %v970, %v969
        %973 = vst [vmem:[#allocation3 + $0x90] sm:$0xff] %v971
        %974 = vst [vmem:[#allocation3 + $0x98] sm:$0xff] %v972
        %975 = vrot.lane.b32.xlu0 %v644, 2
        %v976 = vpop.permute.xlu0 %975
        %977 = vrot.lane.b32.xlu0 %v647, 2
        %v978 = vpop.permute.xlu0 %977
        %979 = vrot.lane.b32.xlu0 %v677, 2
        %v980 = vpop.permute.xlu0 %979
        %981 = vrot.lane.b32.xlu0 %v680, 2
        %v982 = vpop.permute.xlu0 %981
        %vm983 = vcmp.lt.s32.totalorder %v289, 2
        %v984 = vsel %vm983, %v976, %v980
        %v985 = vsel %vm983, %v978, %v982
        %v986 = vsel %vm983, %v980, %v976
        %v987 = vsel %vm983, %v982, %v978
        %s988 = scalar_lea.vmem %s1, 35
        %v989 = vld [vmem:[%s988] ss:$8 sm:$0x3]
        %v991 = vperm.slane %v989, 0
        %v992 = vperm.slane %v989, 1
        %v995 = vmul.f32 %v986, %v991
        %v996 = vmul.f32 %v984, %v992
        %v997 = vmul.f32 %v987, %v991
        %v998 = vmul.f32 %v985, %v992
        %v999 = vpack.c.bf16 %v996, %v995
        %v1000 = vpack.c.bf16 %v998, %v997
        %1001 = vst [vmem:[#allocation3 + $0xa0] sm:$0xff] %v999
        %1002 = vst [vmem:[#allocation3 + $0xa8] sm:$0xff] %v1000
        %1003 = vrot.lane.b32.xlu0 %v644, 1
        %v1004 = vpop.permute.xlu0 %1003
        %1005 = vrot.lane.b32.xlu0 %v647, 1
        %v1006 = vpop.permute.xlu0 %1005
        %1007 = vrot.lane.b32.xlu0 %v677, 1
        %v1008 = vpop.permute.xlu0 %1007
        %1009 = vrot.lane.b32.xlu0 %v680, 1
        %v1010 = vpop.permute.xlu0 %1009
        %v1011 = vsel %vm361, %v1004, %v1008
        %v1012 = vsel %vm361, %v1006, %v1010
        %v1013 = vsel %vm361, %v1008, %v1004
        %v1014 = vsel %vm361, %v1010, %v1006
        %s1015 = scalar_lea.vmem %s1, 36
        %v1016 = vld [vmem:[%s1015] ss:$8 sm:$0x3]
        %v1018 = vperm.slane %v1016, 0
        %v1019 = vperm.slane %v1016, 1
        %v1022 = vmul.f32 %v1013, %v1018
        %v1023 = vmul.f32 %v1011, %v1019
        %v1024 = vmul.f32 %v1014, %v1018
        %v1025 = vmul.f32 %v1012, %v1019
        %v1026 = vpack.c.bf16 %v1023, %v1022
        %v1027 = vpack.c.bf16 %v1025, %v1024
        %1028 = vst [vmem:[#allocation3 + $0xb0] sm:$0xff] %v1026
        %1029 = vst [vmem:[#allocation3 + $0xb8] sm:$0xff] %v1027
        %v1030 = vpack.c.bf16 %v677, %v644
        %v1031 = vpack.c.bf16 %v680, %v647
        %1032 = vst [vmem:[#allocation3 + $0xc0] sm:$0xff] %v1030
        %1033 = vst [vmem:[#allocation3 + $0xc8] sm:$0xff] %v1031
        %1034 = vrot.lane.b32.xlu0 %v644, 127
        %v1035 = vpop.permute.xlu0 %1034
        %1036 = vrot.lane.b32.xlu0 %v647, 127
        %v1037 = vpop.permute.xlu0 %1036
        %1038 = vrot.lane.b32.xlu0 %v677, 127
        %v1039 = vpop.permute.xlu0 %1038
        %1040 = vrot.lane.b32.xlu0 %v680, 127
        %v1041 = vpop.permute.xlu0 %1040
        %v1042 = vsel %vm394, %v1035, %v1039
        %v1043 = vsel %vm394, %v1037, %v1041
        %v1044 = vsel %vm394, %v1039, %v1035
        %v1045 = vsel %vm394, %v1041, %v1037
        %s1046 = scalar_lea.vmem %s1, 38
        %v1047 = vld [vmem:[%s1046] ss:$8 sm:$0x3]
        %v1049 = vperm.slane %v1047, 0
        %v1050 = vperm.slane %v1047, 1
        %v1053 = vmul.f32 %v1042, %v1049
        %v1054 = vmul.f32 %v1044, %v1050
        %v1055 = vmul.f32 %v1043, %v1049
        %v1056 = vmul.f32 %v1045, %v1050
        %v1057 = vpack.c.bf16 %v1054, %v1053
        %v1058 = vpack.c.bf16 %v1056, %v1055
        %1059 = vst [vmem:[#allocation3 + $0xd0] sm:$0xff] %v1057
        %1060 = vst [vmem:[#allocation3 + $0xd8] sm:$0xff] %v1058
        %1061 = vrot.lane.b32.xlu0 %v644, 126
        %v1062 = vpop.permute.xlu0 %1061
        %1063 = vrot.lane.b32.xlu0 %v647, 126
        %v1064 = vpop.permute.xlu0 %1063
        %1065 = vrot.lane.b32.xlu0 %v677, 126
        %v1066 = vpop.permute.xlu0 %1065
        %1067 = vrot.lane.b32.xlu0 %v680, 126
        %v1068 = vpop.permute.xlu0 %1067
        %vm1069 = vcmp.lt.s32.totalorder %v289, 126
        %v1070 = vsel %vm1069, %v1062, %v1066
        %v1071 = vsel %vm1069, %v1064, %v1068
        %v1072 = vsel %vm1069, %v1066, %v1062
        %v1073 = vsel %vm1069, %v1068, %v1064
        %s1074 = scalar_lea.vmem %s1, 39
        %v1075 = vld [vmem:[%s1074] ss:$8 sm:$0x3]
        %v1077 = vperm.slane %v1075, 0
        %v1078 = vperm.slane %v1075, 1
        %v1081 = vmul.f32 %v1070, %v1077
        %v1082 = vmul.f32 %v1072, %v1078
        %v1083 = vmul.f32 %v1071, %v1077
        %v1084 = vmul.f32 %v1073, %v1078
        %v1085 = vpack.c.bf16 %v1082, %v1081
        %v1086 = vpack.c.bf16 %v1084, %v1083
        %1087 = vst [vmem:[#allocation3 + $0xe0] sm:$0xff] %v1085
        %1088 = vst [vmem:[#allocation3 + $0xe8] sm:$0xff] %v1086
        %1089 = vrot.lane.b32.xlu0 %v644, 114
        %v1090 = vpop.permute.xlu0 %1089
        %1091 = vrot.lane.b32.xlu0 %v647, 114
        %v1092 = vpop.permute.xlu0 %1091
        %1093 = vrot.lane.b32.xlu0 %v677, 114
        %v1094 = vpop.permute.xlu0 %1093
        %1095 = vrot.lane.b32.xlu0 %v680, 114
        %v1096 = vpop.permute.xlu0 %1095
        %vm1097 = vcmp.lt.s32.totalorder %v289, 114
        %v1098 = vsel %vm1097, %v1090, %v1094
        %v1099 = vsel %vm1097, %v1092, %v1096
        %v1100 = vsel %vm1097, %v1094, %v1090
        %v1101 = vsel %vm1097, %v1096, %v1092
        %s1102 = scalar_lea.vmem %s1, 48
        %v1103 = vld [vmem:[%s1102] ss:$8 sm:$0x3]
        %v1105 = vperm.slane %v1103, 0
        %v1106 = vperm.slane %v1103, 1
        %v1109 = vmul.f32 %v1098, %v1105
        %v1110 = vmul.f32 %v1100, %v1106
        %v1111 = vmul.f32 %v1099, %v1105
        %v1112 = vmul.f32 %v1101, %v1106
        %v1113 = vpack.c.bf16 %v1110, %v1109
        %v1114 = vpack.c.bf16 %v1112, %v1111
        %1115 = vst [vmem:[#allocation3 + $0xf0] sm:$0xff] %v1113
        %1116 = vst [vmem:[#allocation3 + $0xf8] sm:$0xff] %v1114
        %1117 = vrot.lane.b32.xlu0 %v644, 113
        %v1118 = vpop.permute.xlu0 %1117
        %1119 = vrot.lane.b32.xlu0 %v647, 113
        %v1120 = vpop.permute.xlu0 %1119
        %1121 = vrot.lane.b32.xlu0 %v677, 113
        %v1122 = vpop.permute.xlu0 %1121
        %1123 = vrot.lane.b32.xlu0 %v680, 113
        %v1124 = vpop.permute.xlu0 %1123
        %v1125 = vsel %vm420, %v1118, %v1122
        %v1126 = vsel %vm420, %v1120, %v1124
        %v1127 = vsel %vm420, %v1122, %v1118
        %v1128 = vsel %vm420, %v1124, %v1120
        %s1129 = scalar_lea.vmem %s1, 49
        %v1130 = vld [vmem:[%s1129] ss:$8 sm:$0x3]
        %v1132 = vperm.slane %v1130, 0
        %v1133 = vperm.slane %v1130, 1
        %v1136 = vmul.f32 %v1125, %v1132
        %v1137 = vmul.f32 %v1127, %v1133
        %v1138 = vmul.f32 %v1126, %v1132
        %v1139 = vmul.f32 %v1128, %v1133
        %v1140 = vpack.c.bf16 %v1137, %v1136
        %v1141 = vpack.c.bf16 %v1139, %v1138
        %1142 = vst [vmem:[#allocation3 + $0x100] sm:$0xff] %v1140
        %1143 = vst [vmem:[#allocation3 + $0x108] sm:$0xff] %v1141
        %1144 = vrot.lane.b32.xlu0 %v644, 112
        %v1145 = vpop.permute.xlu0 %1144
        %1146 = vrot.lane.b32.xlu0 %v647, 112
        %v1147 = vpop.permute.xlu0 %1146
        %1148 = vrot.lane.b32.xlu0 %v677, 112
        %v1149 = vpop.permute.xlu0 %1148
        %1150 = vrot.lane.b32.xlu0 %v680, 112
        %v1151 = vpop.permute.xlu0 %1150
        %v1152 = vsel %vm443, %v1145, %v1149
        %v1153 = vsel %vm443, %v1147, %v1151
        %v1154 = vsel %vm443, %v1149, %v1145
        %v1155 = vsel %vm443, %v1151, %v1147
        %s1156 = scalar_lea.vmem %s1, 50
        %v1157 = vld [vmem:[%s1156] ss:$8 sm:$0x3]
        %v1159 = vperm.slane %v1157, 0
        %v1160 = vperm.slane %v1157, 1
        %v1163 = vmul.f32 %v1152, %v1159
        %v1164 = vmul.f32 %v1154, %v1160
        %v1165 = vmul.f32 %v1153, %v1159
        %v1166 = vmul.f32 %v1155, %v1160
        %v1167 = vpack.c.bf16 %v1164, %v1163
        %v1168 = vpack.c.bf16 %v1166, %v1165
        %1169 = vst [vmem:[#allocation3 + $0x110] sm:$0xff] %v1167
        %1170 = vst [vmem:[#allocation3 + $0x118] sm:$0xff] %v1168
        %1171 = vrot.lane.b32.xlu0 %v644, 111
        %v1172 = vpop.permute.xlu0 %1171
        %1173 = vrot.lane.b32.xlu0 %v647, 111
        %v1174 = vpop.permute.xlu0 %1173
        %1175 = vrot.lane.b32.xlu0 %v677, 111
        %v1176 = vpop.permute.xlu0 %1175
        %1177 = vrot.lane.b32.xlu0 %v680, 111
        %v1178 = vpop.permute.xlu0 %1177
        %v1179 = vsel %vm469, %v1172, %v1176
        %v1180 = vsel %vm469, %v1174, %v1178
        %v1181 = vsel %vm469, %v1176, %v1172
        %v1182 = vsel %vm469, %v1178, %v1174
        %s1183 = scalar_lea.vmem %s1, 51
        %v1184 = vld [vmem:[%s1183] ss:$8 sm:$0x3]
        %v1186 = vperm.slane %v1184, 0
        %v1187 = vperm.slane %v1184, 1
        %v1190 = vmul.f32 %v1179, %v1186
        %v1191 = vmul.f32 %v1181, %v1187
        %v1192 = vmul.f32 %v1180, %v1186
        %v1193 = vmul.f32 %v1182, %v1187
        %v1194 = vpack.c.bf16 %v1191, %v1190
        %v1195 = vpack.c.bf16 %v1193, %v1192
        %1196 = vst [vmem:[#allocation3 + $0x120] sm:$0xff] %v1194
        %1197 = vst [vmem:[#allocation3 + $0x128] sm:$0xff] %v1195
        %1198 = vrot.lane.b32.xlu0 %v644, 110
        %v1199 = vpop.permute.xlu0 %1198
        %1200 = vrot.lane.b32.xlu0 %v647, 110
        %v1201 = vpop.permute.xlu0 %1200
        %1202 = vrot.lane.b32.xlu0 %v677, 110
        %v1203 = vpop.permute.xlu0 %1202
        %1204 = vrot.lane.b32.xlu0 %v680, 110
        %v1205 = vpop.permute.xlu0 %1204
        %vm1206 = vcmp.lt.s32.totalorder %v289, 110
        %v1207 = vsel %vm1206, %v1199, %v1203
        %v1208 = vsel %vm1206, %v1201, %v1205
        %v1209 = vsel %vm1206, %v1203, %v1199
        %v1210 = vsel %vm1206, %v1205, %v1201
        %s1211 = scalar_lea.vmem %s1, 52
        %v1212 = vld [vmem:[%s1211] ss:$8 sm:$0x3]
        %v1214 = vperm.slane %v1212, 0
        %v1215 = vperm.slane %v1212, 1
        %v1218 = vmul.f32 %v1207, %v1214
        %v1219 = vmul.f32 %v1209, %v1215
        %v1220 = vmul.f32 %v1208, %v1214
        %v1221 = vmul.f32 %v1210, %v1215
        %v1222 = vpack.c.bf16 %v1219, %v1218
        %v1223 = vpack.c.bf16 %v1221, %v1220
        %1224 = vst [vmem:[#allocation3 + $0x130] sm:$0xff] %v1222
        %1225 = vst [vmem:[#allocation3 + $0x138] sm:$0xff] %v1223
        %1226 = vrot.lane.b32.xlu0 %v644, 98
        %v1227 = vpop.permute.xlu0 %1226
        %1228 = vrot.lane.b32.xlu0 %v647, 98
        %v1229 = vpop.permute.xlu0 %1228
        %1230 = vrot.lane.b32.xlu0 %v677, 98
        %v1231 = vpop.permute.xlu0 %1230
        %1232 = vrot.lane.b32.xlu0 %v680, 98
        %v1233 = vpop.permute.xlu0 %1232
        %vm1234 = vcmp.lt.s32.totalorder %v289, 98
        %v1235 = vsel %vm1234, %v1227, %v1231
        %v1236 = vsel %vm1234, %v1229, %v1233
        %v1237 = vsel %vm1234, %v1231, %v1227
        %v1238 = vsel %vm1234, %v1233, %v1229
        %s1239 = scalar_lea.vmem %s1, 53
        %v1240 = vld [vmem:[%s1239] ss:$8 sm:$0x3]
        %v1242 = vperm.slane %v1240, 0
        %v1243 = vperm.slane %v1240, 1
        %v1246 = vmul.f32 %v1235, %v1242
        %v1247 = vmul.f32 %v1237, %v1243
        %v1248 = vmul.f32 %v1236, %v1242
        %v1249 = vmul.f32 %v1238, %v1243
        %v1250 = vpack.c.bf16 %v1247, %v1246
        %v1251 = vpack.c.bf16 %v1249, %v1248
        %1252 = vst [vmem:[#allocation3 + $0x140] sm:$0xff] %v1250
        %1253 = vst [vmem:[#allocation3 + $0x148] sm:$0xff] %v1251
        %1254 = vrot.lane.b32.xlu0 %v644, 97
        %v1255 = vpop.permute.xlu0 %1254
        %1256 = vrot.lane.b32.xlu0 %v647, 97
        %v1257 = vpop.permute.xlu0 %1256
        %1258 = vrot.lane.b32.xlu0 %v677, 97
        %v1259 = vpop.permute.xlu0 %1258
        %1260 = vrot.lane.b32.xlu0 %v680, 97
        %v1261 = vpop.permute.xlu0 %1260
        %vm1262 = vcmp.lt.s32.totalorder %v289, 97
        %v1263 = vsel %vm1262, %v1255, %v1259
        %v1264 = vsel %vm1262, %v1257, %v1261
        %v1265 = vsel %vm1262, %v1259, %v1255
        %v1266 = vsel %vm1262, %v1261, %v1257
        %s1267 = scalar_lea.vmem %s1, 54
        %v1268 = vld [vmem:[%s1267] ss:$8 sm:$0x3]
        %v1270 = vperm.slane %v1268, 0
        %v1271 = vperm.slane %v1268, 1
        %v1274 = vmul.f32 %v1263, %v1270
        %v1275 = vmul.f32 %v1265, %v1271
        %v1276 = vmul.f32 %v1264, %v1270
        %v1277 = vmul.f32 %v1266, %v1271
        %v1278 = vpack.c.bf16 %v1275, %v1274
        %v1279 = vpack.c.bf16 %v1277, %v1276
        %1280 = vst [vmem:[#allocation3 + $0x150] sm:$0xff] %v1278
        %1281 = vst [vmem:[#allocation3 + $0x158] sm:$0xff] %v1279
        %1282 = vrot.lane.b32.xlu0 %v644, 96
        %v1283 = vpop.permute.xlu0 %1282
        %1284 = vrot.lane.b32.xlu0 %v647, 96
        %v1285 = vpop.permute.xlu0 %1284
        %1286 = vrot.lane.b32.xlu0 %v677, 96
        %v1287 = vpop.permute.xlu0 %1286
        %1288 = vrot.lane.b32.xlu0 %v680, 96
        %v1289 = vpop.permute.xlu0 %1288
        %vm1290 = vcmp.lt.s32.totalorder %v289, 96
        %v1291 = vsel %vm1290, %v1283, %v1287
        %v1292 = vsel %vm1290, %v1285, %v1289
        %v1293 = vsel %vm1290, %v1287, %v1283
        %v1294 = vsel %vm1290, %v1289, %v1285
        %s1295 = scalar_lea.vmem %s1, 55
        %v1296 = vld [vmem:[%s1295] ss:$8 sm:$0x3]
        %v1298 = vperm.slane %v1296, 0
        %v1299 = vperm.slane %v1296, 1
        %v1302 = vmul.f32 %v1291, %v1298
        %v1303 = vmul.f32 %v1293, %v1299
        %v1304 = vmul.f32 %v1292, %v1298
        %v1305 = vmul.f32 %v1294, %v1299
        %v1306 = vpack.c.bf16 %v1303, %v1302
        %v1307 = vpack.c.bf16 %v1305, %v1304
        %1308 = vst [vmem:[#allocation3 + $0x160] sm:$0xff] %v1306
        %1309 = vst [vmem:[#allocation3 + $0x168] sm:$0xff] %v1307
        %1310 = vrot.lane.b32.xlu0 %v644, 95
        %v1311 = vpop.permute.xlu0 %1310
        %1312 = vrot.lane.b32.xlu0 %v647, 95
        %v1313 = vpop.permute.xlu0 %1312
        %1314 = vrot.lane.b32.xlu0 %v677, 95
        %v1315 = vpop.permute.xlu0 %1314
        %1316 = vrot.lane.b32.xlu0 %v680, 95
        %v1317 = vpop.permute.xlu0 %1316
        %vm1318 = vcmp.lt.s32.totalorder %v289, 95
        %v1319 = vsel %vm1318, %v1311, %v1315
        %v1320 = vsel %vm1318, %v1313, %v1317
        %v1321 = vsel %vm1318, %v1315, %v1311
        %v1322 = vsel %vm1318, %v1317, %v1313
        %s1323 = scalar_lea.vmem %s1, 64
        %v1324 = vld [vmem:[%s1323] ss:$8 sm:$0x3]
        %v1326 = vperm.slane %v1324, 0
        %v1327 = vperm.slane %v1324, 1
        %v1330 = vmul.f32 %v1319, %v1326
        %v1331 = vmul.f32 %v1321, %v1327
        %v1332 = vmul.f32 %v1320, %v1326
        %v1333 = vmul.f32 %v1322, %v1327
        %v1334 = vpack.c.bf16 %v1331, %v1330
        %v1335 = vpack.c.bf16 %v1333, %v1332
        %1336 = vst [vmem:[#allocation3 + $0x170] sm:$0xff] %v1334
        %1337 = vst [vmem:[#allocation3 + $0x178] sm:$0xff] %v1335
        %1338 = vrot.lane.b32.xlu0 %v644, 94
        %v1339 = vpop.permute.xlu0 %1338
        %1340 = vrot.lane.b32.xlu0 %v647, 94
        %v1341 = vpop.permute.xlu0 %1340
        %1342 = vrot.lane.b32.xlu0 %v677, 94
        %v1343 = vpop.permute.xlu0 %1342
        %1344 = vrot.lane.b32.xlu0 %v680, 94
        %v1345 = vpop.permute.xlu0 %1344
        %vm1346 = vcmp.lt.s32.totalorder %v289, 94
        %v1347 = vsel %vm1346, %v1339, %v1343
        %v1348 = vsel %vm1346, %v1341, %v1345
        %v1349 = vsel %vm1346, %v1343, %v1339
        %v1350 = vsel %vm1346, %v1345, %v1341
        %s1351 = scalar_lea.vmem %s1, 65
        %v1352 = vld [vmem:[%s1351] ss:$8 sm:$0x3]
        %v1354 = vperm.slane %v1352, 0
        %v1355 = vperm.slane %v1352, 1
        %v1358 = vmul.f32 %v1347, %v1354
        %v1359 = vmul.f32 %v1349, %v1355
        %v1360 = vmul.f32 %v1348, %v1354
        %v1361 = vmul.f32 %v1350, %v1355
        %v1362 = vpack.c.bf16 %v1359, %v1358
        %v1363 = vpack.c.bf16 %v1361, %v1360
        %1364 = vst [vmem:[#allocation3 + $0x180] sm:$0xff] %v1362
        %1365 = vst [vmem:[#allocation3 + $0x188] sm:$0xff] %v1363
        %v1366 = vld [vmem:[%s3] sm:$0xff]
        %v1367 = vld [vmem:[%s3 + $0x8] sm:$0xff]
        %v1368 = vld [vmem:[%s3 + $0x10] sm:$0xff]
        %v1369 = vld [vmem:[%s3 + $0x18] sm:$0xff]
        %v1370 = vld [vmem:[%s3 + $0x20] sm:$0xff]
        %v1371 = vld [vmem:[%s3 + $0x28] sm:$0xff]
        %v1372 = vld [vmem:[#allocation3] sm:$0xff]
        %v1373 = vld [vmem:[#allocation3 + $0x8] sm:$0xff]
        %v1374 = vld [vmem:[#allocation3 + $0x10] sm:$0xff]
        %v1375 = vld [vmem:[#allocation3 + $0x18] sm:$0xff]
        %v1376 = vld [vmem:[#allocation3 + $0x20] sm:$0xff]
        %v1377 = vld [vmem:[#allocation3 + $0x28] sm:$0xff]
        %v1378 = vld [vmem:[#allocation3 + $0x30] sm:$0xff]
        %v1379 = vld [vmem:[#allocation3 + $0x38] sm:$0xff]
        %v1380 = vld [vmem:[#allocation3 + $0x40] sm:$0xff]
        %v1381 = vld [vmem:[#allocation3 + $0x48] sm:$0xff]
        %v1382 = vld [vmem:[#allocation3 + $0x50] sm:$0xff]
        %v1383 = vld [vmem:[#allocation3 + $0x58] sm:$0xff]
        %v1384 = vld [vmem:[#allocation3 + $0x60] sm:$0xff]
        %v1385 = vld [vmem:[#allocation3 + $0x68] sm:$0xff]
        %v1386 = vld [vmem:[#allocation3 + $0x70] sm:$0xff]
        %v1387 = vld [vmem:[#allocation3 + $0x78] sm:$0xff]
        %v1388 = vld [vmem:[#allocation3 + $0x80] sm:$0xff]
        %v1389 = vld [vmem:[#allocation3 + $0x88] sm:$0xff]
        %v1390 = vld [vmem:[#allocation3 + $0x90] sm:$0xff]
        %v1391 = vld [vmem:[#allocation3 + $0x98] sm:$0xff]
        %v1392 = vld [vmem:[#allocation3 + $0xa0] sm:$0xff]
        %v1393 = vld [vmem:[#allocation3 + $0xa8] sm:$0xff]
        %v1394 = vld [vmem:[#allocation3 + $0xb0] sm:$0xff]
        %v1395 = vld [vmem:[#allocation3 + $0xb8] sm:$0xff]
        %v1396 = vld [vmem:[#allocation3 + $0xc0] sm:$0xff]
        %v1397 = vld [vmem:[#allocation3 + $0xc8] sm:$0xff]
        %v1398 = vld [vmem:[#allocation3 + $0xd0] sm:$0xff]
        %v1399 = vld [vmem:[#allocation3 + $0xd8] sm:$0xff]
        %v1400 = vld [vmem:[#allocation3 + $0xe0] sm:$0xff]
        %v1401 = vld [vmem:[#allocation3 + $0xe8] sm:$0xff]
        %v1402 = vld [vmem:[#allocation3 + $0xf0] sm:$0xff]
        %v1403 = vld [vmem:[#allocation3 + $0xf8] sm:$0xff]
        %v1404 = vld [vmem:[#allocation3 + $0x100] sm:$0xff]
        %v1405 = vld [vmem:[#allocation3 + $0x108] sm:$0xff]
        %v1406 = vld [vmem:[#allocation3 + $0x110] sm:$0xff]
        %v1407 = vld [vmem:[#allocation3 + $0x118] sm:$0xff]
        %v1408 = vld [vmem:[#allocation3 + $0x120] sm:$0xff]
        %v1409 = vld [vmem:[#allocation3 + $0x128] sm:$0xff]
        %v1410 = vld [vmem:[#allocation3 + $0x130] sm:$0xff]
        %v1411 = vld [vmem:[#allocation3 + $0x138] sm:$0xff]
        %v1412 = vld [vmem:[#allocation3 + $0x140] sm:$0xff]
        %v1413 = vld [vmem:[#allocation3 + $0x148] sm:$0xff]
        %v1414 = vld [vmem:[#allocation3 + $0x150] sm:$0xff]
        %v1415 = vld [vmem:[#allocation3 + $0x158] sm:$0xff]
        %v1416 = vld [vmem:[#allocation3 + $0x160] sm:$0xff]
        %v1417 = vld [vmem:[#allocation3 + $0x168] sm:$0xff]
        %v1418 = vld [vmem:[#allocation3 + $0x170] sm:$0xff]
        %v1419 = vld [vmem:[#allocation3 + $0x178] sm:$0xff]
        %v1420 = vld [vmem:[#allocation3 + $0x180] sm:$0xff]
        %v1421 = vld [vmem:[#allocation3 + $0x188] sm:$0xff]
        %v1422 = vld [vmem:[%s6 + $0x48] sm:$0xff]
        %v1423 = vld [vmem:[%s6 + $0x50] sm:$0xff]
        %v1424 = vld [vmem:[%s6 + $0x58] sm:$0xff]
        %1426 = vset.pattern.permute.xlu0 0
        %1427 = vperm.xlu0 %1426, %v1422
        %v1428 = vpop.permute.xlu0 %1427
        %1431 = vset.pattern.permute.xlu0 0
        %1432 = vperm.xlu0 %1431, %v1423
        %v1433 = vpop.permute.xlu0 %1432
        %1436 = vset.pattern.permute.xlu0 0
        %1437 = vperm.xlu0 %1436, %v1424
        %v1438 = vpop.permute.xlu0 %1437
        %v1446 = vunpack.c.l.b16 %v1366
        %v1447 = vunpack.c.h.b16 %v1366
        %v1448 = vunpack.c.l.b16 %v1367
        %v1449 = vunpack.c.h.b16 %v1367
        %v1450 = vunpack.c.l.b16 %v1368
        %v1451 = vunpack.c.h.b16 %v1368
        %v1452 = vunpack.c.l.b16 %v1369
        %v1453 = vunpack.c.h.b16 %v1369
        %v1454 = vunpack.c.l.b16 %v1370
        %v1455 = vunpack.c.h.b16 %v1370
        %v1456 = vunpack.c.l.b16 %v1371
        %v1457 = vunpack.c.h.b16 %v1371
        %v1458 = vpack.c.b16 %v1450, %v1446
        %v1459 = vpack.c.b16 %v1451, %v1447
        %v1460 = vpack.c.b16 %v1452, %v1448
        %v1461 = vpack.c.b16 %v1453, %v1449
        %v1462 = vpack.c.b16 %v1454, %v1454
        %v1463 = vpack.c.b16 %v1455, %v1455
        %v1464 = vpack.c.b16 %v1456, %v1456
        %v1465 = vpack.c.b16 %v1457, %v1457
        %v1522 = vunpack.c.l.b16 %v1372
        %v1523 = vunpack.c.h.b16 %v1372
        %v1524 = vunpack.c.l.b16 %v1373
        %v1525 = vunpack.c.h.b16 %v1373
        %v1526 = vunpack.c.l.b16 %v1374
        %v1527 = vunpack.c.h.b16 %v1374
        %v1528 = vunpack.c.l.b16 %v1375
        %v1529 = vunpack.c.h.b16 %v1375
        %v1530 = vunpack.c.l.b16 %v1376
        %v1531 = vunpack.c.h.b16 %v1376
        %v1532 = vunpack.c.l.b16 %v1377
        %v1533 = vunpack.c.h.b16 %v1377
        %v1534 = vunpack.c.l.b16 %v1378
        %v1535 = vunpack.c.h.b16 %v1378
        %v1536 = vunpack.c.l.b16 %v1379
        %v1537 = vunpack.c.h.b16 %v1379
        %v1538 = vunpack.c.l.b16 %v1380
        %v1539 = vunpack.c.h.b16 %v1380
        %v1540 = vunpack.c.l.b16 %v1381
        %v1541 = vunpack.c.h.b16 %v1381
        %v1542 = vunpack.c.l.b16 %v1382
        %v1543 = vunpack.c.h.b16 %v1382
        %v1544 = vunpack.c.l.b16 %v1383
        %v1545 = vunpack.c.h.b16 %v1383
        %v1546 = vunpack.c.l.b16 %v1384
        %v1547 = vunpack.c.h.b16 %v1384
        %v1548 = vunpack.c.l.b16 %v1385
        %v1549 = vunpack.c.h.b16 %v1385
        %v1550 = vunpack.c.l.b16 %v1386
        %v1551 = vunpack.c.h.b16 %v1386
        %v1552 = vunpack.c.l.b16 %v1387
        %v1553 = vunpack.c.h.b16 %v1387
        %v1554 = vunpack.c.l.b16 %v1388
        %v1555 = vunpack.c.h.b16 %v1388
        %v1556 = vunpack.c.l.b16 %v1389
        %v1557 = vunpack.c.h.b16 %v1389
        %v1558 = vunpack.c.l.b16 %v1390
        %v1559 = vunpack.c.h.b16 %v1390
        %v1560 = vunpack.c.l.b16 %v1391
        %v1561 = vunpack.c.h.b16 %v1391
        %v1562 = vunpack.c.l.b16 %v1392
        %v1563 = vunpack.c.h.b16 %v1392
        %v1564 = vunpack.c.l.b16 %v1393
        %v1565 = vunpack.c.h.b16 %v1393
        %v1566 = vunpack.c.l.b16 %v1394
        %v1567 = vunpack.c.h.b16 %v1394
        %v1568 = vunpack.c.l.b16 %v1395
        %v1569 = vunpack.c.h.b16 %v1395
        %v1570 = vunpack.c.l.b16 %v1396
        %v1571 = vunpack.c.h.b16 %v1396
        %v1572 = vunpack.c.l.b16 %v1397
        %v1573 = vunpack.c.h.b16 %v1397
        %v1574 = vunpack.c.l.b16 %v1398
        %v1575 = vunpack.c.h.b16 %v1398
        %v1576 = vunpack.c.l.b16 %v1399
        %v1577 = vunpack.c.h.b16 %v1399
        %v1578 = vunpack.c.l.b16 %v1400
        %v1579 = vunpack.c.h.b16 %v1400
        %v1580 = vunpack.c.l.b16 %v1401
        %v1581 = vunpack.c.h.b16 %v1401
        %v1582 = vunpack.c.l.b16 %v1402
        %v1583 = vunpack.c.h.b16 %v1402
        %v1584 = vunpack.c.l.b16 %v1403
        %v1585 = vunpack.c.h.b16 %v1403
        %v1586 = vunpack.c.l.b16 %v1404
        %v1587 = vunpack.c.h.b16 %v1404
        %v1588 = vunpack.c.l.b16 %v1405
        %v1589 = vunpack.c.h.b16 %v1405
        %v1590 = vunpack.c.l.b16 %v1406
        %v1591 = vunpack.c.h.b16 %v1406
        %v1592 = vunpack.c.l.b16 %v1407
        %v1593 = vunpack.c.h.b16 %v1407
        %v1594 = vunpack.c.l.b16 %v1408
        %v1595 = vunpack.c.h.b16 %v1408
        %v1596 = vunpack.c.l.b16 %v1409
        %v1597 = vunpack.c.h.b16 %v1409
        %v1598 = vunpack.c.l.b16 %v1410
        %v1599 = vunpack.c.h.b16 %v1410
        %v1600 = vunpack.c.l.b16 %v1411
        %v1601 = vunpack.c.h.b16 %v1411
        %v1602 = vunpack.c.l.b16 %v1412
        %v1603 = vunpack.c.h.b16 %v1412
        %v1604 = vunpack.c.l.b16 %v1413
        %v1605 = vunpack.c.h.b16 %v1413
        %v1606 = vunpack.c.l.b16 %v1414
        %v1607 = vunpack.c.h.b16 %v1414
        %v1608 = vunpack.c.l.b16 %v1415
        %v1609 = vunpack.c.h.b16 %v1415
        %v1610 = vunpack.c.l.b16 %v1416
        %v1611 = vunpack.c.h.b16 %v1416
        %v1612 = vunpack.c.l.b16 %v1417
        %v1613 = vunpack.c.h.b16 %v1417
        %v1614 = vunpack.c.l.b16 %v1418
        %v1615 = vunpack.c.h.b16 %v1418
        %v1616 = vunpack.c.l.b16 %v1419
        %v1617 = vunpack.c.h.b16 %v1419
        %v1618 = vunpack.c.l.b16 %v1420
        %v1619 = vunpack.c.h.b16 %v1420
        %v1620 = vunpack.c.l.b16 %v1421
        %v1621 = vunpack.c.h.b16 %v1421
        %v1622 = vpack.c.b16 %v1524, %v1522
        %v1623 = vpack.c.b16 %v1525, %v1523
        %v1624 = vpack.c.b16 %v1528, %v1526
        %v1625 = vpack.c.b16 %v1529, %v1527
        %v1626 = vpack.c.b16 %v1532, %v1530
        %v1627 = vpack.c.b16 %v1533, %v1531
        %v1628 = vpack.c.b16 %v1536, %v1534
        %v1629 = vpack.c.b16 %v1537, %v1535
        %v1630 = vpack.c.b16 %v1540, %v1538
        %v1631 = vpack.c.b16 %v1541, %v1539
        %v1632 = vpack.c.b16 %v1544, %v1542
        %v1633 = vpack.c.b16 %v1545, %v1543
        %v1634 = vpack.c.b16 %v1548, %v1546
        %v1635 = vpack.c.b16 %v1549, %v1547
        %v1636 = vpack.c.b16 %v1552, %v1550
        %v1637 = vpack.c.b16 %v1553, %v1551
        %v1638 = vpack.c.b16 %v1556, %v1554
        %v1639 = vpack.c.b16 %v1557, %v1555
        %v1640 = vpack.c.b16 %v1560, %v1558
        %v1641 = vpack.c.b16 %v1561, %v1559
        %v1642 = vpack.c.b16 %v1564, %v1562
        %v1643 = vpack.c.b16 %v1565, %v1563
        %v1644 = vpack.c.b16 %v1568, %v1566
        %v1645 = vpack.c.b16 %v1569, %v1567
        %v1646 = vpack.c.b16 %v1572, %v1570
        %v1647 = vpack.c.b16 %v1573, %v1571
        %v1648 = vpack.c.b16 %v1576, %v1574
        %v1649 = vpack.c.b16 %v1577, %v1575
        %v1650 = vpack.c.b16 %v1580, %v1578
        %v1651 = vpack.c.b16 %v1581, %v1579
        %v1652 = vpack.c.b16 %v1584, %v1582
        %v1653 = vpack.c.b16 %v1585, %v1583
        %v1654 = vpack.c.b16 %v1588, %v1586
        %v1655 = vpack.c.b16 %v1589, %v1587
        %v1656 = vpack.c.b16 %v1592, %v1590
        %v1657 = vpack.c.b16 %v1593, %v1591
        %v1658 = vpack.c.b16 %v1596, %v1594
        %v1659 = vpack.c.b16 %v1597, %v1595
        %v1660 = vpack.c.b16 %v1600, %v1598
        %v1661 = vpack.c.b16 %v1601, %v1599
        %v1662 = vpack.c.b16 %v1604, %v1602
        %v1663 = vpack.c.b16 %v1605, %v1603
        %v1664 = vpack.c.b16 %v1608, %v1606
        %v1665 = vpack.c.b16 %v1609, %v1607
        %v1666 = vpack.c.b16 %v1612, %v1610
        %v1667 = vpack.c.b16 %v1613, %v1611
        %v1668 = vpack.c.b16 %v1616, %v1614
        %v1669 = vpack.c.b16 %v1617, %v1615
        %v1670 = vpack.c.b16 %v1620, %v1618
        %v1671 = vpack.c.b16 %v1621, %v1619
        %vm1722 = vcmask 130048
        %v1724 = vsel %vm1722, %v1461, 0
        %v1727 = vsel %vm1722, %v1465, 0
        %1729 = vmatpush.bf16.msra.mxu0 %v1636
        %1730 = vmatpush.bf16.msra.mxu0 %v1634
        %1731 = vmatpush.bf16.msra.mxu0 %v1632
        %1732 = vmatpush.bf16.msra.mxu0 %v1630
        %1733 = vmatpush.bf16.msra.mxu0 %v1628
        %1734 = vmatpush.bf16.msra.mxu0 %v1626
        %1735 = vmatpush.bf16.msra.mxu0 %v1624
        %1736 = vmatpush.bf16.msra.mxu0 %v1622
        %1737 = vmatmul.bf16.gmra.mxu0 %v1458
        %v1738 = vpop.f32.mrf.mxu0
        %v1739 = vadd.f32 %v1428, %v1738
        %v1740 = vpop.f32.mrf.mxu0
        %v1741 = vadd.f32 %v1433, %v1740
        %1742 = vmatmul.bf16.gmra.mxu0 %v1462
        %v1743 = vpop.f32.mrf.mxu0
        %v1744 = vadd.f32 %v1438, %v1743
        %v1745 = vpop.f32.mrf.mxu0
        %1746 = vdwg.mxu0
        %1747 = vmatpush.bf16.msra.mxu0 %v1652
        %1748 = vmatpush.bf16.msra.mxu0 %v1650
        %1749 = vmatpush.bf16.msra.mxu0 %v1648
        %1750 = vmatpush.bf16.msra.mxu0 %v1646
        %1751 = vmatpush.bf16.msra.mxu0 %v1644
        %1752 = vmatpush.bf16.msra.mxu0 %v1642
        %1753 = vmatpush.bf16.msra.mxu0 %v1640
        %1754 = vmatpush.bf16.msra.mxu0 %v1638
        %1755 = vmatmul.bf16.gmra.mxu0 %v1459
        %v1756 = vpop.f32.mrf.mxu0
        %v1757 = vadd.f32 %v1739, %v1756
        %v1758 = vpop.f32.mrf.mxu0
        %v1759 = vadd.f32 %v1741, %v1758
        %1760 = vmatmul.bf16.gmra.mxu0 %v1463
        %v1761 = vpop.f32.mrf.mxu0
        %v1762 = vadd.f32 %v1744, %v1761
        %v1763 = vpop.f32.mrf.mxu0
        %1764 = vdwg.mxu0
        %1765 = vmatpush.bf16.msra.mxu0 %v1668
        %1766 = vmatpush.bf16.msra.mxu0 %v1666
        %1767 = vmatpush.bf16.msra.mxu0 %v1664
        %1768 = vmatpush.bf16.msra.mxu0 %v1662
        %1769 = vmatpush.bf16.msra.mxu0 %v1660
        %1770 = vmatpush.bf16.msra.mxu0 %v1658
        %1771 = vmatpush.bf16.msra.mxu0 %v1656
        %1772 = vmatpush.bf16.msra.mxu0 %v1654
        %1773 = vmatmul.bf16.gmra.mxu0 %v1460
        %v1774 = vpop.f32.mrf.mxu0
        %v1775 = vadd.f32 %v1757, %v1774
        %v1776 = vpop.f32.mrf.mxu0
        %v1777 = vadd.f32 %v1759, %v1776
        %1778 = vmatmul.bf16.gmra.mxu0 %v1464
        %v1779 = vpop.f32.mrf.mxu0
        %v1780 = vadd.f32 %v1762, %v1779
        %v1781 = vpop.f32.mrf.mxu0
        %1782 = vdwg.mxu0
        %1783 = vmatpush.bf16.msra.mxu0 0
        %1784 = vmatpush.bf16.msra.mxu0 0
        %1785 = vmatpush.bf16.msra.mxu0 0
        %1786 = vmatpush.bf16.msra.mxu0 0
        %1787 = vmatpush.bf16.msra.mxu0 0
        %1788 = vmatpush.bf16.msra.mxu0 0
        %1789 = vmatpush.bf16.msra.mxu0 0
        %1790 = vmatpush.bf16.msra.mxu0 %v1670
        %1791 = vmatmul.bf16.gmra.mxu0 %v1724
        %v1792 = vpop.f32.mrf.mxu0
        %v1793 = vadd.f32 %v1775, %v1792
        %v1794 = vpop.f32.mrf.mxu0
        %v1795 = vadd.f32 %v1777, %v1794
        %1796 = vmatmul.bf16.gmra.mxu0 %v1727
        %v1797 = vpop.f32.mrf.mxu0
        %v1798 = vadd.f32 %v1780, %v1797
        %v1799 = vpop.f32.mrf.mxu0
        %1800 = vdwg.mxu0
        %1801 = vmatpush.bf16.msra.mxu0 %v1637
        %1802 = vmatpush.bf16.msra.mxu0 %v1635
        %1803 = vmatpush.bf16.msra.mxu0 %v1633
        %1804 = vmatpush.bf16.msra.mxu0 %v1631
        %1805 = vmatpush.bf16.msra.mxu0 %v1629
        %1806 = vmatpush.bf16.msra.mxu0 %v1627
        %1807 = vmatpush.bf16.msra.mxu0 %v1625
        %1808 = vmatpush.bf16.msra.mxu0 %v1623
        %1809 = vmatmul.bf16.gmra.mxu0 %v1458
        %v1810 = vpop.f32.mrf.mxu0
        %v1811 = vadd.f32 %v1428, %v1810
        %v1812 = vpop.f32.mrf.mxu0
        %v1813 = vadd.f32 %v1433, %v1812
        %1814 = vmatmul.bf16.gmra.mxu0 %v1462
        %v1815 = vpop.f32.mrf.mxu0
        %v1816 = vadd.f32 %v1438, %v1815
        %v1817 = vpop.f32.mrf.mxu0
        %1818 = vdwg.mxu0
        %1819 = vmatpush.bf16.msra.mxu0 %v1653
        %1820 = vmatpush.bf16.msra.mxu0 %v1651
        %1821 = vmatpush.bf16.msra.mxu0 %v1649
        %1822 = vmatpush.bf16.msra.mxu0 %v1647
        %1823 = vmatpush.bf16.msra.mxu0 %v1645
        %1824 = vmatpush.bf16.msra.mxu0 %v1643
        %1825 = vmatpush.bf16.msra.mxu0 %v1641
        %1826 = vmatpush.bf16.msra.mxu0 %v1639
        %1827 = vmatmul.bf16.gmra.mxu0 %v1459
        %v1828 = vpop.f32.mrf.mxu0
        %v1829 = vadd.f32 %v1811, %v1828
        %v1830 = vpop.f32.mrf.mxu0
        %v1831 = vadd.f32 %v1813, %v1830
        %1832 = vmatmul.bf16.gmra.mxu0 %v1463
        %v1833 = vpop.f32.mrf.mxu0
        %v1834 = vadd.f32 %v1816, %v1833
        %v1835 = vpop.f32.mrf.mxu0
        %1836 = vdwg.mxu0
        %1837 = vmatpush.bf16.msra.mxu0 %v1669
        %1838 = vmatpush.bf16.msra.mxu0 %v1667
        %1839 = vmatpush.bf16.msra.mxu0 %v1665
        %1840 = vmatpush.bf16.msra.mxu0 %v1663
        %1841 = vmatpush.bf16.msra.mxu0 %v1661
        %1842 = vmatpush.bf16.msra.mxu0 %v1659
        %1843 = vmatpush.bf16.msra.mxu0 %v1657
        %1844 = vmatpush.bf16.msra.mxu0 %v1655
        %1845 = vmatmul.bf16.gmra.mxu0 %v1460
        %v1846 = vpop.f32.mrf.mxu0
        %v1847 = vadd.f32 %v1829, %v1846
        %v1848 = vpop.f32.mrf.mxu0
        %v1849 = vadd.f32 %v1831, %v1848
        %1850 = vmatmul.bf16.gmra.mxu0 %v1464
        %v1851 = vpop.f32.mrf.mxu0
        %v1852 = vadd.f32 %v1834, %v1851
        %v1853 = vpop.f32.mrf.mxu0
        %1854 = vdwg.mxu0
        %1855 = vmatpush.bf16.msra.mxu0 0
        %1856 = vmatpush.bf16.msra.mxu0 0
        %1857 = vmatpush.bf16.msra.mxu0 0
        %1858 = vmatpush.bf16.msra.mxu0 0
        %1859 = vmatpush.bf16.msra.mxu0 0
        %1860 = vmatpush.bf16.msra.mxu0 0
        %1861 = vmatpush.bf16.msra.mxu0 0
        %1862 = vmatpush.bf16.msra.mxu0 %v1671
        %1863 = vmatmul.bf16.gmra.mxu0 %v1724
        %v1864 = vpop.f32.mrf.mxu0
        %v1865 = vadd.f32 %v1847, %v1864
        %v1866 = vpop.f32.mrf.mxu0
        %v1867 = vadd.f32 %v1849, %v1866
        %1868 = vmatmul.bf16.gmra.mxu0 %v1727
        %v1869 = vpop.f32.mrf.mxu0
        %v1870 = vadd.f32 %v1852, %v1869
        %v1871 = vpop.f32.mrf.mxu0
        %1872 = vdwg.mxu0
        %1873 = vst [vmem:[%s268 + $0x50] sm:$0xff] %v1793
        %1874 = vst [vmem:[%s268 + $0x58] sm:$0xff] %v1865
        %1875 = vst [vmem:[%s268 + $0x60] sm:$0xff] %v1795
        %1876 = vst [vmem:[%s268 + $0x68] sm:$0xff] %v1867
        %1877 = vst [vmem:[%s268 + $0x70] sm:$0xff] %v1798
        %1878 = vst [vmem:[%s268 + $0x78] sm:$0xff] %v1870
        %1879 = vrot.lane.b32.xlu0 %v649, 17
        %v1880 = vpop.permute.xlu0 %1879
        %1881 = vrot.lane.b32.xlu0 %v652, 17
        %v1882 = vpop.permute.xlu0 %1881
        %1883 = vrot.lane.b32.xlu0 %v682, 17
        %v1884 = vpop.permute.xlu0 %1883
        %1885 = vrot.lane.b32.xlu0 %v685, 17
        %v1886 = vpop.permute.xlu0 %1885
        %v1887 = vsel %vm290, %v1880, %v1884
        %v1888 = vsel %vm290, %v1882, %v1886
        %v1889 = vsel %vm290, %v1884, %v1880
        %v1890 = vsel %vm290, %v1886, %v1882
        %v1891 = vld [vmem:[%s1] ss:$8 sm:$0x3]
        %v1893 = vperm.slane %v1891, 0
        %v1894 = vperm.slane %v1891, 1
        %v1897 = vmul.f32 %v1889, %v1893
        %v1898 = vmul.f32 %v1887, %v1894
        %v1899 = vmul.f32 %v1890, %v1893
        %v1900 = vmul.f32 %v1888, %v1894
        %v1901 = vpack.c.bf16 %v1898, %v1897
        %v1902 = vpack.c.bf16 %v1900, %v1899
        %1903 = vst [vmem:[#allocation4] sm:$0xff] %v1901
        %1904 = vst [vmem:[#allocation4 + $0x8] sm:$0xff] %v1902
        %1905 = vrot.lane.b32.xlu0 %v649, 16
        %v1906 = vpop.permute.xlu0 %1905
        %1907 = vrot.lane.b32.xlu0 %v652, 16
        %v1908 = vpop.permute.xlu0 %1907
        %1909 = vrot.lane.b32.xlu0 %v682, 16
        %v1910 = vpop.permute.xlu0 %1909
        %1911 = vrot.lane.b32.xlu0 %v685, 16
        %v1912 = vpop.permute.xlu0 %1911
        %v1913 = vsel %vm312, %v1906, %v1910
        %v1914 = vsel %vm312, %v1908, %v1912
        %v1915 = vsel %vm312, %v1910, %v1906
        %v1916 = vsel %vm312, %v1912, %v1908
        %v1917 = vld [vmem:[%s315] ss:$8 sm:$0x3]
        %v1919 = vperm.slane %v1917, 0
        %v1920 = vperm.slane %v1917, 1
        %v1923 = vmul.f32 %v1915, %v1919
        %v1924 = vmul.f32 %v1913, %v1920
        %v1925 = vmul.f32 %v1916, %v1919
        %v1926 = vmul.f32 %v1914, %v1920
        %v1927 = vpack.c.bf16 %v1924, %v1923
        %v1928 = vpack.c.bf16 %v1926, %v1925
        %1929 = vst [vmem:[#allocation4 + $0x10] sm:$0xff] %v1927
        %1930 = vst [vmem:[#allocation4 + $0x18] sm:$0xff] %v1928
        %1931 = vrot.lane.b32.xlu0 %v649, 15
        %v1932 = vpop.permute.xlu0 %1931
        %1933 = vrot.lane.b32.xlu0 %v652, 15
        %v1934 = vpop.permute.xlu0 %1933
        %1935 = vrot.lane.b32.xlu0 %v682, 15
        %v1936 = vpop.permute.xlu0 %1935
        %1937 = vrot.lane.b32.xlu0 %v685, 15
        %v1938 = vpop.permute.xlu0 %1937
        %v1939 = vsel %vm338, %v1932, %v1936
        %v1940 = vsel %vm338, %v1934, %v1938
        %v1941 = vsel %vm338, %v1936, %v1932
        %v1942 = vsel %vm338, %v1938, %v1934
        %v1943 = vld [vmem:[%s341] ss:$8 sm:$0x3]
        %v1945 = vperm.slane %v1943, 0
        %v1946 = vperm.slane %v1943, 1
        %v1949 = vmul.f32 %v1941, %v1945
        %v1950 = vmul.f32 %v1939, %v1946
        %v1951 = vmul.f32 %v1942, %v1945
        %v1952 = vmul.f32 %v1940, %v1946
        %v1953 = vpack.c.bf16 %v1950, %v1949
        %v1954 = vpack.c.bf16 %v1952, %v1951
        %1955 = vst [vmem:[#allocation4 + $0x20] sm:$0xff] %v1953
        %1956 = vst [vmem:[#allocation4 + $0x28] sm:$0xff] %v1954
        %1957 = vrot.lane.b32.xlu0 %v649, 1
        %v1958 = vpop.permute.xlu0 %1957
        %1959 = vrot.lane.b32.xlu0 %v652, 1
        %v1960 = vpop.permute.xlu0 %1959
        %1961 = vrot.lane.b32.xlu0 %v682, 1
        %v1962 = vpop.permute.xlu0 %1961
        %1963 = vrot.lane.b32.xlu0 %v685, 1
        %v1964 = vpop.permute.xlu0 %1963
        %v1965 = vsel %vm361, %v1958, %v1962
        %v1966 = vsel %vm361, %v1960, %v1964
        %v1967 = vsel %vm361, %v1962, %v1958
        %v1968 = vsel %vm361, %v1964, %v1960
        %v1969 = vld [vmem:[%s364] ss:$8 sm:$0x3]
        %v1971 = vperm.slane %v1969, 0
        %v1972 = vperm.slane %v1969, 1
        %v1975 = vmul.f32 %v1967, %v1971
        %v1976 = vmul.f32 %v1965, %v1972
        %v1977 = vmul.f32 %v1968, %v1971
        %v1978 = vmul.f32 %v1966, %v1972
        %v1979 = vpack.c.bf16 %v1976, %v1975
        %v1980 = vpack.c.bf16 %v1978, %v1977
        %1981 = vst [vmem:[#allocation4 + $0x30] sm:$0xff] %v1979
        %1982 = vst [vmem:[#allocation4 + $0x38] sm:$0xff] %v1980
        %v1983 = vpack.c.bf16 %v682, %v649
        %v1984 = vpack.c.bf16 %v685, %v652
        %1985 = vst [vmem:[#allocation4 + $0x40] sm:$0xff] %v1983
        %1986 = vst [vmem:[#allocation4 + $0x48] sm:$0xff] %v1984
        %1987 = vrot.lane.b32.xlu0 %v649, 127
        %v1988 = vpop.permute.xlu0 %1987
        %1989 = vrot.lane.b32.xlu0 %v652, 127
        %v1990 = vpop.permute.xlu0 %1989
        %1991 = vrot.lane.b32.xlu0 %v682, 127
        %v1992 = vpop.permute.xlu0 %1991
        %1993 = vrot.lane.b32.xlu0 %v685, 127
        %v1994 = vpop.permute.xlu0 %1993
        %v1995 = vsel %vm394, %v1988, %v1992
        %v1996 = vsel %vm394, %v1990, %v1994
        %v1997 = vsel %vm394, %v1992, %v1988
        %v1998 = vsel %vm394, %v1994, %v1990
        %v1999 = vld [vmem:[%s397] ss:$8 sm:$0x3]
        %v2001 = vperm.slane %v1999, 0
        %v2002 = vperm.slane %v1999, 1
        %v2005 = vmul.f32 %v1995, %v2001
        %v2006 = vmul.f32 %v1997, %v2002
        %v2007 = vmul.f32 %v1996, %v2001
        %v2008 = vmul.f32 %v1998, %v2002
        %v2009 = vpack.c.bf16 %v2006, %v2005
        %v2010 = vpack.c.bf16 %v2008, %v2007
        %2011 = vst [vmem:[#allocation4 + $0x50] sm:$0xff] %v2009
        %2012 = vst [vmem:[#allocation4 + $0x58] sm:$0xff] %v2010
        %2013 = vrot.lane.b32.xlu0 %v649, 113
        %v2014 = vpop.permute.xlu0 %2013
        %2015 = vrot.lane.b32.xlu0 %v652, 113
        %v2016 = vpop.permute.xlu0 %2015
        %2017 = vrot.lane.b32.xlu0 %v682, 113
        %v2018 = vpop.permute.xlu0 %2017
        %2019 = vrot.lane.b32.xlu0 %v685, 113
        %v2020 = vpop.permute.xlu0 %2019
        %v2021 = vsel %vm420, %v2014, %v2018
        %v2022 = vsel %vm420, %v2016, %v2020
        %v2023 = vsel %vm420, %v2018, %v2014
        %v2024 = vsel %vm420, %v2020, %v2016
        %v2025 = vld [vmem:[%s423] ss:$8 sm:$0x3]
        %v2027 = vperm.slane %v2025, 0
        %v2028 = vperm.slane %v2025, 1
        %v2031 = vmul.f32 %v2021, %v2027
        %v2032 = vmul.f32 %v2023, %v2028
        %v2033 = vmul.f32 %v2022, %v2027
        %v2034 = vmul.f32 %v2024, %v2028
        %v2035 = vpack.c.bf16 %v2032, %v2031
        %v2036 = vpack.c.bf16 %v2034, %v2033
        %2037 = vst [vmem:[#allocation4 + $0x60] sm:$0xff] %v2035
        %2038 = vst [vmem:[#allocation4 + $0x68] sm:$0xff] %v2036
        %2039 = vrot.lane.b32.xlu0 %v649, 112
        %v2040 = vpop.permute.xlu0 %2039
        %2041 = vrot.lane.b32.xlu0 %v652, 112
        %v2042 = vpop.permute.xlu0 %2041
        %2043 = vrot.lane.b32.xlu0 %v682, 112
        %v2044 = vpop.permute.xlu0 %2043
        %2045 = vrot.lane.b32.xlu0 %v685, 112
        %v2046 = vpop.permute.xlu0 %2045
        %v2047 = vsel %vm443, %v2040, %v2044
        %v2048 = vsel %vm443, %v2042, %v2046
        %v2049 = vsel %vm443, %v2044, %v2040
        %v2050 = vsel %vm443, %v2046, %v2042
        %v2051 = vld [vmem:[%s446] ss:$8 sm:$0x3]
        %v2053 = vperm.slane %v2051, 0
        %v2054 = vperm.slane %v2051, 1
        %v2057 = vmul.f32 %v2047, %v2053
        %v2058 = vmul.f32 %v2049, %v2054
        %v2059 = vmul.f32 %v2048, %v2053
        %v2060 = vmul.f32 %v2050, %v2054
        %v2061 = vpack.c.bf16 %v2058, %v2057
        %v2062 = vpack.c.bf16 %v2060, %v2059
        %2063 = vst [vmem:[#allocation4 + $0x70] sm:$0xff] %v2061
        %2064 = vst [vmem:[#allocation4 + $0x78] sm:$0xff] %v2062
        %2065 = vrot.lane.b32.xlu0 %v649, 111
        %v2066 = vpop.permute.xlu0 %2065
        %2067 = vrot.lane.b32.xlu0 %v652, 111
        %v2068 = vpop.permute.xlu0 %2067
        %2069 = vrot.lane.b32.xlu0 %v682, 111
        %v2070 = vpop.permute.xlu0 %2069
        %2071 = vrot.lane.b32.xlu0 %v685, 111
        %v2072 = vpop.permute.xlu0 %2071
        %v2073 = vsel %vm469, %v2066, %v2070
        %v2074 = vsel %vm469, %v2068, %v2072
        %v2075 = vsel %vm469, %v2070, %v2066
        %v2076 = vsel %vm469, %v2072, %v2068
        %v2077 = vld [vmem:[%s472] ss:$8 sm:$0x3]
        %v2079 = vperm.slane %v2077, 0
        %v2080 = vperm.slane %v2077, 1
        %v2083 = vmul.f32 %v2073, %v2079
        %v2084 = vmul.f32 %v2075, %v2080
        %v2085 = vmul.f32 %v2074, %v2079
        %v2086 = vmul.f32 %v2076, %v2080
        %v2087 = vpack.c.bf16 %v2084, %v2083
        %v2088 = vpack.c.bf16 %v2086, %v2085
        %2089 = vst [vmem:[#allocation4 + $0x80] sm:$0xff] %v2087
        %2090 = vst [vmem:[#allocation4 + $0x88] sm:$0xff] %v2088
        %v2091 = vld [vmem:[%s4] sm:$0xff]
        %v2092 = vld [vmem:[%s4 + $0x8] sm:$0xff]
        %v2093 = vld [vmem:[%s4 + $0x10] sm:$0xff]
        %v2094 = vld [vmem:[#allocation4] sm:$0xff]
        %v2095 = vld [vmem:[#allocation4 + $0x8] sm:$0xff]
        %v2096 = vld [vmem:[#allocation4 + $0x10] sm:$0xff]
        %v2097 = vld [vmem:[#allocation4 + $0x18] sm:$0xff]
        %v2098 = vld [vmem:[#allocation4 + $0x20] sm:$0xff]
        %v2099 = vld [vmem:[#allocation4 + $0x28] sm:$0xff]
        %v2100 = vld [vmem:[#allocation4 + $0x30] sm:$0xff]
        %v2101 = vld [vmem:[#allocation4 + $0x38] sm:$0xff]
        %v2102 = vld [vmem:[#allocation4 + $0x40] sm:$0xff]
        %v2103 = vld [vmem:[#allocation4 + $0x48] sm:$0xff]
        %v2104 = vld [vmem:[#allocation4 + $0x50] sm:$0xff]
        %v2105 = vld [vmem:[#allocation4 + $0x58] sm:$0xff]
        %v2106 = vld [vmem:[#allocation4 + $0x60] sm:$0xff]
        %v2107 = vld [vmem:[#allocation4 + $0x68] sm:$0xff]
        %v2108 = vld [vmem:[#allocation4 + $0x70] sm:$0xff]
        %v2109 = vld [vmem:[#allocation4 + $0x78] sm:$0xff]
        %v2110 = vld [vmem:[#allocation4 + $0x80] sm:$0xff]
        %v2111 = vld [vmem:[#allocation4 + $0x88] sm:$0xff]
        %v2112 = vld [vmem:[%s6 + $0x60] sm:$0xff]
        %v2113 = vld [vmem:[%s6 + $0x68] sm:$0xff]
        %v2114 = vld [vmem:[%s6 + $0x70] sm:$0xff]
        %2116 = vset.pattern.permute.xlu0 0
        %2117 = vperm.xlu0 %2116, %v2112
        %v2118 = vpop.permute.xlu0 %2117
        %2121 = vset.pattern.permute.xlu0 0
        %2122 = vperm.xlu0 %2121, %v2113
        %v2123 = vpop.permute.xlu0 %2122
        %2126 = vset.pattern.permute.xlu0 0
        %2127 = vperm.xlu0 %2126, %v2114
        %v2128 = vpop.permute.xlu0 %2127
        %v2133 = vunpack.c.l.b16 %v2091
        %v2134 = vunpack.c.h.b16 %v2091
        %v2135 = vunpack.c.l.b16 %v2092
        %v2136 = vunpack.c.h.b16 %v2092
        %v2137 = vunpack.c.l.b16 %v2093
        %v2138 = vunpack.c.h.b16 %v2093
        %v2139 = vpack.c.b16 %v2135, %v2133
        %v2140 = vpack.c.b16 %v2136, %v2134
        %v2141 = vpack.c.b16 %v2137, %v2137
        %v2142 = vpack.c.b16 %v2138, %v2138
        %v2163 = vunpack.c.l.b16 %v2094
        %v2164 = vunpack.c.h.b16 %v2094
        %v2165 = vunpack.c.l.b16 %v2095
        %v2166 = vunpack.c.h.b16 %v2095
        %v2167 = vunpack.c.l.b16 %v2096
        %v2168 = vunpack.c.h.b16 %v2096
        %v2169 = vunpack.c.l.b16 %v2097
        %v2170 = vunpack.c.h.b16 %v2097
        %v2171 = vunpack.c.l.b16 %v2098
        %v2172 = vunpack.c.h.b16 %v2098
        %v2173 = vunpack.c.l.b16 %v2099
        %v2174 = vunpack.c.h.b16 %v2099
        %v2175 = vunpack.c.l.b16 %v2100
        %v2176 = vunpack.c.h.b16 %v2100
        %v2177 = vunpack.c.l.b16 %v2101
        %v2178 = vunpack.c.h.b16 %v2101
        %v2179 = vunpack.c.l.b16 %v2102
        %v2180 = vunpack.c.h.b16 %v2102
        %v2181 = vunpack.c.l.b16 %v2103
        %v2182 = vunpack.c.h.b16 %v2103
        %v2183 = vunpack.c.l.b16 %v2104
        %v2184 = vunpack.c.h.b16 %v2104
        %v2185 = vunpack.c.l.b16 %v2105
        %v2186 = vunpack.c.h.b16 %v2105
        %v2187 = vunpack.c.l.b16 %v2106
        %v2188 = vunpack.c.h.b16 %v2106
        %v2189 = vunpack.c.l.b16 %v2107
        %v2190 = vunpack.c.h.b16 %v2107
        %v2191 = vunpack.c.l.b16 %v2108
        %v2192 = vunpack.c.h.b16 %v2108
        %v2193 = vunpack.c.l.b16 %v2109
        %v2194 = vunpack.c.h.b16 %v2109
        %v2195 = vunpack.c.l.b16 %v2110
        %v2196 = vunpack.c.h.b16 %v2110
        %v2197 = vunpack.c.l.b16 %v2111
        %v2198 = vunpack.c.h.b16 %v2111
        %v2199 = vpack.c.b16 %v2165, %v2163
        %v2200 = vpack.c.b16 %v2166, %v2164
        %v2201 = vpack.c.b16 %v2169, %v2167
        %v2202 = vpack.c.b16 %v2170, %v2168
        %v2203 = vpack.c.b16 %v2173, %v2171
        %v2204 = vpack.c.b16 %v2174, %v2172
        %v2205 = vpack.c.b16 %v2177, %v2175
        %v2206 = vpack.c.b16 %v2178, %v2176
        %v2207 = vpack.c.b16 %v2181, %v2179
        %v2208 = vpack.c.b16 %v2182, %v2180
        %v2209 = vpack.c.b16 %v2185, %v2183
        %v2210 = vpack.c.b16 %v2186, %v2184
        %v2211 = vpack.c.b16 %v2189, %v2187
        %v2212 = vpack.c.b16 %v2190, %v2188
        %v2213 = vpack.c.b16 %v2193, %v2191
        %v2214 = vpack.c.b16 %v2194, %v2192
        %v2215 = vpack.c.b16 %v2197, %v2195
        %v2216 = vpack.c.b16 %v2198, %v2196
        %v2236 = vsel %vm1722, %v2140, 0
        %v2239 = vsel %vm1722, %v2142, 0
        %2241 = vmatpush.bf16.msra.mxu0 %v2213
        %2242 = vmatpush.bf16.msra.mxu0 %v2211
        %2243 = vmatpush.bf16.msra.mxu0 %v2209
        %2244 = vmatpush.bf16.msra.mxu0 %v2207
        %2245 = vmatpush.bf16.msra.mxu0 %v2205
        %2246 = vmatpush.bf16.msra.mxu0 %v2203
        %2247 = vmatpush.bf16.msra.mxu0 %v2201
        %2248 = vmatpush.bf16.msra.mxu0 %v2199
        %2249 = vmatmul.bf16.gmra.mxu0 %v2139
        %v2250 = vpop.f32.mrf.mxu0
        %v2251 = vadd.f32 %v2118, %v2250
        %v2252 = vpop.f32.mrf.mxu0
        %v2253 = vadd.f32 %v2123, %v2252
        %2254 = vmatmul.bf16.gmra.mxu0 %v2141
        %v2255 = vpop.f32.mrf.mxu0
        %v2256 = vadd.f32 %v2128, %v2255
        %v2257 = vpop.f32.mrf.mxu0
        %2258 = vdwg.mxu0
        %2259 = vmatpush.bf16.msra.mxu0 0
        %2260 = vmatpush.bf16.msra.mxu0 0
        %2261 = vmatpush.bf16.msra.mxu0 0
        %2262 = vmatpush.bf16.msra.mxu0 0
        %2263 = vmatpush.bf16.msra.mxu0 0
        %2264 = vmatpush.bf16.msra.mxu0 0
        %2265 = vmatpush.bf16.msra.mxu0 0
        %2266 = vmatpush.bf16.msra.mxu0 %v2215
        %2267 = vmatmul.bf16.gmra.mxu0 %v2236
        %v2268 = vpop.f32.mrf.mxu0
        %v2269 = vadd.f32 %v2251, %v2268
        %v2270 = vpop.f32.mrf.mxu0
        %v2271 = vadd.f32 %v2253, %v2270
        %2272 = vmatmul.bf16.gmra.mxu0 %v2239
        %v2273 = vpop.f32.mrf.mxu0
        %v2274 = vadd.f32 %v2256, %v2273
        %v2275 = vpop.f32.mrf.mxu0
        %2276 = vdwg.mxu0
        %2277 = vmatpush.bf16.msra.mxu0 %v2214
        %2278 = vmatpush.bf16.msra.mxu0 %v2212
        %2279 = vmatpush.bf16.msra.mxu0 %v2210
        %2280 = vmatpush.bf16.msra.mxu0 %v2208
        %2281 = vmatpush.bf16.msra.mxu0 %v2206
        %2282 = vmatpush.bf16.msra.mxu0 %v2204
        %2283 = vmatpush.bf16.msra.mxu0 %v2202
        %2284 = vmatpush.bf16.msra.mxu0 %v2200
        %2285 = vmatmul.bf16.gmra.mxu0 %v2139
        %v2286 = vpop.f32.mrf.mxu0
        %v2287 = vadd.f32 %v2118, %v2286
        %v2288 = vpop.f32.mrf.mxu0
        %v2289 = vadd.f32 %v2123, %v2288
        %2290 = vmatmul.bf16.gmra.mxu0 %v2141
        %v2291 = vpop.f32.mrf.mxu0
        %v2292 = vadd.f32 %v2128, %v2291
        %v2293 = vpop.f32.mrf.mxu0
        %2294 = vdwg.mxu0
        %2295 = vmatpush.bf16.msra.mxu0 0
        %2296 = vmatpush.bf16.msra.mxu0 0
        %2297 = vmatpush.bf16.msra.mxu0 0
        %2298 = vmatpush.bf16.msra.mxu0 0
        %2299 = vmatpush.bf16.msra.mxu0 0
        %2300 = vmatpush.bf16.msra.mxu0 0
        %2301 = vmatpush.bf16.msra.mxu0 0
        %2302 = vmatpush.bf16.msra.mxu0 %v2216
        %2303 = vmatmul.bf16.gmra.mxu0 %v2236
        %v2304 = vpop.f32.mrf.mxu0
        %v2305 = vadd.f32 %v2287, %v2304
        %v2306 = vpop.f32.mrf.mxu0
        %v2307 = vadd.f32 %v2289, %v2306
        %2308 = vmatmul.bf16.gmra.mxu0 %v2239
        %v2309 = vpop.f32.mrf.mxu0
        %v2310 = vadd.f32 %v2292, %v2309
        %v2311 = vpop.f32.mrf.mxu0
        %2312 = vdwg.mxu0
        %2313 = vrot.lane.b32.xlu0 %v2269, 17
        %v2314 = vpop.permute.xlu0 %2313
        %2315 = vrot.lane.b32.xlu0 %v2271, 17
        %v2316 = vpop.permute.xlu0 %2315
        %2317 = vrot.lane.b32.xlu0 %v2274, 17
        %v2318 = vpop.permute.xlu0 %2317
        %2319 = vrot.lane.b32.xlu0 %v2305, 17
        %v2320 = vpop.permute.xlu0 %2319
        %2321 = vrot.lane.b32.xlu0 %v2307, 17
        %v2322 = vpop.permute.xlu0 %2321
        %2323 = vrot.lane.b32.xlu0 %v2310, 17
        %v2324 = vpop.permute.xlu0 %2323
        %v2325 = vsel %vm290, %v2314, %v2320
        %v2326 = vsel %vm290, %v2316, %v2322
        %v2327 = vsel %vm290, %v2318, %v2324
        %v2328 = vsel %vm290, %v2320, %v2314
        %v2329 = vsel %vm290, %v2322, %v2316
        %v2330 = vsel %vm290, %v2324, %v2318
        %v2331 = vld [vmem:[%s1] ss:$8 sm:$0x3]
        %v2333 = vperm.slane %v2331, 0
        %v2334 = vperm.slane %v2331, 1
        %v2337 = vmul.f32 %v2328, %v2333
        %v2338 = vmul.f32 %v2325, %v2334
        %v2339 = vmul.f32 %v2329, %v2333
        %v2340 = vmul.f32 %v2326, %v2334
        %v2341 = vmul.f32 %v2330, %v2333
        %v2342 = vmul.f32 %v2327, %v2334
        %v2343 = vpack.c.bf16 %v2338, %v2337
        %v2344 = vpack.c.bf16 %v2340, %v2339
        %v2345 = vpack.c.bf16 %v2342, %v2341
        %2346 = vst [vmem:[#allocation5] sm:$0xff] %v2343
        %2347 = vst [vmem:[#allocation5 + $0x8] sm:$0xff] %v2344
        %2348 = vst [vmem:[#allocation5 + $0x10] sm:$0xff] %v2345
        %2349 = vrot.lane.b32.xlu0 %v2269, 16
        %v2350 = vpop.permute.xlu0 %2349
        %2351 = vrot.lane.b32.xlu0 %v2271, 16
        %v2352 = vpop.permute.xlu0 %2351
        %2353 = vrot.lane.b32.xlu0 %v2274, 16
        %v2354 = vpop.permute.xlu0 %2353
        %2355 = vrot.lane.b32.xlu0 %v2305, 16
        %v2356 = vpop.permute.xlu0 %2355
        %2357 = vrot.lane.b32.xlu0 %v2307, 16
        %v2358 = vpop.permute.xlu0 %2357
        %2359 = vrot.lane.b32.xlu0 %v2310, 16
        %v2360 = vpop.permute.xlu0 %2359
        %v2361 = vsel %vm312, %v2350, %v2356
        %v2362 = vsel %vm312, %v2352, %v2358
        %v2363 = vsel %vm312, %v2354, %v2360
        %v2364 = vsel %vm312, %v2356, %v2350
        %v2365 = vsel %vm312, %v2358, %v2352
        %v2366 = vsel %vm312, %v2360, %v2354
        %v2367 = vld [vmem:[%s315] ss:$8 sm:$0x3]
        %v2369 = vperm.slane %v2367, 0
        %v2370 = vperm.slane %v2367, 1
        %v2373 = vmul.f32 %v2364, %v2369
        %v2374 = vmul.f32 %v2361, %v2370
        %v2375 = vmul.f32 %v2365, %v2369
        %v2376 = vmul.f32 %v2362, %v2370
        %v2377 = vmul.f32 %v2366, %v2369
        %v2378 = vmul.f32 %v2363, %v2370
        %v2379 = vpack.c.bf16 %v2374, %v2373
        %v2380 = vpack.c.bf16 %v2376, %v2375
        %v2381 = vpack.c.bf16 %v2378, %v2377
        %2382 = vst [vmem:[#allocation5 + $0x18] sm:$0xff] %v2379
        %2383 = vst [vmem:[#allocation5 + $0x20] sm:$0xff] %v2380
        %2384 = vst [vmem:[#allocation5 + $0x28] sm:$0xff] %v2381
        %2385 = vrot.lane.b32.xlu0 %v2269, 15
        %v2386 = vpop.permute.xlu0 %2385
        %2387 = vrot.lane.b32.xlu0 %v2271, 15
        %v2388 = vpop.permute.xlu0 %2387
        %2389 = vrot.lane.b32.xlu0 %v2274, 15
        %v2390 = vpop.permute.xlu0 %2389
        %2391 = vrot.lane.b32.xlu0 %v2305, 15
        %v2392 = vpop.permute.xlu0 %2391
        %2393 = vrot.lane.b32.xlu0 %v2307, 15
        %v2394 = vpop.permute.xlu0 %2393
        %2395 = vrot.lane.b32.xlu0 %v2310, 15
        %v2396 = vpop.permute.xlu0 %2395
        %v2397 = vsel %vm338, %v2386, %v2392
        %v2398 = vsel %vm338, %v2388, %v2394
        %v2399 = vsel %vm338, %v2390, %v2396
        %v2400 = vsel %vm338, %v2392, %v2386
        %v2401 = vsel %vm338, %v2394, %v2388
        %v2402 = vsel %vm338, %v2396, %v2390
        %v2403 = vld [vmem:[%s341] ss:$8 sm:$0x3]
        %v2405 = vperm.slane %v2403, 0
        %v2406 = vperm.slane %v2403, 1
        %v2409 = vmul.f32 %v2400, %v2405
        %v2410 = vmul.f32 %v2397, %v2406
        %v2411 = vmul.f32 %v2401, %v2405
        %v2412 = vmul.f32 %v2398, %v2406
        %v2413 = vmul.f32 %v2402, %v2405
        %v2414 = vmul.f32 %v2399, %v2406
        %v2415 = vpack.c.bf16 %v2410, %v2409
        %v2416 = vpack.c.bf16 %v2412, %v2411
        %v2417 = vpack.c.bf16 %v2414, %v2413
        %2418 = vst [vmem:[#allocation5 + $0x30] sm:$0xff] %v2415
        %2419 = vst [vmem:[#allocation5 + $0x38] sm:$0xff] %v2416
        %2420 = vst [vmem:[#allocation5 + $0x40] sm:$0xff] %v2417
        %2421 = vrot.lane.b32.xlu0 %v2269, 1
        %v2422 = vpop.permute.xlu0 %2421
        %2423 = vrot.lane.b32.xlu0 %v2271, 1
        %v2424 = vpop.permute.xlu0 %2423
        %2425 = vrot.lane.b32.xlu0 %v2274, 1
        %v2426 = vpop.permute.xlu0 %2425
        %2427 = vrot.lane.b32.xlu0 %v2305, 1
        %v2428 = vpop.permute.xlu0 %2427
        %2429 = vrot.lane.b32.xlu0 %v2307, 1
        %v2430 = vpop.permute.xlu0 %2429
        %2431 = vrot.lane.b32.xlu0 %v2310, 1
        %v2432 = vpop.permute.xlu0 %2431
        %v2433 = vsel %vm361, %v2422, %v2428
        %v2434 = vsel %vm361, %v2424, %v2430
        %v2435 = vsel %vm361, %v2426, %v2432
        %v2436 = vsel %vm361, %v2428, %v2422
        %v2437 = vsel %vm361, %v2430, %v2424
        %v2438 = vsel %vm361, %v2432, %v2426
        %v2439 = vld [vmem:[%s364] ss:$8 sm:$0x3]
        %v2441 = vperm.slane %v2439, 0
        %v2442 = vperm.slane %v2439, 1
        %v2445 = vmul.f32 %v2436, %v2441
        %v2446 = vmul.f32 %v2433, %v2442
        %v2447 = vmul.f32 %v2437, %v2441
        %v2448 = vmul.f32 %v2434, %v2442
        %v2449 = vmul.f32 %v2438, %v2441
        %v2450 = vmul.f32 %v2435, %v2442
        %v2451 = vpack.c.bf16 %v2446, %v2445
        %v2452 = vpack.c.bf16 %v2448, %v2447
        %v2453 = vpack.c.bf16 %v2450, %v2449
        %2454 = vst [vmem:[#allocation5 + $0x48] sm:$0xff] %v2451
        %2455 = vst [vmem:[#allocation5 + $0x50] sm:$0xff] %v2452
        %2456 = vst [vmem:[#allocation5 + $0x58] sm:$0xff] %v2453
        %v2457 = vpack.c.bf16 %v2305, %v2269
        %v2458 = vpack.c.bf16 %v2307, %v2271
        %v2459 = vpack.c.bf16 %v2310, %v2274
        %2460 = vst [vmem:[#allocation5 + $0x60] sm:$0xff] %v2457
        %2461 = vst [vmem:[#allocation5 + $0x68] sm:$0xff] %v2458
        %2462 = vst [vmem:[#allocation5 + $0x70] sm:$0xff] %v2459
        %2463 = vrot.lane.b32.xlu0 %v2269, 127
        %v2464 = vpop.permute.xlu0 %2463
        %2465 = vrot.lane.b32.xlu0 %v2271, 127
        %v2466 = vpop.permute.xlu0 %2465
        %2467 = vrot.lane.b32.xlu0 %v2274, 127
        %v2468 = vpop.permute.xlu0 %2467
        %2469 = vrot.lane.b32.xlu0 %v2305, 127
        %v2470 = vpop.permute.xlu0 %2469
        %2471 = vrot.lane.b32.xlu0 %v2307, 127
        %v2472 = vpop.permute.xlu0 %2471
        %2473 = vrot.lane.b32.xlu0 %v2310, 127
        %v2474 = vpop.permute.xlu0 %2473
        %v2475 = vsel %vm394, %v2464, %v2470
        %v2476 = vsel %vm394, %v2466, %v2472
        %v2477 = vsel %vm394, %v2468, %v2474
        %v2478 = vsel %vm394, %v2470, %v2464
        %v2479 = vsel %vm394, %v2472, %v2466
        %v2480 = vsel %vm394, %v2474, %v2468
        %v2481 = vld [vmem:[%s397] ss:$8 sm:$0x3]
        %v2483 = vperm.slane %v2481, 0
        %v2484 = vperm.slane %v2481, 1
        %v2487 = vmul.f32 %v2475, %v2483
        %v2488 = vmul.f32 %v2478, %v2484
        %v2489 = vmul.f32 %v2476, %v2483
        %v2490 = vmul.f32 %v2479, %v2484
        %v2491 = vmul.f32 %v2477, %v2483
        %v2492 = vmul.f32 %v2480, %v2484
        %v2493 = vpack.c.bf16 %v2488, %v2487
        %v2494 = vpack.c.bf16 %v2490, %v2489
        %v2495 = vpack.c.bf16 %v2492, %v2491
        %2496 = vst [vmem:[#allocation5 + $0x78] sm:$0xff] %v2493
        %2497 = vst [vmem:[#allocation5 + $0x80] sm:$0xff] %v2494
        %2498 = vst [vmem:[#allocation5 + $0x88] sm:$0xff] %v2495
        %2499 = vrot.lane.b32.xlu0 %v2269, 113
        %v2500 = vpop.permute.xlu0 %2499
        %2501 = vrot.lane.b32.xlu0 %v2271, 113
        %v2502 = vpop.permute.xlu0 %2501
        %2503 = vrot.lane.b32.xlu0 %v2274, 113
        %v2504 = vpop.permute.xlu0 %2503
        %2505 = vrot.lane.b32.xlu0 %v2305, 113
        %v2506 = vpop.permute.xlu0 %2505
        %2507 = vrot.lane.b32.xlu0 %v2307, 113
        %v2508 = vpop.permute.xlu0 %2507
        %2509 = vrot.lane.b32.xlu0 %v2310, 113
        %v2510 = vpop.permute.xlu0 %2509
        %v2511 = vsel %vm420, %v2500, %v2506
        %v2512 = vsel %vm420, %v2502, %v2508
        %v2513 = vsel %vm420, %v2504, %v2510
        %v2514 = vsel %vm420, %v2506, %v2500
        %v2515 = vsel %vm420, %v2508, %v2502
        %v2516 = vsel %vm420, %v2510, %v2504
        %v2517 = vld [vmem:[%s423] ss:$8 sm:$0x3]
        %v2519 = vperm.slane %v2517, 0
        %v2520 = vperm.slane %v2517, 1
        %v2523 = vmul.f32 %v2511, %v2519
        %v2524 = vmul.f32 %v2514, %v2520
        %v2525 = vmul.f32 %v2512, %v2519
        %v2526 = vmul.f32 %v2515, %v2520
        %v2527 = vmul.f32 %v2513, %v2519
        %v2528 = vmul.f32 %v2516, %v2520
        %v2529 = vpack.c.bf16 %v2524, %v2523
        %v2530 = vpack.c.bf16 %v2526, %v2525
        %v2531 = vpack.c.bf16 %v2528, %v2527
        %2532 = vst [vmem:[#allocation5 + $0x90] sm:$0xff] %v2529
        %2533 = vst [vmem:[#allocation5 + $0x98] sm:$0xff] %v2530
        %2534 = vst [vmem:[#allocation5 + $0xa0] sm:$0xff] %v2531
        %2535 = vrot.lane.b32.xlu0 %v2269, 112
        %v2536 = vpop.permute.xlu0 %2535
        %2537 = vrot.lane.b32.xlu0 %v2271, 112
        %v2538 = vpop.permute.xlu0 %2537
        %2539 = vrot.lane.b32.xlu0 %v2274, 112
        %v2540 = vpop.permute.xlu0 %2539
        %2541 = vrot.lane.b32.xlu0 %v2305, 112
        %v2542 = vpop.permute.xlu0 %2541
        %2543 = vrot.lane.b32.xlu0 %v2307, 112
        %v2544 = vpop.permute.xlu0 %2543
        %2545 = vrot.lane.b32.xlu0 %v2310, 112
        %v2546 = vpop.permute.xlu0 %2545
        %v2547 = vsel %vm443, %v2536, %v2542
        %v2548 = vsel %vm443, %v2538, %v2544
        %v2549 = vsel %vm443, %v2540, %v2546
        %v2550 = vsel %vm443, %v2542, %v2536
        %v2551 = vsel %vm443, %v2544, %v2538
        %v2552 = vsel %vm443, %v2546, %v2540
        %v2553 = vld [vmem:[%s446] ss:$8 sm:$0x3]
        %v2555 = vperm.slane %v2553, 0
        %v2556 = vperm.slane %v2553, 1
        %v2559 = vmul.f32 %v2547, %v2555
        %v2560 = vmul.f32 %v2550, %v2556
        %v2561 = vmul.f32 %v2548, %v2555
        %v2562 = vmul.f32 %v2551, %v2556
        %v2563 = vmul.f32 %v2549, %v2555
        %v2564 = vmul.f32 %v2552, %v2556
        %v2565 = vpack.c.bf16 %v2560, %v2559
        %v2566 = vpack.c.bf16 %v2562, %v2561
        %v2567 = vpack.c.bf16 %v2564, %v2563
        %2568 = vst [vmem:[#allocation5 + $0xa8] sm:$0xff] %v2565
        %2569 = vst [vmem:[#allocation5 + $0xb0] sm:$0xff] %v2566
        %2570 = vst [vmem:[#allocation5 + $0xb8] sm:$0xff] %v2567
        %2571 = vrot.lane.b32.xlu0 %v2269, 111
        %v2572 = vpop.permute.xlu0 %2571
        %2573 = vrot.lane.b32.xlu0 %v2271, 111
        %v2574 = vpop.permute.xlu0 %2573
        %2575 = vrot.lane.b32.xlu0 %v2274, 111
        %v2576 = vpop.permute.xlu0 %2575
        %2577 = vrot.lane.b32.xlu0 %v2305, 111
        %v2578 = vpop.permute.xlu0 %2577
        %2579 = vrot.lane.b32.xlu0 %v2307, 111
        %v2580 = vpop.permute.xlu0 %2579
        %2581 = vrot.lane.b32.xlu0 %v2310, 111
        %v2582 = vpop.permute.xlu0 %2581
        %v2583 = vsel %vm469, %v2572, %v2578
        %v2584 = vsel %vm469, %v2574, %v2580
        %v2585 = vsel %vm469, %v2576, %v2582
        %v2586 = vsel %vm469, %v2578, %v2572
        %v2587 = vsel %vm469, %v2580, %v2574
        %v2588 = vsel %vm469, %v2582, %v2576
        %v2589 = vld [vmem:[%s472] ss:$8 sm:$0x3]
        %v2591 = vperm.slane %v2589, 0
        %v2592 = vperm.slane %v2589, 1
        %v2595 = vmul.f32 %v2583, %v2591
        %v2596 = vmul.f32 %v2586, %v2592
        %v2597 = vmul.f32 %v2584, %v2591
        %v2598 = vmul.f32 %v2587, %v2592
        %v2599 = vmul.f32 %v2585, %v2591
        %v2600 = vmul.f32 %v2588, %v2592
        %v2601 = vpack.c.bf16 %v2596, %v2595
        %v2602 = vpack.c.bf16 %v2598, %v2597
        %v2603 = vpack.c.bf16 %v2600, %v2599
        %2604 = vst [vmem:[#allocation5 + $0xc0] sm:$0xff] %v2601
        %2605 = vst [vmem:[#allocation5 + $0xc8] sm:$0xff] %v2602
        %2606 = vst [vmem:[#allocation5 + $0xd0] sm:$0xff] %v2603
        %v2607 = vld [vmem:[%s5] sm:$0xff]
        %v2608 = vld [vmem:[%s5 + $0x8] sm:$0xff]
        %v2609 = vld [vmem:[%s5 + $0x10] sm:$0xff]
        %v2610 = vld [vmem:[#allocation5] sm:$0xff]
        %v2611 = vld [vmem:[#allocation5 + $0x8] sm:$0xff]
        %v2612 = vld [vmem:[#allocation5 + $0x10] sm:$0xff]
        %v2613 = vld [vmem:[#allocation5 + $0x18] sm:$0xff]
        %v2614 = vld [vmem:[#allocation5 + $0x20] sm:$0xff]
        %v2615 = vld [vmem:[#allocation5 + $0x28] sm:$0xff]
        %v2616 = vld [vmem:[#allocation5 + $0x30] sm:$0xff]
        %v2617 = vld [vmem:[#allocation5 + $0x38] sm:$0xff]
        %v2618 = vld [vmem:[#allocation5 + $0x40] sm:$0xff]
        %v2619 = vld [vmem:[#allocation5 + $0x48] sm:$0xff]
        %v2620 = vld [vmem:[#allocation5 + $0x50] sm:$0xff]
        %v2621 = vld [vmem:[#allocation5 + $0x58] sm:$0xff]
        %v2622 = vld [vmem:[#allocation5 + $0x60] sm:$0xff]
        %v2623 = vld [vmem:[#allocation5 + $0x68] sm:$0xff]
        %v2624 = vld [vmem:[#allocation5 + $0x70] sm:$0xff]
        %v2625 = vld [vmem:[#allocation5 + $0x78] sm:$0xff]
        %v2626 = vld [vmem:[#allocation5 + $0x80] sm:$0xff]
        %v2627 = vld [vmem:[#allocation5 + $0x88] sm:$0xff]
        %v2628 = vld [vmem:[#allocation5 + $0x90] sm:$0xff]
        %v2629 = vld [vmem:[#allocation5 + $0x98] sm:$0xff]
        %v2630 = vld [vmem:[#allocation5 + $0xa0] sm:$0xff]
        %v2631 = vld [vmem:[#allocation5 + $0xa8] sm:$0xff]
        %v2632 = vld [vmem:[#allocation5 + $0xb0] sm:$0xff]
        %v2633 = vld [vmem:[#allocation5 + $0xb8] sm:$0xff]
        %v2634 = vld [vmem:[#allocation5 + $0xc0] sm:$0xff]
        %v2635 = vld [vmem:[#allocation5 + $0xc8] sm:$0xff]
        %v2636 = vld [vmem:[#allocation5 + $0xd0] sm:$0xff]
        %v2637 = vld [vmem:[%s6 + $0x78] sm:$0xff]
        %v2638 = vld [vmem:[%s6 + $0x80] sm:$0xff]
        %v2639 = vld [vmem:[%s6 + $0x88] sm:$0xff]
        %2641 = vset.pattern.permute.xlu0 0
        %2642 = vperm.xlu0 %2641, %v2637
        %v2643 = vpop.permute.xlu0 %2642
        %2646 = vset.pattern.permute.xlu0 0
        %2647 = vperm.xlu0 %2646, %v2638
        %v2648 = vpop.permute.xlu0 %2647
        %2651 = vset.pattern.permute.xlu0 0
        %2652 = vperm.xlu0 %2651, %v2639
        %v2653 = vpop.permute.xlu0 %2652
        %v2658 = vunpack.c.l.b16 %v2607
        %v2659 = vunpack.c.h.b16 %v2607
        %v2660 = vunpack.c.l.b16 %v2608
        %v2661 = vunpack.c.h.b16 %v2608
        %v2662 = vunpack.c.l.b16 %v2609
        %v2663 = vunpack.c.h.b16 %v2609
        %v2664 = vpack.c.b16 %v2660, %v2658
        %v2665 = vpack.c.b16 %v2661, %v2659
        %v2666 = vpack.c.b16 %v2662, %v2662
        %v2667 = vpack.c.b16 %v2663, %v2663
        %v2697 = vunpack.c.l.b16 %v2610
        %v2698 = vunpack.c.h.b16 %v2610
        %v2699 = vunpack.c.l.b16 %v2611
        %v2700 = vunpack.c.h.b16 %v2611
        %v2701 = vunpack.c.l.b16 %v2612
        %v2702 = vunpack.c.h.b16 %v2612
        %v2703 = vunpack.c.l.b16 %v2613
        %v2704 = vunpack.c.h.b16 %v2613
        %v2705 = vunpack.c.l.b16 %v2614
        %v2706 = vunpack.c.h.b16 %v2614
        %v2707 = vunpack.c.l.b16 %v2615
        %v2708 = vunpack.c.h.b16 %v2615
        %v2709 = vunpack.c.l.b16 %v2616
        %v2710 = vunpack.c.h.b16 %v2616
        %v2711 = vunpack.c.l.b16 %v2617
        %v2712 = vunpack.c.h.b16 %v2617
        %v2713 = vunpack.c.l.b16 %v2618
        %v2714 = vunpack.c.h.b16 %v2618
        %v2715 = vunpack.c.l.b16 %v2619
        %v2716 = vunpack.c.h.b16 %v2619
        %v2717 = vunpack.c.l.b16 %v2620
        %v2718 = vunpack.c.h.b16 %v2620
        %v2719 = vunpack.c.l.b16 %v2621
        %v2720 = vunpack.c.h.b16 %v2621
        %v2721 = vunpack.c.l.b16 %v2622
        %v2722 = vunpack.c.h.b16 %v2622
        %v2723 = vunpack.c.l.b16 %v2623
        %v2724 = vunpack.c.h.b16 %v2623
        %v2725 = vunpack.c.l.b16 %v2624
        %v2726 = vunpack.c.h.b16 %v2624
        %v2727 = vunpack.c.l.b16 %v2625
        %v2728 = vunpack.c.h.b16 %v2625
        %v2729 = vunpack.c.l.b16 %v2626
        %v2730 = vunpack.c.h.b16 %v2626
        %v2731 = vunpack.c.l.b16 %v2627
        %v2732 = vunpack.c.h.b16 %v2627
        %v2733 = vunpack.c.l.b16 %v2628
        %v2734 = vunpack.c.h.b16 %v2628
        %v2735 = vunpack.c.l.b16 %v2629
        %v2736 = vunpack.c.h.b16 %v2629
        %v2737 = vunpack.c.l.b16 %v2630
        %v2738 = vunpack.c.h.b16 %v2630
        %v2739 = vunpack.c.l.b16 %v2631
        %v2740 = vunpack.c.h.b16 %v2631
        %v2741 = vunpack.c.l.b16 %v2632
        %v2742 = vunpack.c.h.b16 %v2632
        %v2743 = vunpack.c.l.b16 %v2633
        %v2744 = vunpack.c.h.b16 %v2633
        %v2745 = vunpack.c.l.b16 %v2634
        %v2746 = vunpack.c.h.b16 %v2634
        %v2747 = vunpack.c.l.b16 %v2635
        %v2748 = vunpack.c.h.b16 %v2635
        %v2749 = vunpack.c.l.b16 %v2636
        %v2750 = vunpack.c.h.b16 %v2636
        %v2751 = vpack.c.b16 %v2699, %v2697
        %v2752 = vpack.c.b16 %v2700, %v2698
        %v2753 = vpack.c.b16 %v2703, %v2701
        %v2754 = vpack.c.b16 %v2704, %v2702
        %v2755 = vpack.c.b16 %v2707, %v2705
        %v2756 = vpack.c.b16 %v2708, %v2706
        %v2757 = vpack.c.b16 %v2711, %v2709
        %v2758 = vpack.c.b16 %v2712, %v2710
        %v2759 = vpack.c.b16 %v2715, %v2713
        %v2760 = vpack.c.b16 %v2716, %v2714
        %v2761 = vpack.c.b16 %v2719, %v2717
        %v2762 = vpack.c.b16 %v2720, %v2718
        %v2763 = vpack.c.b16 %v2723, %v2721
        %v2764 = vpack.c.b16 %v2724, %v2722
        %v2765 = vpack.c.b16 %v2727, %v2725
        %v2766 = vpack.c.b16 %v2728, %v2726
        %v2767 = vpack.c.b16 %v2731, %v2729
        %v2768 = vpack.c.b16 %v2732, %v2730
        %v2769 = vpack.c.b16 %v2735, %v2733
        %v2770 = vpack.c.b16 %v2736, %v2734
        %v2771 = vpack.c.b16 %v2739, %v2737
        %v2772 = vpack.c.b16 %v2740, %v2738
        %v2773 = vpack.c.b16 %v2743, %v2741
        %v2774 = vpack.c.b16 %v2744, %v2742
        %v2775 = vpack.c.b16 %v2747, %v2745
        %v2776 = vpack.c.b16 %v2748, %v2746
        %v2777 = vpack.c.b16 %v2749, %v2749
        %v2778 = vpack.c.b16 %v2750, %v2750
        %vm2805 = vcmask 719872
        %v2807 = vsel %vm2805, %v2665, 0
        %v2810 = vsel %vm2805, %v2667, 0
        %vm2812 = vcmask 1043456
        %v2814 = vsel %vm2812, %v2777, 0
        %v2817 = vsel %vm2812, %v2778, 0
        %2819 = vmatpush.bf16.msra.mxu0 %v2765
        %2820 = vmatpush.bf16.msra.mxu0 %v2763
        %2821 = vmatpush.bf16.msra.mxu0 %v2761
        %2822 = vmatpush.bf16.msra.mxu0 %v2759
        %2823 = vmatpush.bf16.msra.mxu0 %v2757
        %2824 = vmatpush.bf16.msra.mxu0 %v2755
        %2825 = vmatpush.bf16.msra.mxu0 %v2753
        %2826 = vmatpush.bf16.msra.mxu0 %v2751
        %2827 = vmatmul.bf16.gmra.mxu0 %v2664
        %v2828 = vpop.f32.mrf.mxu0
        %v2829 = vadd.f32 %v2643, %v2828
        %v2830 = vpop.f32.mrf.mxu0
        %v2831 = vadd.f32 %v2648, %v2830
        %2832 = vmatmul.bf16.gmra.mxu0 %v2666
        %v2833 = vpop.f32.mrf.mxu0
        %v2834 = vadd.f32 %v2653, %v2833
        %v2835 = vpop.f32.mrf.mxu0
        %2836 = vdwg.mxu0
        %2837 = vmatpush.bf16.msra.mxu0 0
        %2838 = vmatpush.bf16.msra.mxu0 0
        %2839 = vmatpush.bf16.msra.mxu0 %v2814
        %2840 = vmatpush.bf16.msra.mxu0 %v2775
        %2841 = vmatpush.bf16.msra.mxu0 %v2773
        %2842 = vmatpush.bf16.msra.mxu0 %v2771
        %2843 = vmatpush.bf16.msra.mxu0 %v2769
        %2844 = vmatpush.bf16.msra.mxu0 %v2767
        %2845 = vmatmul.bf16.gmra.mxu0 %v2807
        %v2846 = vpop.f32.mrf.mxu0
        %v2847 = vadd.f32 %v2829, %v2846
        %v2848 = vpop.f32.mrf.mxu0
        %v2849 = vadd.f32 %v2831, %v2848
        %2850 = vmatmul.bf16.gmra.mxu0 %v2810
        %v2851 = vpop.f32.mrf.mxu0
        %v2852 = vadd.f32 %v2834, %v2851
        %v2853 = vpop.f32.mrf.mxu0
        %2854 = vdwg.mxu0
        %2855 = vmatpush.bf16.msra.mxu0 %v2766
        %2856 = vmatpush.bf16.msra.mxu0 %v2764
        %2857 = vmatpush.bf16.msra.mxu0 %v2762
        %2858 = vmatpush.bf16.msra.mxu0 %v2760
        %2859 = vmatpush.bf16.msra.mxu0 %v2758
        %2860 = vmatpush.bf16.msra.mxu0 %v2756
        %2861 = vmatpush.bf16.msra.mxu0 %v2754
        %2862 = vmatpush.bf16.msra.mxu0 %v2752
        %2863 = vmatmul.bf16.gmra.mxu0 %v2664
        %v2864 = vpop.f32.mrf.mxu0
        %v2865 = vadd.f32 %v2643, %v2864
        %v2866 = vpop.f32.mrf.mxu0
        %v2867 = vadd.f32 %v2648, %v2866
        %2868 = vmatmul.bf16.gmra.mxu0 %v2666
        %v2869 = vpop.f32.mrf.mxu0
        %v2870 = vadd.f32 %v2653, %v2869
        %v2871 = vpop.f32.mrf.mxu0
        %2872 = vdwg.mxu0
        %2873 = vmatpush.bf16.msra.mxu0 0
        %2874 = vmatpush.bf16.msra.mxu0 0
        %2875 = vmatpush.bf16.msra.mxu0 %v2817
        %2876 = vmatpush.bf16.msra.mxu0 %v2776
        %2877 = vmatpush.bf16.msra.mxu0 %v2774
        %2878 = vmatpush.bf16.msra.mxu0 %v2772
        %2879 = vmatpush.bf16.msra.mxu0 %v2770
        %2880 = vmatpush.bf16.msra.mxu0 %v2768
        %2881 = vmatmul.bf16.gmra.mxu0 %v2807
        %v2882 = vpop.f32.mrf.mxu0
        %v2883 = vadd.f32 %v2865, %v2882
        %v2884 = vpop.f32.mrf.mxu0
        %v2885 = vadd.f32 %v2867, %v2884
        %2886 = vmatmul.bf16.gmra.mxu0 %v2810
        %v2887 = vpop.f32.mrf.mxu0
        %v2888 = vadd.f32 %v2870, %v2887
        %v2889 = vpop.f32.mrf.mxu0
        %2890 = vdwg.mxu0
        %2891 = vst [vmem:[%s268 + $0x80] sm:$0xff] %v2847
        %2892 = vst [vmem:[%s268 + $0x88] sm:$0xff] %v2883
        %2893 = vst [vmem:[%s268 + $0x90] sm:$0xff] %v2849
        %2894 = vst [vmem:[%s268 + $0x98] sm:$0xff] %v2885
        %2895 = vst [vmem:[%s268 + $0xa0] sm:$0xff] %v2852
        %2896 = vst [vmem:[%s268 + $0xa8] sm:$0xff] %v2888
        %s2897 = sand.u32 %s178, 1
        %s2898 = sand.u32 %s178, 1
        %s2899 = smul.addr %s2898, 176
        %s2900 = scalar_lea.vmem [#allocation6], %s2899
        // Predicated region
        $region49: #{inception_a_forward.1} parent=47 // pred_check
          %p2901 = pneg %p188
        $region50: #{inception_a_forward.1} parent=47 // pred_check_branch
          %2903 = sbr.rel (%p2901) target = $region52
        $region51: #{inception_a_forward.1} parent=47 // pred_region
          %s2904 = smul.u32 2, %s18
          %s2905 = smul.addr %s2904, 8
          %s2906 = scalar_lea.vmem %s7, %s2905
          // Predicated region
          $region53: #{inception_a_forward.1} parent=51 // pred_check
            _
          $region54: #{inception_a_forward.1} parent=51 // pred_check_branch
            %2908 = sbr.rel (0) target = $region56
          $region55: #{inception_a_forward.1} parent=51 // pred_region
            // Predicated region
            $region57: #{inception_a_forward.1} parent=55 // pred_check
              _
            $region58: #{inception_a_forward.1} parent=55 // pred_check_branch
              %2910 = sbr.rel (0) target = $region60
            $region59: #{inception_a_forward.1} parent=55 // pred_region
              loop: start=0, step=1, limit=1
              $region61: #{inception_a_forward.1} parent=59 // loop_pre_header
                _
              $region62: #{inception_a_forward.1} parent=59 // loop_header
                %s2912 = sphi 0, %s2916
                %p2913 = scmp.ge.s32.totalorder %s2912, 1
                %s2917 = sphi %s2900, %s2900
                %s2918 = sphi %s2906, %s2906
              $region63: #{inception_a_forward.1} parent=59 // loop_header_branch
                %2915 = sbr.rel (%p2913) target = $region67
              $region64: #{inception_a_forward.1} parent=59 // loop_body
                %v2919 = vld [vmem:[%s2917] sm:$0xff]
                %2920 = vst [vmem:[%s2918] sm:$0xff] %v2919
                %v2921 = vld [vmem:[%s2917 + $0x8] sm:$0xff]
                %2922 = vst [vmem:[%s2918 + $0x8] sm:$0xff] %v2921
                %v2923 = vld [vmem:[%s2917 + $0x10] sm:$0xff]
                %2924 = vst [vmem:[%s2918 + $0x20] sm:$0xff] %v2923
                %v2925 = vld [vmem:[%s2917 + $0x18] sm:$0xff]
                %2926 = vst [vmem:[%s2918 + $0x28] sm:$0xff] %v2925
                %v2927 = vld [vmem:[%s2917 + $0x20] sm:$0xff]
                %2928 = vst [vmem:[%s2918 + $0x40] sm:$0xff] %v2927
                %v2929 = vld [vmem:[%s2917 + $0x28] sm:$0xff]
                %2930 = vst [vmem:[%s2918 + $0x48] sm:$0xff] %v2929
                %v2931 = vld [vmem:[%s2917 + $0x30] sm:$0xff]
                %2932 = vst [vmem:[%s2918 + $0x60] sm:$0xff] %v2931
                %v2933 = vld [vmem:[%s2917 + $0x38] sm:$0xff]
                %2934 = vst [vmem:[%s2918 + $0x68] sm:$0xff] %v2933
                %v2935 = vld [vmem:[%s2917 + $0x40] sm:$0xff]
                %2936 = vst [vmem:[%s2918 + $0x80] sm:$0xff] %v2935
                %v2937 = vld [vmem:[%s2917 + $0x48] sm:$0xff]
                %2938 = vst [vmem:[%s2918 + $0x88] sm:$0xff] %v2937
                %v2939 = vld [vmem:[%s2917 + $0x50] sm:$0xff]
                %2940 = vst [vmem:[%s2918 + $0xa0] sm:$0xff] %v2939
                %v2941 = vld [vmem:[%s2917 + $0x58] sm:$0xff]
                %2942 = vst [vmem:[%s2918 + $0xa8] sm:$0xff] %v2941
                %v2943 = vld [vmem:[%s2917 + $0x60] sm:$0xff]
                %2944 = vst [vmem:[%s2918 + $0xc0] sm:$0xff] %v2943
                %v2945 = vld [vmem:[%s2917 + $0x68] sm:$0xff]
                %2946 = vst [vmem:[%s2918 + $0xc8] sm:$0xff] %v2945
                %v2947 = vld [vmem:[%s2917 + $0x70] sm:$0xff]
                %2948 = vst [vmem:[%s2918 + $0xe0] sm:$0xff] %v2947
                %v2949 = vld [vmem:[%s2917 + $0x78] sm:$0xff]
                %2950 = vst [vmem:[%s2918 + $0xe8] sm:$0xff] %v2949
                %v2951 = vld [vmem:[%s2917 + $0x80] sm:$0xff]
                %2952 = vst [vmem:[%s2918 + $0x100] sm:$0xff] %v2951
                %v2953 = vld [vmem:[%s2917 + $0x88] sm:$0xff]
                %2954 = vst [vmem:[%s2918 + $0x108] sm:$0xff] %v2953
                %v2955 = vld [vmem:[%s2917 + $0x90] sm:$0xff]
                %2956 = vst [vmem:[%s2918 + $0x120] sm:$0xff] %v2955
                %v2957 = vld [vmem:[%s2917 + $0x98] sm:$0xff]
                %2958 = vst [vmem:[%s2918 + $0x128] sm:$0xff] %v2957
                %v2959 = vld [vmem:[%s2917 + $0xa0] sm:$0xff]
                %2960 = vst [vmem:[%s2918 + $0x140] sm:$0xff] %v2959
                %v2961 = vld [vmem:[%s2917 + $0xa8] sm:$0xff]
                %2962 = vst [vmem:[%s2918 + $0x148] sm:$0xff] %v2961
              $region65: #{inception_a_forward.1} parent=59 // loop_footer
                %s2916 = sadd.s32 1, %s2912
              $region66: #{inception_a_forward.1} parent=59 // loop_footer_branch
                %2911 = sbr.rel target = $region62
              $region67: #{inception_a_forward.1} parent=59 // loop_exit
                _
            $region60: #{inception_a_forward.1} parent=55 // pred_fallthru
              _
            // Predicated region
            $region68: #{inception_a_forward.1} parent=55 // pred_check
              _
            $region69: #{inception_a_forward.1} parent=55 // pred_check_branch
              %2964 = sbr.rel target = $region71
            $region70: #{inception_a_forward.1} parent=55 // pred_region
              _
            $region71: #{inception_a_forward.1} parent=55 // pred_fallthru
              _
          $region56: #{inception_a_forward.1} parent=51 // pred_fallthru
            _
          %2965 = vnop
        $region52: #{inception_a_forward.1} parent=47 // pred_fallthru
          _
      $region48: #{inception_a_forward.1} parent=5 // pred_fallthru
        _
      %p2966 = scmp.le.s32.totalorder 2, %s13
      // Predicated region
      $region72: #{inception_a_forward.1} parent=5 // pred_check
        %p2967 = pneg %p2966
      $region73: #{inception_a_forward.1} parent=5 // pred_check_branch
        %2969 = sbr.rel (%p2967) target = $region75
      $region74: #{inception_a_forward.1} parent=5 // pred_region
        %s2970 = ssub.s32 %s13, 2
        // Predicated region
        $region76: #{inception_a_forward.1} parent=74 // pred_check
          %p2971 = pneg %p194
        $region77: #{inception_a_forward.1} parent=74 // pred_check_branch
          %2973 = sbr.rel (%p2971) target = $region79
        $region78: #{inception_a_forward.1} parent=74 // pred_region
          %s2974 = sand.u32 %s179, 1
          %s2975 = sand.u32 %s179, 1
          %s2976 = smul.addr %s2975, 176
          %s2977 = scalar_lea.vmem [#allocation6], %s2976
        $region79: #{inception_a_forward.1} parent=74 // pred_fallthru
          _
      $region75: #{inception_a_forward.1} parent=5 // pred_fallthru
        _
    $region6: #{inception_a_forward.1} parent=1 // loop_footer
      %s17 = sadd.s32 1, %s13
    $region7: #{inception_a_forward.1} parent=1 // loop_footer_branch
      %12 = sbr.rel target = $region3
    $region8: #{inception_a_forward.1} parent=1 // loop_exit
      _

</llo_original>
